<compile_context>
chip_gen: v6e
topology: v6e:2x2x1
jax: 0.10.0
libtpu: 0.0.40
codegen_flags: <defaults>
</compile_context>

<pallas_src>
import functools
import numpy as np
import jax
import jax.numpy as jnp
from jax.experimental import pallas as pl
from jax.experimental.pallas import tpu as pltpu

# ----------------------------- model config ---------------------------------
B = 2
S = 8
INPUT_DIM = 16
EMBED_DIM = 32
NUM_HEADS = 4
NUM_LAYERS = 2
NUM_CLUSTERS = 5
FFN_DIM = 4 * EMBED_DIM
HEAD_DIM = EMBED_DIM // NUM_HEADS
LN_EPS = 1e-5


def _round_up(x, m):
    return ((x + m - 1) // m) * m


def _layer_norm(x, w, b):
    mu = jnp.mean(x, axis=-1, keepdims=True)
    var = jnp.mean((x - mu) ** 2, axis=-1, keepdims=True)
    return (x - mu) * jax.lax.rsqrt(var + LN_EPS) * w + b


# --------------------------- host-side packing --------------------------------
class _Packer:
    """Packs 2-D f32 arrays into one (ROWS, width) buffer, 8-row (sublane) aligned."""

    def __init__(self, width):
        self.width = width
        self.rows = 0
        self._items = []
        self.layout = {}

    def add(self, name, arr):
        arr = np.asarray(arr, np.float32)
        if arr.ndim == 1:
            arr = arr[None, :]
        nr, nc = arr.shape
        assert nc <= self.width, (name, arr.shape, self.width)
        r0 = self.rows
        self.layout[name] = (r0, nr, nc)
        self._items.append((r0, arr))
        self.rows = r0 + _round_up(nr, 8)

    def finalize(self):
        total = max(_round_up(self.rows, 8), 8)
        buf = np.zeros((total, self.width), np.float32)
        for r0, arr in self._items:
            buf[r0:r0 + arr.shape[0], :arr.shape[1]] = arr
        return buf, dict(self.layout)


def _pack_params_and_constants(params, *, bpb, seq, nheads):
    """One contiguous f32 buffer holding every weight/bias plus every static mask/selector."""
    f32 = np.float32
    w_emb = np.asarray(params["w_emb"], f32)
    din, E = w_emb.shape
    nlayers = int(params["wqkv"].shape[0])
    ffn = int(params["w1"].shape[2])
    nc = int(params["w_cluster"].shape[1])
    hd = E // nheads
    T = bpb * seq
    HT = nheads * T
    scale = 1.0 / float(np.sqrt(hd))

    width = _round_up(max(din, E, ffn, HT, T, nc), 128)
    pk = _Packer(width)

    # embedding weight + (bias + tiled positional encoding) folded into one additive constant
    pk.add("w_emb", w_emb)
    pe = np.asarray(params["pe"], f32)[:seq]
    pk.add("emb_pe", np.tile(pe, (bpb, 1)) + np.asarray(params["b_emb"], f32))       # (T, E)

    # static attention constants (NumPy at pack time -> no in-kernel mask construction)
    e_i = np.arange(E)
    c_i = np.arange(HT)
    t_i = np.arange(T)
    pk.add("kmask", ((e_i[:, None] // hd) == (c_i[None, :] // T)).astype(f32))       # (E, HT)
    pk.add("r_k", ((c_i[None, :] % T) == t_i[:, None]).astype(f32))                  # (T, HT)
    pk.add("vmask", ((c_i[:, None] // T) == (e_i[None, :] // hd)).astype(f32))       # (HT, E)
    pk.add("r_v", ((c_i[:, None] % T) == t_i[None, :]).astype(f32))                  # (HT, T)
    pk.add("neg_bias", np.where((t_i[:, None] // seq) == ((c_i[None, :] % T) // seq),
                                0.0, -1e30).astype(f32))                             # (T, HT)
    pk.add("sel", np.where(np.arange(bpb)[:, None] == (t_i[None, :] // seq),
                           1.0 / seq, 0.0).astype(f32))                              # (bpb, T)

    pk.add("w_cluster", np.asarray(params["w_cluster"], f32))
    pk.add("b_cluster", np.asarray(params["b_cluster"], f32))

    for li in range(nlayers):
        wqkv = np.asarray(params["wqkv"][li], f32)
        bqkv = np.asarray(params["bqkv"][li], f32)
        pk.add(f"wq_{li}", wqkv[:, 0:E] * scale)          # 1/sqrt(head_dim) folded into Q proj
        pk.add(f"bq_{li}", bqkv[:, 0:E] * scale)
        pk.add(f"wk_{li}", wqkv[:, E:2 * E])
        pk.add(f"bk_{li}", bqkv[:, E:2 * E])
        pk.add(f"wv_{li}", wqkv[:, 2 * E:3 * E])
        pk.add(f"bv_{li}", bqkv[:, 2 * E:3 * E])
        pk.add(f"wo_{li}", np.asarray(params["wo"][li], f32))
        pk.add(f"bo_{li}", np.asarray(params["bo"][li], f32))
        pk.add(f"ln1w_{li}", np.asarray(params["ln1w"][li], f32))
        pk.add(f"ln1b_{li}", np.asarray(params["ln1b"][li], f32))
        pk.add(f"w1_{li}", np.asarray(params["w1"][li], f32))
        pk.add(f"b1_{li}", np.asarray(params["b1"][li], f32))
        pk.add(f"w2_{li}", np.asarray(params["w2"][li], f32))
        pk.add(f"b2_{li}", np.asarray(params["b2"][li], f32))
        pk.add(f"ln2w_{li}", np.asarray(params["ln2w"][li], f32))
        pk.add(f"ln2b_{li}", np.asarray(params["ln2b"][li], f32))

    buf, layout = pk.finalize()
    return jnp.asarray(buf), layout


# ------------------------------- fused kernel --------------------------------
def fused_forward_kernel(x_ref, pack_ref, logits_ref, enc_ref, *,
                         layout, nlayers, bpb, seq, embed_dim):
    f32 = jnp.float32
    E = embed_dim
    T = bpb * seq

    def get(name):
        r0, nr, nc = layout[name]
        return pack_ref[r0:r0 + nr, 0:nc]          # static slice of the packed VMEM buffer

    # ---- gene_embedding (Linear) + positional encoding (bias+PE pre-folded) ----
    h = jnp.dot(x_ref[0], get("w_emb"), preferred_element_type=f32) + get("emb_pe")   # (T, E)

    kmask = get("kmask")          # (E, H*T)  block-diagonal K mask
    r_k = get("r_k")              # (T, H*T)  column replication matrix
    vmask = get("vmask")          # (H*T, E)  block-diagonal V mask == denominator summation matrix
    r_v = get("r_v")              # (H*T, T)  row replication matrix
    neg_bias = get("neg_bias")    # (T, H*T)  -1e30 on cross-sample score columns

    # ---- post-norm nn.TransformerEncoderLayer x nlayers (statically unrolled) ----
    # TODO(synk): default MXU input precision (bf16 inputs, f32 accum); pass
    # precision=jax.lax.Precision.HIGHEST on the dots if bit-parity with PyTorch f32 is needed.
    for li in range(nlayers):
        lp = lambda n: get(f"{n}_{li}")
        q = jnp.dot(h, lp("wq"), preferred_element_type=f32) + lp("bq")   # pre-scaled by 1/sqrt(hd)
        k = jnp.dot(h, lp("wk"), preferred_element_type=f32) + lp("bk")
        v = jnp.dot(h, lp("wv"), preferred_element_type=f32) + lp("bv")

        # all heads & all samples in ONE score matmul against a block-diagonal K expansion,
        # built with a constant replication matmul (MXU) + constant mask (VPU) — no concats.
        k_bd = kmask * jnp.dot(k.T, r_k, preferred_element_type=f32)      # (E, H*T)
        s = jnp.dot(q, k_bd, preferred_element_type=f32)                  # (T, H*T)
        if bpb > 1:
            s = s + neg_bias                                              # no cross-sample attention
        m = jnp.max(s, axis=-1, keepdims=True)                            # uniform shift per row
        p = jnp.exp(s - m)                                                # cross-sample -> exactly 0

        v_bd = vmask * jnp.dot(r_v, v, preferred_element_type=f32)        # (H*T, E)
        pv = jnp.dot(p, v_bd, preferred_element_type=f32)                 # (T, E) unnormalized
        denom = jnp.dot(p, vmask, preferred_element_type=f32)             # (T, E) per-(token,head) sums
        attn = pv * pl.reciprocal(jnp.maximum(denom, 1e-20), approx=True)  # clamp: no Inf on underflow

        attn = jnp.dot(attn, lp("wo"), preferred_element_type=f32) + lp("bo")
        h = _layer_norm(h + attn, lp("ln1w"), lp("ln1b"))

        # feed-forward (Linear -> ReLU -> Linear)
        ff = jnp.dot(h, lp("w1"), preferred_element_type=f32) + lp("b1")
        ff = jnp.maximum(ff, 0.0)
        ff = jnp.dot(ff, lp("w2"), preferred_element_type=f32) + lp("b2")
        h = _layer_norm(h + ff, lp("ln2w"), lp("ln2b"))

    # ---- cluster head: per-sample mean over seq (1/S folded into selector matmul) + Linear ----
    cell = jnp.dot(get("sel"), h, preferred_element_type=f32)             # (bpb, E)
    logits_ref[0] = jnp.dot(cell, get("w_cluster"), preferred_element_type=f32) + get("b_cluster")
    enc_ref[0] = h                                                        # (T, E)


# ------------------------------ wrapper -------------------------------------
def transformer_cluster_forward(x, params, *, samples_per_block=None):
    Bsz, seq, din = x.shape
    emb = int(params["w_emb"].shape[1])
    nlayers = int(params["wqkv"].shape[0])
    nc = int(params["w_cluster"].shape[1])

    # Fold as many samples as possible into the sublane (token) axis of one grid step
    # (target ~128 tokens); remaining sample-blocks become a "parallel" grid axis (megacore).
    if samples_per_block is None:
        samples_per_block = max(1, min(Bsz, max(1, 128 // seq)))
    bpb = samples_per_block
    num_blocks = -(-Bsz // bpb)
    T = bpb * seq

    pack, layout = _pack_params_and_constants(params, bpb=bpb, seq=seq, nheads=NUM_HEADS)
    rows, width = pack.shape

    # pad the batch to a whole number of blocks and fold samples into the token axis
    total = num_blocks * bpb
    if total != Bsz:
        x = jnp.concatenate([x, jnp.zeros((total - Bsz, seq, din), x.dtype)], axis=0)
    x_blocks = x.reshape(num_blocks, T, din)

    kern = functools.partial(fused_forward_kernel, layout=layout, nlayers=nlayers,
                             bpb=bpb, seq=seq, embed_dim=emb)
    logits_blk, enc_blk = pl.pallas_call(
        kern,
        grid=(num_blocks,),
        in_specs=[
            pl.BlockSpec((1, T, din), lambda i: (i, 0, 0)),        # per-block activations
            pl.BlockSpec((rows, width), lambda i: (0, 0)),         # packed params: one DMA, resident
        ],
        out_specs=(
            pl.BlockSpec((1, bpb, nc), lambda i: (i, 0, 0)),
            pl.BlockSpec((1, T, emb), lambda i: (i, 0, 0)),
        ),
        out_shape=(
            jax.ShapeDtypeStruct((num_blocks, bpb, nc), jnp.float32),
            jax.ShapeDtypeStruct((num_blocks, T, emb), jnp.float32),
        ),
        compiler_params=pltpu.CompilerParams(dimension_semantics=("parallel",)),
    )(x_blocks, pack)

    logits = logits_blk.reshape(total, nc)[:Bsz]
    enc = enc_blk.reshape(total, seq, emb)[:Bsz]
    return logits, enc


# --------------------------- pure-JAX reference ------------------------------
def reference_forward(x, params):
    Bsz, seq, _ = x.shape
    h = x @ params["w_emb"] + params["b_emb"] + params["pe"][:seq]
    for li in range(params["wqkv"].shape[0]):
        qkv = h @ params["wqkv"][li] + params["bqkv"][li]
        q, k, v = jnp.split(qkv, 3, axis=-1)

        def split_heads(t):
            return t.reshape(Bsz, seq, NUM_HEADS, HEAD_DIM).transpose(0, 2, 1, 3)

        qh, kh, vh = map(split_heads, (q, k, v))
        sc = jnp.einsum("bhqd,bhkd->bhqk", qh, kh) / np.sqrt(HEAD_DIM)
        p = jax.nn.softmax(sc, axis=-1)
        o = jnp.einsum("bhqk,bhkd->bhqd", p, vh).transpose(0, 2, 1, 3).reshape(Bsz, seq, EMBED_DIM)
        o = o @ params["wo"][li] + params["bo"][li]
        h = _layer_norm(h + o, params["ln1w"][li], params["ln1b"][li])
        ff = jnp.maximum(h @ params["w1"][li] + params["b1"][li], 0.0)
        ff = ff @ params["w2"][li] + params["b2"][li]
        h = _layer_norm(h + ff, params["ln2w"][li], params["ln2b"][li])
    cell = h.mean(axis=1)
    logits = cell @ params["w_cluster"] + params["b_cluster"]
    return logits, h


# --------------------------- parameter setup ---------------------------------
def make_positional_encoding(max_len, emb):
    position = np.arange(max_len, dtype=np.float32)[:, None]
    div_term = np.exp(np.arange(0, emb, 2, dtype=np.float32) * (-np.log(10000.0) / emb))
    pe = np.zeros((max_len, emb), dtype=np.float32)
    pe[:, 0::2] = np.sin(position * div_term)
    pe[:, 1::2] = np.cos(position * div_term)
    return jnp.asarray(pe)


def init_params(key):
    def dense(k, din, dout, scale=0.05):
        kw, kb = jax.random.split(k)
        w = scale * jax.random.normal(kw, (din, dout), dtype=jnp.float32)  # x @ W orientation
        b = scale * jax.random.normal(kb, (1, dout), dtype=jnp.float32)
        return w, b

    keys = jax.random.split(key, 2 + NUM_LAYERS)
    params = {"pe": make_positional_encoding(S, EMBED_DIM)}
    params["w_emb"], params["b_emb"] = dense(keys[0], INPUT_DIM, EMBED_DIM)
    params["w_cluster"], params["b_cluster"] = dense(keys[1], EMBED_DIM, NUM_CLUSTERS)

    names = ("wqkv", "bqkv", "wo", "bo", "ln1w", "ln1b", "w1", "b1", "w2", "b2", "ln2w", "ln2b")
    per_layer = {n: [] for n in names}
    for li in range(NUM_LAYERS):
        lk = jax.random.split(keys[2 + li], 4)
        wqkv, bqkv = dense(lk[0], EMBED_DIM, 3 * EMBED_DIM)
        wo, bo = dense(lk[1], EMBED_DIM, EMBED_DIM)
        w1, b1 = dense(lk[2], EMBED_DIM, FFN_DIM)
        w2, b2 = dense(lk[3], FFN_DIM, EMBED_DIM)
        vals = dict(wqkv=wqkv, bqkv=bqkv, wo=wo, bo=bo,
                    ln1w=jnp.ones((1, EMBED_DIM), jnp.float32),
                    ln1b=jnp.zeros((1, EMBED_DIM), jnp.float32),
                    w1=w1, b1=b1, w2=w2, b2=b2,
                    ln2w=jnp.ones((1, EMBED_DIM), jnp.float32),
                    ln2b=jnp.zeros((1, EMBED_DIM), jnp.float32))
        for n in names:
            per_layer[n].append(vals[n])
    for n in names:
        params[n] = jnp.stack(per_layer[n], axis=0)   # stacked (NUM_LAYERS, ...) layout
    # TODO(synk): predictor head (used only in predict_genes, not forward) is not instantiated.
    return params


# ------------------------------- main -----------------------------------------
if __name__ == "__main__":
    key = jax.random.PRNGKey(0)
    k_params, k_x = jax.random.split(key)
    params = init_params(k_params)
    x = jax.random.normal(k_x, (B, S, INPUT_DIM), dtype=jnp.float32)

    cluster_logits, encoded = transformer_cluster_forward(x, params)
    jax.block_until_ready((cluster_logits, encoded))

    assert cluster_logits.shape == (B, NUM_CLUSTERS), cluster_logits.shape
    assert encoded.shape == (B, S, EMBED_DIM), encoded.shape
    assert bool(jnp.all(jnp.isfinite(cluster_logits))) and bool(jnp.all(jnp.isfinite(encoded)))

    ref_logits, ref_encoded = reference_forward(x, params)
    assert bool(jnp.allclose(cluster_logits, ref_logits, atol=5e-2, rtol=5e-2))
    assert bool(jnp.allclose(encoded, ref_encoded, atol=5e-2, rtol=5e-2))
    print("KERNEL_OK")
</pallas_src>

<mosaic_0001>
module attributes {stable_mosaic.version = 11 : i64} {
  func.func @fused_forward_kernel(%arg0: i32, %arg1: memref<1x16x16xf32, #tpu.memory_space<vmem>>, %arg2: memref<1008x128xf32, #tpu.memory_space<vmem>>, %arg3: memref<1x2x5xf32, #tpu.memory_space<vmem>>, %arg4: memref<1x16x32xf32, #tpu.memory_space<vmem>>) attributes {dimension_semantics = [#tpu.dimension_semantics<parallel>], iteration_bounds = array<i64: 1>, scalar_prefetch = 0 : i64, scratch_operands = 0 : i64, tpu.core_type = #tpu.core_type<tc>, window_params = [{transform_indices = @transform_0, window_bounds = array<i64: 1, 16, 16>}, {pipeline_mode = #tpu.pipeline_mode<synchronous>, transform_indices = @transform_1, window_bounds = array<i64: 1008, 128>}, {transform_indices = @transform_2, window_bounds = array<i64: 1, 2, 5>}, {transform_indices = @transform_3, window_bounds = array<i64: 1, 16, 32>}]} {
    %c0 = arith.constant 0 : index
    %c0_0 = arith.constant 0 : index
    %c0_1 = arith.constant 0 : index
    %0 = vector.load %arg1[%c0, %c0_0, %c0_1] : memref<1x16x16xf32, #tpu.memory_space<vmem>>, vector<1x16x16xf32>
    %1 = vector.shape_cast %0 : vector<1x16x16xf32> to vector<16x16xf32>
    %c0_2 = arith.constant 0 : index
    %c0_3 = arith.constant 0 : index
    %2 = vector.load %arg2[%c0_2, %c0_3] : memref<1008x128xf32, #tpu.memory_space<vmem>>, vector<16x32xf32>
    %cst = arith.constant dense<0.000000e+00> : vector<16x32xf32>
    %3 = tpu.matmul %1, %2, %cst {dimension_numbers = #tpu.dot_dimension_numbers<[1], [0], [0], [1], [0, 0, 1, 1], [], []>} : vector<16x16xf32>, vector<16x32xf32>, vector<16x32xf32> -> vector<16x32xf32>
    %c16 = arith.constant 16 : index
    %c0_4 = arith.constant 0 : index
    %4 = vector.load %arg2[%c16, %c0_4] : memref<1008x128xf32, #tpu.memory_space<vmem>>, vector<16x32xf32>
    %5 = arith.addf %3, %4 : vector<16x32xf32>
    %c32 = arith.constant 32 : index
    %c0_5 = arith.constant 0 : index
    %6 = vector.load %arg2[%c32, %c0_5] : memref<1008x128xf32, #tpu.memory_space<vmem>>, vector<32x64xf32>
    %c64 = arith.constant 64 : index
    %c0_6 = arith.constant 0 : index
    %7 = vector.load %arg2[%c64, %c0_6] : memref<1008x128xf32, #tpu.memory_space<vmem>>, vector<16x64xf32>
    %c80 = arith.constant 80 : index
    %c0_7 = arith.constant 0 : index
    %8 = vector.load %arg2[%c80, %c0_7] : memref<1008x128xf32, #tpu.memory_space<vmem>>, vector<64x32xf32>
    %c144 = arith.constant 144 : index
    %c0_8 = arith.constant 0 : index
    %9 = vector.load %arg2[%c144, %c0_8] : memref<1008x128xf32, #tpu.memory_space<vmem>>, vector<64x16xf32>
    %c208 = arith.constant 208 : index
    %c0_9 = arith.constant 0 : index
    %10 = vector.load %arg2[%c208, %c0_9] : memref<1008x128xf32, #tpu.memory_space<vmem>>, vector<16x64xf32>
    %c272 = arith.constant 272 : index
    %c0_10 = arith.constant 0 : index
    %11 = vector.load %arg2[%c272, %c0_10] : memref<1008x128xf32, #tpu.memory_space<vmem>>, vector<32x32xf32>
    %cst_11 = arith.constant dense<0.000000e+00> : vector<16x32xf32>
    %12 = tpu.matmul %5, %11, %cst_11 {dimension_numbers = #tpu.dot_dimension_numbers<[1], [0], [0], [1], [0, 0, 1, 1], [], []>} : vector<16x32xf32>, vector<32x32xf32>, vector<16x32xf32> -> vector<16x32xf32>
    %c304 = arith.constant 304 : index
    %c0_12 = arith.constant 0 : index
    %13 = vector.load %arg2[%c304, %c0_12] : memref<1008x128xf32, #tpu.memory_space<vmem>>, vector<1x32xf32>
    %14 = vector.broadcast %13 : vector<1x32xf32> to vector<16x32xf32>
    %15 = arith.addf %12, %14 : vector<16x32xf32>
    %c312 = arith.constant 312 : index
    %c0_13 = arith.constant 0 : index
    %16 = vector.load %arg2[%c312, %c0_13] : memref<1008x128xf32, #tpu.memory_space<vmem>>, vector<32x32xf32>
    %cst_14 = arith.constant dense<0.000000e+00> : vector<16x32xf32>
    %17 = tpu.matmul %5, %16, %cst_14 {dimension_numbers = #tpu.dot_dimension_numbers<[1], [0], [0], [1], [0, 0, 1, 1], [], []>} : vector<16x32xf32>, vector<32x32xf32>, vector<16x32xf32> -> vector<16x32xf32>
    %c344 = arith.constant 344 : index
    %c0_15 = arith.constant 0 : index
    %18 = vector.load %arg2[%c344, %c0_15] : memref<1008x128xf32, #tpu.memory_space<vmem>>, vector<1x32xf32>
    %19 = vector.broadcast %18 : vector<1x32xf32> to vector<16x32xf32>
    %20 = arith.addf %17, %19 : vector<16x32xf32>
    %c352 = arith.constant 352 : index
    %c0_16 = arith.constant 0 : index
    %21 = vector.load %arg2[%c352, %c0_16] : memref<1008x128xf32, #tpu.memory_space<vmem>>, vector<32x32xf32>
    %cst_17 = arith.constant dense<0.000000e+00> : vector<16x32xf32>
    %22 = tpu.matmul %5, %21, %cst_17 {dimension_numbers = #tpu.dot_dimension_numbers<[1], [0], [0], [1], [0, 0, 1, 1], [], []>} : vector<16x32xf32>, vector<32x32xf32>, vector<16x32xf32> -> vector<16x32xf32>
    %c384 = arith.constant 384 : index
    %c0_18 = arith.constant 0 : index
    %23 = vector.load %arg2[%c384, %c0_18] : memref<1008x128xf32, #tpu.memory_space<vmem>>, vector<1x32xf32>
    %24 = vector.broadcast %23 : vector<1x32xf32> to vector<16x32xf32>
    %25 = arith.addf %22, %24 : vector<16x32xf32>
    %26 = tpu.transpose %20, [1, 0] : vector<16x32xf32> -> vector<32x16xf32>
    %cst_19 = arith.constant dense<0.000000e+00> : vector<32x64xf32>
    %27 = tpu.matmul %26, %7, %cst_19 {dimension_numbers = #tpu.dot_dimension_numbers<[1], [0], [0], [1], [0, 0, 1, 1], [], []>} : vector<32x16xf32>, vector<16x64xf32>, vector<32x64xf32> -> vector<32x64xf32>
    %28 = arith.mulf %6, %27 : vector<32x64xf32>
    %cst_20 = arith.constant dense<0.000000e+00> : vector<16x64xf32>
    %29 = tpu.matmul %15, %28, %cst_20 {dimension_numbers = #tpu.dot_dimension_numbers<[1], [0], [0], [1], [0, 0, 1, 1], [], []>} : vector<16x32xf32>, vector<32x64xf32>, vector<16x64xf32> -> vector<16x64xf32>
    %30 = arith.addf %29, %10 : vector<16x64xf32>
    %cst_21 = arith.constant dense<0xFF800000> : vector<16xf32>
    %31 = vector.multi_reduction <maximumf>, %30, %cst_21 [1] : vector<16x64xf32> to vector<16xf32>
    %32 = vector.shape_cast %31 : vector<16xf32> to vector<16x1xf32>
    %33 = vector.broadcast %32 : vector<16x1xf32> to vector<16x64xf32>
    %34 = arith.subf %30, %33 : vector<16x64xf32>
    %35 = math.exp %34 : vector<16x64xf32>
    %cst_22 = arith.constant dense<0.000000e+00> : vector<64x32xf32>
    %36 = tpu.matmul %9, %25, %cst_22 {dimension_numbers = #tpu.dot_dimension_numbers<[1], [0], [0], [1], [0, 0, 1, 1], [], []>} : vector<64x16xf32>, vector<16x32xf32>, vector<64x32xf32> -> vector<64x32xf32>
    %37 = arith.mulf %8, %36 : vector<64x32xf32>
    %cst_23 = arith.constant dense<0.000000e+00> : vector<16x32xf32>
    %38 = tpu.matmul %35, %37, %cst_23 {dimension_numbers = #tpu.dot_dimension_numbers<[1], [0], [0], [1], [0, 0, 1, 1], [], []>} : vector<16x64xf32>, vector<64x32xf32>, vector<16x32xf32> -> vector<16x32xf32>
    %cst_24 = arith.constant dense<0.000000e+00> : vector<16x32xf32>
    %39 = tpu.matmul %35, %8, %cst_24 {dimension_numbers = #tpu.dot_dimension_numbers<[1], [0], [0], [1], [0, 0, 1, 1], [], []>} : vector<16x64xf32>, vector<64x32xf32>, vector<16x32xf32> -> vector<16x32xf32>
    %cst_25 = arith.constant 9.99999968E-21 : f32
    %40 = vector.broadcast %cst_25 : f32 to vector<16x32xf32>
    %41 = arith.maximumf %39, %40 : vector<16x32xf32>
    %42 = tpu.reciprocal %41 {approx = true} : vector<16x32xf32> -> vector<16x32xf32>
    %43 = arith.mulf %38, %42 : vector<16x32xf32>
    %c392 = arith.constant 392 : index
    %c0_26 = arith.constant 0 : index
    %44 = vector.load %arg2[%c392, %c0_26] : memref<1008x128xf32, #tpu.memory_space<vmem>>, vector<32x32xf32>
    %cst_27 = arith.constant dense<0.000000e+00> : vector<16x32xf32>
    %45 = tpu.matmul %43, %44, %cst_27 {dimension_numbers = #tpu.dot_dimension_numbers<[1], [0], [0], [1], [0, 0, 1, 1], [], []>} : vector<16x32xf32>, vector<32x32xf32>, vector<16x32xf32> -> vector<16x32xf32>
    %c424 = arith.constant 424 : index
    %c0_28 = arith.constant 0 : index
    %46 = vector.load %arg2[%c424, %c0_28] : memref<1008x128xf32, #tpu.memory_space<vmem>>, vector<1x32xf32>
    %47 = vector.broadcast %46 : vector<1x32xf32> to vector<16x32xf32>
    %48 = arith.addf %45, %47 : vector<16x32xf32>
    %49 = arith.addf %5, %48 : vector<16x32xf32>
    %c432 = arith.constant 432 : index
    %c0_29 = arith.constant 0 : index
    %50 = vector.load %arg2[%c432, %c0_29] : memref<1008x128xf32, #tpu.memory_space<vmem>>, vector<1x32xf32>
    %c440 = arith.constant 440 : index
    %c0_30 = arith.constant 0 : index
    %51 = vector.load %arg2[%c440, %c0_30] : memref<1008x128xf32, #tpu.memory_space<vmem>>, vector<1x32xf32>
    %cst_31 = arith.constant dense<0.000000e+00> : vector<16xf32>
    %52 = vector.multi_reduction <add>, %49, %cst_31 [1] : vector<16x32xf32> to vector<16xf32>
    %53 = vector.shape_cast %52 : vector<16xf32> to vector<16x1xf32>
    %cst_32 = arith.constant 3.200000e+01 : f32
    %54 = vector.broadcast %cst_32 : f32 to vector<16x1xf32>
    %55 = arith.divf %53, %54 : vector<16x1xf32>
    %56 = vector.broadcast %55 : vector<16x1xf32> to vector<16x32xf32>
    %57 = arith.subf %49, %56 : vector<16x32xf32>
    %58 = arith.mulf %57, %57 : vector<16x32xf32>
    %cst_33 = arith.constant dense<0.000000e+00> : vector<16xf32>
    %59 = vector.multi_reduction <add>, %58, %cst_33 [1] : vector<16x32xf32> to vector<16xf32>
    %60 = vector.shape_cast %59 : vector<16xf32> to vector<16x1xf32>
    %cst_34 = arith.constant 3.200000e+01 : f32
    %61 = vector.broadcast %cst_34 : f32 to vector<16x1xf32>
    %62 = arith.divf %60, %61 : vector<16x1xf32>
    %63 = vector.broadcast %55 : vector<16x1xf32> to vector<16x32xf32>
    %64 = arith.subf %49, %63 : vector<16x32xf32>
    %cst_35 = arith.constant 9.99999974E-6 : f32
    %65 = vector.broadcast %cst_35 : f32 to vector<16x1xf32>
    %66 = arith.addf %62, %65 : vector<16x1xf32>
    %67 = math.rsqrt %66 : vector<16x1xf32>
    %68 = vector.broadcast %67 : vector<16x1xf32> to vector<16x32xf32>
    %69 = arith.mulf %64, %68 : vector<16x32xf32>
    %70 = vector.broadcast %50 : vector<1x32xf32> to vector<16x32xf32>
    %71 = arith.mulf %69, %70 : vector<16x32xf32>
    %72 = vector.broadcast %51 : vector<1x32xf32> to vector<16x32xf32>
    %73 = arith.addf %71, %72 : vector<16x32xf32>
    %c448 = arith.constant 448 : index
    %c0_36 = arith.constant 0 : index
    %74 = vector.load %arg2[%c448, %c0_36] : memref<1008x128xf32, #tpu.memory_space<vmem>>, vector<32x128xf32>
    %cst_37 = arith.constant dense<0.000000e+00> : vector<16x128xf32>
    %75 = tpu.matmul %73, %74, %cst_37 {dimension_numbers = #tpu.dot_dimension_numbers<[1], [0], [0], [1], [0, 0, 1, 1], [], []>} : vector<16x32xf32>, vector<32x128xf32>, vector<16x128xf32> -> vector<16x128xf32>
    %c480 = arith.constant 480 : index
    %c0_38 = arith.constant 0 : index
    %76 = vector.load %arg2[%c480, %c0_38] : memref<1008x128xf32, #tpu.memory_space<vmem>>, vector<1x128xf32>
    %77 = vector.broadcast %76 : vector<1x128xf32> to vector<16x128xf32>
    %78 = arith.addf %75, %77 : vector<16x128xf32>
    %cst_39 = arith.constant 0.000000e+00 : f32
    %79 = vector.broadcast %cst_39 : f32 to vector<16x128xf32>
    %80 = arith.maximumf %78, %79 : vector<16x128xf32>
    %c488 = arith.constant 488 : index
    %c0_40 = arith.constant 0 : index
    %81 = vector.load %arg2[%c488, %c0_40] : memref<1008x128xf32, #tpu.memory_space<vmem>>, vector<128x32xf32>
    %cst_41 = arith.constant dense<0.000000e+00> : vector<16x32xf32>
    %82 = tpu.matmul %80, %81, %cst_41 {dimension_numbers = #tpu.dot_dimension_numbers<[1], [0], [0], [1], [0, 0, 1, 1], [], []>} : vector<16x128xf32>, vector<128x32xf32>, vector<16x32xf32> -> vector<16x32xf32>
    %c616 = arith.constant 616 : index
    %c0_42 = arith.constant 0 : index
    %83 = vector.load %arg2[%c616, %c0_42] : memref<1008x128xf32, #tpu.memory_space<vmem>>, vector<1x32xf32>
    %84 = vector.broadcast %83 : vector<1x32xf32> to vector<16x32xf32>
    %85 = arith.addf %82, %84 : vector<16x32xf32>
    %86 = arith.addf %73, %85 : vector<16x32xf32>
    %c624 = arith.constant 624 : index
    %c0_43 = arith.constant 0 : index
    %87 = vector.load %arg2[%c624, %c0_43] : memref<1008x128xf32, #tpu.memory_space<vmem>>, vector<1x32xf32>
    %c632 = arith.constant 632 : index
    %c0_44 = arith.constant 0 : index
    %88 = vector.load %arg2[%c632, %c0_44] : memref<1008x128xf32, #tpu.memory_space<vmem>>, vector<1x32xf32>
    %cst_45 = arith.constant dense<0.000000e+00> : vector<16xf32>
    %89 = vector.multi_reduction <add>, %86, %cst_45 [1] : vector<16x32xf32> to vector<16xf32>
    %90 = vector.shape_cast %89 : vector<16xf32> to vector<16x1xf32>
    %cst_46 = arith.constant 3.200000e+01 : f32
    %91 = vector.broadcast %cst_46 : f32 to vector<16x1xf32>
    %92 = arith.divf %90, %91 : vector<16x1xf32>
    %93 = vector.broadcast %92 : vector<16x1xf32> to vector<16x32xf32>
    %94 = arith.subf %86, %93 : vector<16x32xf32>
    %95 = arith.mulf %94, %94 : vector<16x32xf32>
    %cst_47 = arith.constant dense<0.000000e+00> : vector<16xf32>
    %96 = vector.multi_reduction <add>, %95, %cst_47 [1] : vector<16x32xf32> to vector<16xf32>
    %97 = vector.shape_cast %96 : vector<16xf32> to vector<16x1xf32>
    %cst_48 = arith.constant 3.200000e+01 : f32
    %98 = vector.broadcast %cst_48 : f32 to vector<16x1xf32>
    %99 = arith.divf %97, %98 : vector<16x1xf32>
    %100 = vector.broadcast %92 : vector<16x1xf32> to vector<16x32xf32>
    %101 = arith.subf %86, %100 : vector<16x32xf32>
    %cst_49 = arith.constant 9.99999974E-6 : f32
    %102 = vector.broadcast %cst_49 : f32 to vector<16x1xf32>
    %103 = arith.addf %99, %102 : vector<16x1xf32>
    %104 = math.rsqrt %103 : vector<16x1xf32>
    %105 = vector.broadcast %104 : vector<16x1xf32> to vector<16x32xf32>
    %106 = arith.mulf %101, %105 : vector<16x32xf32>
    %107 = vector.broadcast %87 : vector<1x32xf32> to vector<16x32xf32>
    %108 = arith.mulf %106, %107 : vector<16x32xf32>
    %109 = vector.broadcast %88 : vector<1x32xf32> to vector<16x32xf32>
    %110 = arith.addf %108, %109 : vector<16x32xf32>
    %c640 = arith.constant 640 : index
    %c0_50 = arith.constant 0 : index
    %111 = vector.load %arg2[%c640, %c0_50] : memref<1008x128xf32, #tpu.memory_space<vmem>>, vector<32x32xf32>
    %cst_51 = arith.constant dense<0.000000e+00> : vector<16x32xf32>
    %112 = tpu.matmul %110, %111, %cst_51 {dimension_numbers = #tpu.dot_dimension_numbers<[1], [0], [0], [1], [0, 0, 1, 1], [], []>} : vector<16x32xf32>, vector<32x32xf32>, vector<16x32xf32> -> vector<16x32xf32>
    %c672 = arith.constant 672 : index
    %c0_52 = arith.constant 0 : index
    %113 = vector.load %arg2[%c672, %c0_52] : memref<1008x128xf32, #tpu.memory_space<vmem>>, vector<1x32xf32>
    %114 = vector.broadcast %113 : vector<1x32xf32> to vector<16x32xf32>
    %115 = arith.addf %112, %114 : vector<16x32xf32>
    %c680 = arith.constant 680 : index
    %c0_53 = arith.constant 0 : index
    %116 = vector.load %arg2[%c680, %c0_53] : memref<1008x128xf32, #tpu.memory_space<vmem>>, vector<32x32xf32>
    %cst_54 = arith.constant dense<0.000000e+00> : vector<16x32xf32>
    %117 = tpu.matmul %110, %116, %cst_54 {dimension_numbers = #tpu.dot_dimension_numbers<[1], [0], [0], [1], [0, 0, 1, 1], [], []>} : vector<16x32xf32>, vector<32x32xf32>, vector<16x32xf32> -> vector<16x32xf32>
    %c712 = arith.constant 712 : index
    %c0_55 = arith.constant 0 : index
    %118 = vector.load %arg2[%c712, %c0_55] : memref<1008x128xf32, #tpu.memory_space<vmem>>, vector<1x32xf32>
    %119 = vector.broadcast %118 : vector<1x32xf32> to vector<16x32xf32>
    %120 = arith.addf %117, %119 : vector<16x32xf32>
    %c720 = arith.constant 720 : index
    %c0_56 = arith.constant 0 : index
    %121 = vector.load %arg2[%c720, %c0_56] : memref<1008x128xf32, #tpu.memory_space<vmem>>, vector<32x32xf32>
    %cst_57 = arith.constant dense<0.000000e+00> : vector<16x32xf32>
    %122 = tpu.matmul %110, %121, %cst_57 {dimension_numbers = #tpu.dot_dimension_numbers<[1], [0], [0], [1], [0, 0, 1, 1], [], []>} : vector<16x32xf32>, vector<32x32xf32>, vector<16x32xf32> -> vector<16x32xf32>
    %c752 = arith.constant 752 : index
    %c0_58 = arith.constant 0 : index
    %123 = vector.load %arg2[%c752, %c0_58] : memref<1008x128xf32, #tpu.memory_space<vmem>>, vector<1x32xf32>
    %124 = vector.broadcast %123 : vector<1x32xf32> to vector<16x32xf32>
    %125 = arith.addf %122, %124 : vector<16x32xf32>
    %126 = tpu.transpose %120, [1, 0] : vector<16x32xf32> -> vector<32x16xf32>
    %cst_59 = arith.constant dense<0.000000e+00> : vector<32x64xf32>
    %127 = tpu.matmul %126, %7, %cst_59 {dimension_numbers = #tpu.dot_dimension_numbers<[1], [0], [0], [1], [0, 0, 1, 1], [], []>} : vector<32x16xf32>, vector<16x64xf32>, vector<32x64xf32> -> vector<32x64xf32>
    %128 = arith.mulf %6, %127 : vector<32x64xf32>
    %cst_60 = arith.constant dense<0.000000e+00> : vector<16x64xf32>
    %129 = tpu.matmul %115, %128, %cst_60 {dimension_numbers = #tpu.dot_dimension_numbers<[1], [0], [0], [1], [0, 0, 1, 1], [], []>} : vector<16x32xf32>, vector<32x64xf32>, vector<16x64xf32> -> vector<16x64xf32>
    %130 = arith.addf %129, %10 : vector<16x64xf32>
    %cst_61 = arith.constant dense<0xFF800000> : vector<16xf32>
    %131 = vector.multi_reduction <maximumf>, %130, %cst_61 [1] : vector<16x64xf32> to vector<16xf32>
    %132 = vector.shape_cast %131 : vector<16xf32> to vector<16x1xf32>
    %133 = vector.broadcast %132 : vector<16x1xf32> to vector<16x64xf32>
    %134 = arith.subf %130, %133 : vector<16x64xf32>
    %135 = math.exp %134 : vector<16x64xf32>
    %cst_62 = arith.constant dense<0.000000e+00> : vector<64x32xf32>
    %136 = tpu.matmul %9, %125, %cst_62 {dimension_numbers = #tpu.dot_dimension_numbers<[1], [0], [0], [1], [0, 0, 1, 1], [], []>} : vector<64x16xf32>, vector<16x32xf32>, vector<64x32xf32> -> vector<64x32xf32>
    %137 = arith.mulf %8, %136 : vector<64x32xf32>
    %cst_63 = arith.constant dense<0.000000e+00> : vector<16x32xf32>
    %138 = tpu.matmul %135, %137, %cst_63 {dimension_numbers = #tpu.dot_dimension_numbers<[1], [0], [0], [1], [0, 0, 1, 1], [], []>} : vector<16x64xf32>, vector<64x32xf32>, vector<16x32xf32> -> vector<16x32xf32>
    %cst_64 = arith.constant dense<0.000000e+00> : vector<16x32xf32>
    %139 = tpu.matmul %135, %8, %cst_64 {dimension_numbers = #tpu.dot_dimension_numbers<[1], [0], [0], [1], [0, 0, 1, 1], [], []>} : vector<16x64xf32>, vector<64x32xf32>, vector<16x32xf32> -> vector<16x32xf32>
    %cst_65 = arith.constant 9.99999968E-21 : f32
    %140 = vector.broadcast %cst_65 : f32 to vector<16x32xf32>
    %141 = arith.maximumf %139, %140 : vector<16x32xf32>
    %142 = tpu.reciprocal %141 {approx = true} : vector<16x32xf32> -> vector<16x32xf32>
    %143 = arith.mulf %138, %142 : vector<16x32xf32>
    %c760 = arith.constant 760 : index
    %c0_66 = arith.constant 0 : index
    %144 = vector.load %arg2[%c760, %c0_66] : memref<1008x128xf32, #tpu.memory_space<vmem>>, vector<32x32xf32>
    %cst_67 = arith.constant dense<0.000000e+00> : vector<16x32xf32>
    %145 = tpu.matmul %143, %144, %cst_67 {dimension_numbers = #tpu.dot_dimension_numbers<[1], [0], [0], [1], [0, 0, 1, 1], [], []>} : vector<16x32xf32>, vector<32x32xf32>, vector<16x32xf32> -> vector<16x32xf32>
    %c792 = arith.constant 792 : index
    %c0_68 = arith.constant 0 : index
    %146 = vector.load %arg2[%c792, %c0_68] : memref<1008x128xf32, #tpu.memory_space<vmem>>, vector<1x32xf32>
    %147 = vector.broadcast %146 : vector<1x32xf32> to vector<16x32xf32>
    %148 = arith.addf %145, %147 : vector<16x32xf32>
    %149 = arith.addf %110, %148 : vector<16x32xf32>
    %c800 = arith.constant 800 : index
    %c0_69 = arith.constant 0 : index
    %150 = vector.load %arg2[%c800, %c0_69] : memref<1008x128xf32, #tpu.memory_space<vmem>>, vector<1x32xf32>
    %c808 = arith.constant 808 : index
    %c0_70 = arith.constant 0 : index
    %151 = vector.load %arg2[%c808, %c0_70] : memref<1008x128xf32, #tpu.memory_space<vmem>>, vector<1x32xf32>
    %cst_71 = arith.constant dense<0.000000e+00> : vector<16xf32>
    %152 = vector.multi_reduction <add>, %149, %cst_71 [1] : vector<16x32xf32> to vector<16xf32>
    %153 = vector.shape_cast %152 : vector<16xf32> to vector<16x1xf32>
    %cst_72 = arith.constant 3.200000e+01 : f32
    %154 = vector.broadcast %cst_72 : f32 to vector<16x1xf32>
    %155 = arith.divf %153, %154 : vector<16x1xf32>
    %156 = vector.broadcast %155 : vector<16x1xf32> to vector<16x32xf32>
    %157 = arith.subf %149, %156 : vector<16x32xf32>
    %158 = arith.mulf %157, %157 : vector<16x32xf32>
    %cst_73 = arith.constant dense<0.000000e+00> : vector<16xf32>
    %159 = vector.multi_reduction <add>, %158, %cst_73 [1] : vector<16x32xf32> to vector<16xf32>
    %160 = vector.shape_cast %159 : vector<16xf32> to vector<16x1xf32>
    %cst_74 = arith.constant 3.200000e+01 : f32
    %161 = vector.broadcast %cst_74 : f32 to vector<16x1xf32>
    %162 = arith.divf %160, %161 : vector<16x1xf32>
    %163 = vector.broadcast %155 : vector<16x1xf32> to vector<16x32xf32>
    %164 = arith.subf %149, %163 : vector<16x32xf32>
    %cst_75 = arith.constant 9.99999974E-6 : f32
    %165 = vector.broadcast %cst_75 : f32 to vector<16x1xf32>
    %166 = arith.addf %162, %165 : vector<16x1xf32>
    %167 = math.rsqrt %166 : vector<16x1xf32>
    %168 = vector.broadcast %167 : vector<16x1xf32> to vector<16x32xf32>
    %169 = arith.mulf %164, %168 : vector<16x32xf32>
    %170 = vector.broadcast %150 : vector<1x32xf32> to vector<16x32xf32>
    %171 = arith.mulf %169, %170 : vector<16x32xf32>
    %172 = vector.broadcast %151 : vector<1x32xf32> to vector<16x32xf32>
    %173 = arith.addf %171, %172 : vector<16x32xf32>
    %c816 = arith.constant 816 : index
    %c0_76 = arith.constant 0 : index
    %174 = vector.load %arg2[%c816, %c0_76] : memref<1008x128xf32, #tpu.memory_space<vmem>>, vector<32x128xf32>
    %cst_77 = arith.constant dense<0.000000e+00> : vector<16x128xf32>
    %175 = tpu.matmul %173, %174, %cst_77 {dimension_numbers = #tpu.dot_dimension_numbers<[1], [0], [0], [1], [0, 0, 1, 1], [], []>} : vector<16x32xf32>, vector<32x128xf32>, vector<16x128xf32> -> vector<16x128xf32>
    %c848 = arith.constant 848 : index
    %c0_78 = arith.constant 0 : index
    %176 = vector.load %arg2[%c848, %c0_78] : memref<1008x128xf32, #tpu.memory_space<vmem>>, vector<1x128xf32>
    %177 = vector.broadcast %176 : vector<1x128xf32> to vector<16x128xf32>
    %178 = arith.addf %175, %177 : vector<16x128xf32>
    %cst_79 = arith.constant 0.000000e+00 : f32
    %179 = vector.broadcast %cst_79 : f32 to vector<16x128xf32>
    %180 = arith.maximumf %178, %179 : vector<16x128xf32>
    %c856 = arith.constant 856 : index
    %c0_80 = arith.constant 0 : index
    %181 = vector.load %arg2[%c856, %c0_80] : memref<1008x128xf32, #tpu.memory_space<vmem>>, vector<128x32xf32>
    %cst_81 = arith.constant dense<0.000000e+00> : vector<16x32xf32>
    %182 = tpu.matmul %180, %181, %cst_81 {dimension_numbers = #tpu.dot_dimension_numbers<[1], [0], [0], [1], [0, 0, 1, 1], [], []>} : vector<16x128xf32>, vector<128x32xf32>, vector<16x32xf32> -> vector<16x32xf32>
    %c984 = arith.constant 984 : index
    %c0_82 = arith.constant 0 : index
    %183 = vector.load %arg2[%c984, %c0_82] : memref<1008x128xf32, #tpu.memory_space<vmem>>, vector<1x32xf32>
    %184 = vector.broadcast %183 : vector<1x32xf32> to vector<16x32xf32>
    %185 = arith.addf %182, %184 : vector<16x32xf32>
    %186 = arith.addf %173, %185 : vector<16x32xf32>
    %c992 = arith.constant 992 : index
    %c0_83 = arith.constant 0 : index
    %187 = vector.load %arg2[%c992, %c0_83] : memref<1008x128xf32, #tpu.memory_space<vmem>>, vector<1x32xf32>
    %c1000 = arith.constant 1000 : index
    %c0_84 = arith.constant 0 : index
    %188 = vector.load %arg2[%c1000, %c0_84] : memref<1008x128xf32, #tpu.memory_space<vmem>>, vector<1x32xf32>
    %cst_85 = arith.constant dense<0.000000e+00> : vector<16xf32>
    %189 = vector.multi_reduction <add>, %186, %cst_85 [1] : vector<16x32xf32> to vector<16xf32>
    %190 = vector.shape_cast %189 : vector<16xf32> to vector<16x1xf32>
    %cst_86 = arith.constant 3.200000e+01 : f32
    %191 = vector.broadcast %cst_86 : f32 to vector<16x1xf32>
    %192 = arith.divf %190, %191 : vector<16x1xf32>
    %193 = vector.broadcast %192 : vector<16x1xf32> to vector<16x32xf32>
    %194 = arith.subf %186, %193 : vector<16x32xf32>
    %195 = arith.mulf %194, %194 : vector<16x32xf32>
    %cst_87 = arith.constant dense<0.000000e+00> : vector<16xf32>
    %196 = vector.multi_reduction <add>, %195, %cst_87 [1] : vector<16x32xf32> to vector<16xf32>
    %197 = vector.shape_cast %196 : vector<16xf32> to vector<16x1xf32>
    %cst_88 = arith.constant 3.200000e+01 : f32
    %198 = vector.broadcast %cst_88 : f32 to vector<16x1xf32>
    %199 = arith.divf %197, %198 : vector<16x1xf32>
    %200 = vector.broadcast %192 : vector<16x1xf32> to vector<16x32xf32>
    %201 = arith.subf %186, %200 : vector<16x32xf32>
    %cst_89 = arith.constant 9.99999974E-6 : f32
    %202 = vector.broadcast %cst_89 : f32 to vector<16x1xf32>
    %203 = arith.addf %199, %202 : vector<16x1xf32>
    %204 = math.rsqrt %203 : vector<16x1xf32>
    %205 = vector.broadcast %204 : vector<16x1xf32> to vector<16x32xf32>
    %206 = arith.mulf %201, %205 : vector<16x32xf32>
    %207 = vector.broadcast %187 : vector<1x32xf32> to vector<16x32xf32>
    %208 = arith.mulf %206, %207 : vector<16x32xf32>
    %209 = vector.broadcast %188 : vector<1x32xf32> to vector<16x32xf32>
    %210 = arith.addf %208, %209 : vector<16x32xf32>
    %c224 = arith.constant 224 : index
    %c0_90 = arith.constant 0 : index
    %211 = vector.load %arg2[%c224, %c0_90] : memref<1008x128xf32, #tpu.memory_space<vmem>>, vector<2x16xf32>
    %cst_91 = arith.constant dense<0.000000e+00> : vector<2x32xf32>
    %212 = tpu.matmul %211, %210, %cst_91 {dimension_numbers = #tpu.dot_dimension_numbers<[1], [0], [0], [1], [0, 0, 1, 1], [], []>} : vector<2x16xf32>, vector<16x32xf32>, vector<2x32xf32> -> vector<2x32xf32>
    %c232 = arith.constant 232 : index
    %c0_92 = arith.constant 0 : index
    %213 = vector.load %arg2[%c232, %c0_92] : memref<1008x128xf32, #tpu.memory_space<vmem>>, vector<32x5xf32>
    %cst_93 = arith.constant dense<0.000000e+00> : vector<2x5xf32>
    %214 = tpu.matmul %212, %213, %cst_93 {dimension_numbers = #tpu.dot_dimension_numbers<[1], [0], [0], [1], [0, 0, 1, 1], [], []>} : vector<2x32xf32>, vector<32x5xf32>, vector<2x5xf32> -> vector<2x5xf32>
    %c264 = arith.constant 264 : index
    %c0_94 = arith.constant 0 : index
    %215 = vector.load %arg2[%c264, %c0_94] : memref<1008x128xf32, #tpu.memory_space<vmem>>, vector<1x5xf32>
    %216 = vector.broadcast %215 : vector<1x5xf32> to vector<2x5xf32>
    %217 = arith.addf %214, %216 : vector<2x5xf32>
    %c0_95 = arith.constant 0 : index
    %c0_96 = arith.constant 0 : index
    %c0_97 = arith.constant 0 : index
    %218 = vector.load %arg3[%c0_95, %c0_96, %c0_97] : memref<1x2x5xf32, #tpu.memory_space<vmem>>, vector<1x2x5xf32>
    %219 = vector.shape_cast %218 : vector<1x2x5xf32> to vector<2x5xf32>
    %220 = vector.shape_cast %217 : vector<2x5xf32> to vector<1x2x5xf32>
    tpu.vector_store %arg3[%c0_95, %c0_96, %c0_97], %220 {strides = array<i32>} : memref<1x2x5xf32, #tpu.memory_space<vmem>>, vector<1x2x5xf32>,
    %c0_98 = arith.constant 0 : index
    %c0_99 = arith.constant 0 : index
    %c0_100 = arith.constant 0 : index
    %221 = vector.load %arg4[%c0_98, %c0_99, %c0_100] : memref<1x16x32xf32, #tpu.memory_space<vmem>>, vector<1x16x32xf32>
    %222 = vector.shape_cast %221 : vector<1x16x32xf32> to vector<16x32xf32>
    %223 = vector.shape_cast %210 : vector<16x32xf32> to vector<1x16x32xf32>
    tpu.vector_store %arg4[%c0_98, %c0_99, %c0_100], %223 {strides = array<i32>} : memref<1x16x32xf32, #tpu.memory_space<vmem>>, vector<1x16x32xf32>,
    return
  }
  func.func @transform_0(%arg0: i32) -> (i32, i32, i32) {
    %c0_i32 = arith.constant 0 : i32
    %c0_i32_0 = arith.constant 0 : i32
    %c0_i32_1 = arith.constant 0 : i32
    return %arg0, %c0_i32, %c0_i32_0 : i32, i32, i32
  }
  func.func @transform_1(%arg0: i32) -> (i32, i32) {
    %c0_i32 = arith.constant 0 : i32
    %c0_i32_0 = arith.constant 0 : i32
    %c0_i32_1 = arith.constant 0 : i32
    return %c0_i32, %c0_i32_0 : i32, i32
  }
  func.func @transform_2(%arg0: i32) -> (i32, i32, i32) {
    %c0_i32 = arith.constant 0 : i32
    %c0_i32_0 = arith.constant 0 : i32
    %c0_i32_1 = arith.constant 0 : i32
    return %arg0, %c0_i32, %c0_i32_0 : i32, i32, i32
  }
  func.func @transform_3(%arg0: i32) -> (i32, i32, i32) {
    %c0_i32 = arith.constant 0 : i32
    %c0_i32_0 = arith.constant 0 : i32
    %c0_i32_1 = arith.constant 0 : i32
    return %arg0, %c0_i32, %c0_i32_0 : i32, i32, i32
  }
}

</mosaic_0001>

<llo_original>
// kernel: tpu_custom_call.1
$region0: #{tpu_custom_call.1}
  #allocation0 [shape = 'u32[]', space=smem, size = 0x4, offset = 0x4, fixed_abs, tag = 'smem constant byte address 0x4 - core index']
  #allocation1 [shape = 'u32[144,128]{1,0:T(1,128)}', space=vmem, size = 0x12000, scoped, tag = 'internal scratch']
  %s0 = inlined_call_operand.hbm [shape: f32[1,16,16], index: 0, kind: input, shape index: {}]
  %s1 = inlined_call_operand.hbm [shape: f32[1008,128], index: 1, kind: input, shape index: {}]
  %s2 = inlined_call_operand.hbm [shape: f32[1,2,5], index: 2, kind: output, shape index: {0}]
  %s3 = inlined_call_operand.hbm [shape: f32[1,16,32], index: 3, kind: output, shape index: {1}]
  %4 = xla_tuple %s2, %s3
  %s5 = sld [smem:[#allocation0]]
  $region34: #{tpu_custom_call.1} parent=0
    _
  %s7 = ssub.s32 1, %s5
  %s8 = scalar_select 0, %s7, %s5
  $region1: #{tpu_custom_call.1} parent=0
    #allocation2 [shape = 'u8[8192]{0}', space=vmem, size = 0x2000, scoped, tag = 'input window, operand 0, single buffered']
    #allocation3 [shape = 's32[1]{0}', space=sflag, size = 0x4, scoped, tag = 'scoped memory for tpu_custom_call.1']
    #allocation4 [shape = 's32[1]{0}', space=sflag, size = 0x4, scoped, tag = 'scoped memory for tpu_custom_call.1']
    #allocation5 [shape = 'u8[516096]{0}', space=vmem, size = 0x7e000, scoped, tag = 'input window, operand 1, single buffered']
    #allocation6 [shape = 's32[1]{0}', space=sflag, size = 0x4, scoped, tag = 'scoped memory for tpu_custom_call.1']
    #allocation7 [shape = 'u8[1024]{0}', space=vmem, size = 0x400, scoped, tag = 'output window, operand 0, single buffered']
    #allocation8 [shape = 'u8[8192]{0}', space=vmem, size = 0x2000, scoped, tag = 'output window, operand 1, single buffered']
    #allocation9 [shape = 's32[1]{0}', space=sflag, size = 0x4, scoped, tag = 'scoped memory for tpu_custom_call.1']
    %9 = vsyncpa [#allocation3], 0
    %10 = vsyncpa [#allocation6], 0
    %11 = vsyncpa [#allocation4], 0
    %12 = vsyncpa [#allocation9], 0
    // Predicated region
    $region2: #{tpu_custom_call.1} parent=1 // pred_check
      _
    $region3: #{tpu_custom_call.1} parent=1 // pred_check_branch
      %14 = sbr.rel (0) target = $region5
    $region4: #{tpu_custom_call.1} parent=1 // pred_region
      %s16 = ssub.s32 256, 256
      %17 = vsyncadd [#allocation3], %s16
      %s18 = sshll.u32 [#allocation2], 4
      %s19 = int_to_ptr.vmem [resolvable:$true] %s18
      %24 = dma.hbm_to_vmem [thread:$0]  %s0, 256, %s19, [#allocation3], 128, 128, 8
    $region5: #{tpu_custom_call.1} parent=1 // pred_fallthru
      _
    // Predicated region
    $region6: #{tpu_custom_call.1} parent=1 // pred_check
      _
    $region7: #{tpu_custom_call.1} parent=1 // pred_check_branch
      %26 = sbr.rel (0) target = $region9
    $region8: #{tpu_custom_call.1} parent=1 // pred_region
      %s28 = ssub.s32 16128, 16128
      %29 = vsyncadd [#allocation6], %s28
      %s30 = sshll.u32 [#allocation5], 4
      %s31 = int_to_ptr.vmem [resolvable:$true] %s30
      %36 = dma.hbm_to_vmem [thread:$0]  %s1, 16128, %s31, [#allocation6], 128, 128, 8
    $region9: #{tpu_custom_call.1} parent=1 // pred_fallthru
      _
    // Predicated region
    $region10: #{tpu_custom_call.1} parent=1 // pred_check
      _
    $region11: #{tpu_custom_call.1} parent=1 // pred_check_branch
      %38 = sbr.rel (0) target = $region13
    $region12: #{tpu_custom_call.1} parent=1 // pred_region
      %39 = dma.done [#allocation3], 256
    $region13: #{tpu_custom_call.1} parent=1 // pred_fallthru
      _
    // Predicated region
    $region14: #{tpu_custom_call.1} parent=1 // pred_check
      _
    $region15: #{tpu_custom_call.1} parent=1 // pred_check_branch
      %41 = sbr.rel (0) target = $region17
    $region16: #{tpu_custom_call.1} parent=1 // pred_region
      %42 = dma.done [#allocation6], 16128
    $region17: #{tpu_custom_call.1} parent=1 // pred_fallthru
      _
    %v43 = vld [vmem:[#allocation2] sm:$0xff]
    %v44 = vld [vmem:[#allocation2 + $0x8] sm:$0xff]
    %v45 = vld [vmem:[#allocation5] sm:$0xff]
    %v46 = vld [vmem:[#allocation5 + $0x8] sm:$0xff]
    %v47 = vld [vmem:[#allocation5 + $0x10] sm:$0xff]
    %v48 = vld [vmem:[#allocation5 + $0x18] sm:$0xff]
    %vm49 = vcmask 130048
    %v51 = vsel %vm49, %v43, 0
    %v54 = vsel %vm49, %v44, 0
    %56 = vmatprep.subr.mxu0 0.0
    %57 = vmatpush1.msra.mxu0 0.0
    %58 = vmatprep.subr.mxu0 0.0
    %59 = vmatpush1.msra.mxu0 0.0
    %60 = vmatprep.subr.mxu0 0.0
    %61 = vmatpush1.msra.mxu0 0.0
    %62 = vmatprep.subr.mxu0 0.0
    %63 = vmatpush1.msra.mxu0 0.0
    %64 = vmatprep.subr.mxu0 0.0
    %65 = vmatpush1.msra.mxu0 0.0
    %66 = vmatprep.subr.mxu0 0.0
    %67 = vmatpush1.msra.mxu0 0.0
    %68 = vmatprep.subr.mxu0 0.0
    %69 = vmatpush1.msra.mxu0 0.0
    %70 = vmatprep.subr.mxu0 0.0
    %71 = vmatpush1.msra.mxu0 0.0
    %72 = vmatprep.subr.mxu0 0.0
    %73 = vmatpush1.msra.mxu0 0.0
    %74 = vmatprep.subr.mxu0 0.0
    %75 = vmatpush1.msra.mxu0 0.0
    %76 = vmatprep.subr.mxu0 0.0
    %77 = vmatpush1.msra.mxu0 0.0
    %78 = vmatprep.subr.mxu0 0.0
    %79 = vmatpush1.msra.mxu0 0.0
    %80 = vmatprep.subr.mxu0 0.0
    %81 = vmatpush1.msra.mxu0 0.0
    %82 = vmatprep.subr.mxu0 0.0
    %83 = vmatpush1.msra.mxu0 0.0
    %84 = vmatprep.subr.mxu0 0.0
    %85 = vmatpush1.msra.mxu0 %v46
    %86 = vmatprep.subr.mxu0 0.0
    %87 = vmatpush1.msra.mxu0 %v45
    %88 = vmatprep.subr.mxu0 0.0
    %89 = vmatpush2.msra.mxu0 0.0
    %90 = vmatprep.subr.mxu0 0.0
    %91 = vmatpush2.msra.mxu0 0.0
    %92 = vmatprep.subr.mxu0 0.0
    %93 = vmatpush2.msra.mxu0 0.0
    %94 = vmatprep.subr.mxu0 0.0
    %95 = vmatpush2.msra.mxu0 0.0
    %96 = vmatprep.subr.mxu0 0.0
    %97 = vmatpush2.msra.mxu0 0.0
    %98 = vmatprep.subr.mxu0 0.0
    %99 = vmatpush2.msra.mxu0 0.0
    %100 = vmatprep.subr.mxu0 0.0
    %101 = vmatpush2.msra.mxu0 0.0
    %102 = vmatprep.subr.mxu0 0.0
    %103 = vmatpush2.msra.mxu0 0.0
    %104 = vmatprep.subr.mxu0 0.0
    %105 = vmatpush2.msra.mxu0 0.0
    %106 = vmatprep.subr.mxu0 0.0
    %107 = vmatpush2.msra.mxu0 0.0
    %108 = vmatprep.subr.mxu0 0.0
    %109 = vmatpush2.msra.mxu0 0.0
    %110 = vmatprep.subr.mxu0 0.0
    %111 = vmatpush2.msra.mxu0 0.0
    %112 = vmatprep.subr.mxu0 0.0
    %113 = vmatpush2.msra.mxu0 0.0
    %114 = vmatprep.subr.mxu0 0.0
    %115 = vmatpush2.msra.mxu0 0.0
    %116 = vmatprep.subr.mxu0 0.0
    %117 = vmatpush2.msra.mxu0 0.0
    %118 = vmatprep.subr.mxu0 0.0
    %119 = vmatpush2.msra.mxu0 0.0
    %120 = vmatprep.mubr.f32.mxu0 0.0
    %121 = vmatmul.mubr.f32.gmra.mxu0 %v51
    %v122 = vpop.f32.mrf.mxu0
    %v123 = vadd.f32 %v47, %v122
    %v124 = vpop.f32.mrf.mxu0
    %125 = vmatprep.mubr.f32.mxu0 0.0
    %126 = vmatmul.mubr.f32.gmra.mxu0 %v54
    %v127 = vpop.f32.mrf.mxu0
    %v128 = vadd.f32 %v48, %v127
    %v129 = vpop.f32.mrf.mxu0
    %130 = vdwg.mxu0
    %v131 = vld [vmem:[#allocation5 + $0x20] sm:$0xff]
    %v132 = vld [vmem:[#allocation5 + $0x28] sm:$0xff]
    %v133 = vld [vmem:[#allocation5 + $0x30] sm:$0xff]
    %v134 = vld [vmem:[#allocation5 + $0x38] sm:$0xff]
    %v135 = vld [vmem:[#allocation5 + $0x40] sm:$0xff]
    %v136 = vld [vmem:[#allocation5 + $0x48] sm:$0xff]
    %v137 = vld [vmem:[#allocation5 + $0x50] sm:$0xff]
    %v138 = vld [vmem:[#allocation5 + $0x58] sm:$0xff]
    %v139 = vld [vmem:[#allocation5 + $0x60] sm:$0xff]
    %v140 = vld [vmem:[#allocation5 + $0x68] sm:$0xff]
    %v141 = vld [vmem:[#allocation5 + $0x70] sm:$0xff]
    %v142 = vld [vmem:[#allocation5 + $0x78] sm:$0xff]
    %v143 = vld [vmem:[#allocation5 + $0x80] sm:$0xff]
    %v144 = vld [vmem:[#allocation5 + $0x88] sm:$0xff]
    %v145 = vld [vmem:[#allocation5 + $0x90] sm:$0xff]
    %v146 = vld [vmem:[#allocation5 + $0x98] sm:$0xff]
    %v147 = vld [vmem:[#allocation5 + $0xa0] sm:$0xff]
    %v148 = vld [vmem:[#allocation5 + $0xa8] sm:$0xff]
    %v149 = vld [vmem:[#allocation5 + $0xb0] sm:$0xff]
    %v150 = vld [vmem:[#allocation5 + $0xb8] sm:$0xff]
    %v151 = vld [vmem:[#allocation5 + $0xc0] sm:$0xff]
    %v152 = vld [vmem:[#allocation5 + $0xc8] sm:$0xff]
    %v153 = vld [vmem:[#allocation5 + $0xd0] sm:$0xff]
    %v154 = vld [vmem:[#allocation5 + $0xd8] sm:$0xff]
    %v155 = vld [vmem:[#allocation5 + $0x110] sm:$0xff]
    %v156 = vld [vmem:[#allocation5 + $0x118] sm:$0xff]
    %v157 = vld [vmem:[#allocation5 + $0x120] sm:$0xff]
    %v158 = vld [vmem:[#allocation5 + $0x128] sm:$0xff]
    %v159 = vld [vmem:[#allocation5 + $0x130] sm:$0x1]
    %v160 = vlaneseq
    %v161 = vshrl.u32 %v160, 7
    %v162 = vsub.s32 0, %v161
    %v163 = vrot.slane %v159, %v162
    %vm164 = vcmask 261120
    %v166 = vsel %vm164, %v123, 0
    %v169 = vsel %vm164, %v128, 0
    %171 = vmatprep.subr.mxu0 0.0
    %172 = vmatpush1.msra.mxu0 0.0
    %173 = vmatprep.subr.mxu0 0.0
    %174 = vmatpush1.msra.mxu0 0.0
    %175 = vmatprep.subr.mxu0 0.0
    %176 = vmatpush1.msra.mxu0 0.0
    %177 = vmatprep.subr.mxu0 0.0
    %178 = vmatpush1.msra.mxu0 0.0
    %179 = vmatprep.subr.mxu0 0.0
    %180 = vmatpush1.msra.mxu0 0.0
    %181 = vmatprep.subr.mxu0 0.0
    %182 = vmatpush1.msra.mxu0 0.0
    %183 = vmatprep.subr.mxu0 0.0
    %184 = vmatpush1.msra.mxu0 0.0
    %185 = vmatprep.subr.mxu0 0.0
    %186 = vmatpush1.msra.mxu0 0.0
    %187 = vmatprep.subr.mxu0 0.0
    %188 = vmatpush1.msra.mxu0 0.0
    %189 = vmatprep.subr.mxu0 0.0
    %190 = vmatpush1.msra.mxu0 0.0
    %191 = vmatprep.subr.mxu0 0.0
    %192 = vmatpush1.msra.mxu0 0.0
    %193 = vmatprep.subr.mxu0 0.0
    %194 = vmatpush1.msra.mxu0 0.0
    %195 = vmatprep.subr.mxu0 0.0
    %196 = vmatpush1.msra.mxu0 %v158
    %197 = vmatprep.subr.mxu0 0.0
    %198 = vmatpush1.msra.mxu0 %v157
    %199 = vmatprep.subr.mxu0 0.0
    %200 = vmatpush1.msra.mxu0 %v156
    %201 = vmatprep.subr.mxu0 0.0
    %202 = vmatpush1.msra.mxu0 %v155
    %203 = vmatprep.subr.mxu0 0.0
    %204 = vmatpush2.msra.mxu0 0.0
    %205 = vmatprep.subr.mxu0 0.0
    %206 = vmatpush2.msra.mxu0 0.0
    %207 = vmatprep.subr.mxu0 0.0
    %208 = vmatpush2.msra.mxu0 0.0
    %209 = vmatprep.subr.mxu0 0.0
    %210 = vmatpush2.msra.mxu0 0.0
    %211 = vmatprep.subr.mxu0 0.0
    %212 = vmatpush2.msra.mxu0 0.0
    %213 = vmatprep.subr.mxu0 0.0
    %214 = vmatpush2.msra.mxu0 0.0
    %215 = vmatprep.subr.mxu0 0.0
    %216 = vmatpush2.msra.mxu0 0.0
    %217 = vmatprep.subr.mxu0 0.0
    %218 = vmatpush2.msra.mxu0 0.0
    %219 = vmatprep.subr.mxu0 0.0
    %220 = vmatpush2.msra.mxu0 0.0
    %221 = vmatprep.subr.mxu0 0.0
    %222 = vmatpush2.msra.mxu0 0.0
    %223 = vmatprep.subr.mxu0 0.0
    %224 = vmatpush2.msra.mxu0 0.0
    %225 = vmatprep.subr.mxu0 0.0
    %226 = vmatpush2.msra.mxu0 0.0
    %227 = vmatprep.subr.mxu0 0.0
    %228 = vmatpush2.msra.mxu0 0.0
    %229 = vmatprep.subr.mxu0 0.0
    %230 = vmatpush2.msra.mxu0 0.0
    %231 = vmatprep.subr.mxu0 0.0
    %232 = vmatpush2.msra.mxu0 0.0
    %233 = vmatprep.subr.mxu0 0.0
    %234 = vmatpush2.msra.mxu0 0.0
    %235 = vmatprep.mubr.f32.mxu0 0.0
    %236 = vmatmul.mubr.f32.gmra.mxu0 %v166
    %v237 = vpop.f32.mrf.mxu0
    %v238 = vadd.f32 %v163, %v237
    %v239 = vpop.f32.mrf.mxu0
    %240 = vmatprep.mubr.f32.mxu0 0.0
    %241 = vmatmul.mubr.f32.gmra.mxu0 %v169
    %v242 = vpop.f32.mrf.mxu0
    %v243 = vadd.f32 %v163, %v242
    %v244 = vpop.f32.mrf.mxu0
    %245 = vdwg.mxu0
    %v246 = vld [vmem:[#allocation5 + $0x138] sm:$0xff]
    %v247 = vld [vmem:[#allocation5 + $0x140] sm:$0xff]
    %v248 = vld [vmem:[#allocation5 + $0x148] sm:$0xff]
    %v249 = vld [vmem:[#allocation5 + $0x150] sm:$0xff]
    %v250 = vld [vmem:[#allocation5 + $0x158] sm:$0x1]
    %v251 = vlaneseq
    %v252 = vshrl.u32 %v251, 7
    %v253 = vsub.s32 0, %v252
    %v254 = vrot.slane %v250, %v253
    %255 = vmatprep.subr.mxu0 0.0
    %256 = vmatpush1.msra.mxu0 0.0
    %257 = vmatprep.subr.mxu0 0.0
    %258 = vmatpush1.msra.mxu0 0.0
    %259 = vmatprep.subr.mxu0 0.0
    %260 = vmatpush1.msra.mxu0 0.0
    %261 = vmatprep.subr.mxu0 0.0
    %262 = vmatpush1.msra.mxu0 0.0
    %263 = vmatprep.subr.mxu0 0.0
    %264 = vmatpush1.msra.mxu0 0.0
    %265 = vmatprep.subr.mxu0 0.0
    %266 = vmatpush1.msra.mxu0 0.0
    %267 = vmatprep.subr.mxu0 0.0
    %268 = vmatpush1.msra.mxu0 0.0
    %269 = vmatprep.subr.mxu0 0.0
    %270 = vmatpush1.msra.mxu0 0.0
    %271 = vmatprep.subr.mxu0 0.0
    %272 = vmatpush1.msra.mxu0 0.0
    %273 = vmatprep.subr.mxu0 0.0
    %274 = vmatpush1.msra.mxu0 0.0
    %275 = vmatprep.subr.mxu0 0.0
    %276 = vmatpush1.msra.mxu0 0.0
    %277 = vmatprep.subr.mxu0 0.0
    %278 = vmatpush1.msra.mxu0 0.0
    %279 = vmatprep.subr.mxu0 0.0
    %280 = vmatpush1.msra.mxu0 %v249
    %281 = vmatprep.subr.mxu0 0.0
    %282 = vmatpush1.msra.mxu0 %v248
    %283 = vmatprep.subr.mxu0 0.0
    %284 = vmatpush1.msra.mxu0 %v247
    %285 = vmatprep.subr.mxu0 0.0
    %286 = vmatpush1.msra.mxu0 %v246
    %287 = vmatprep.subr.mxu0 0.0
    %288 = vmatpush2.msra.mxu0 0.0
    %289 = vmatprep.subr.mxu0 0.0
    %290 = vmatpush2.msra.mxu0 0.0
    %291 = vmatprep.subr.mxu0 0.0
    %292 = vmatpush2.msra.mxu0 0.0
    %293 = vmatprep.subr.mxu0 0.0
    %294 = vmatpush2.msra.mxu0 0.0
    %295 = vmatprep.subr.mxu0 0.0
    %296 = vmatpush2.msra.mxu0 0.0
    %297 = vmatprep.subr.mxu0 0.0
    %298 = vmatpush2.msra.mxu0 0.0
    %299 = vmatprep.subr.mxu0 0.0
    %300 = vmatpush2.msra.mxu0 0.0
    %301 = vmatprep.subr.mxu0 0.0
    %302 = vmatpush2.msra.mxu0 0.0
    %303 = vmatprep.subr.mxu0 0.0
    %304 = vmatpush2.msra.mxu0 0.0
    %305 = vmatprep.subr.mxu0 0.0
    %306 = vmatpush2.msra.mxu0 0.0
    %307 = vmatprep.subr.mxu0 0.0
    %308 = vmatpush2.msra.mxu0 0.0
    %309 = vmatprep.subr.mxu0 0.0
    %310 = vmatpush2.msra.mxu0 0.0
    %311 = vmatprep.subr.mxu0 0.0
    %312 = vmatpush2.msra.mxu0 0.0
    %313 = vmatprep.subr.mxu0 0.0
    %314 = vmatpush2.msra.mxu0 0.0
    %315 = vmatprep.subr.mxu0 0.0
    %316 = vmatpush2.msra.mxu0 0.0
    %317 = vmatprep.subr.mxu0 0.0
    %318 = vmatpush2.msra.mxu0 0.0
    %319 = vmatprep.mubr.f32.mxu0 0.0
    %320 = vmatmul.mubr.f32.gmra.mxu0 %v166
    %v321 = vpop.f32.mrf.mxu0
    %v322 = vadd.f32 %v254, %v321
    %v323 = vpop.f32.mrf.mxu0
    %324 = vmatprep.mubr.f32.mxu0 0.0
    %325 = vmatmul.mubr.f32.gmra.mxu0 %v169
    %v326 = vpop.f32.mrf.mxu0
    %v327 = vadd.f32 %v254, %v326
    %v328 = vpop.f32.mrf.mxu0
    %329 = vdwg.mxu0
    %v330 = vld [vmem:[#allocation5 + $0x160] sm:$0xff]
    %v331 = vld [vmem:[#allocation5 + $0x168] sm:$0xff]
    %v332 = vld [vmem:[#allocation5 + $0x170] sm:$0xff]
    %v333 = vld [vmem:[#allocation5 + $0x178] sm:$0xff]
    %v334 = vld [vmem:[#allocation5 + $0x180] sm:$0x1]
    %v335 = vlaneseq
    %v336 = vshrl.u32 %v335, 7
    %v337 = vsub.s32 0, %v336
    %v338 = vrot.slane %v334, %v337
    %339 = vmatprep.subr.mxu0 0.0
    %340 = vmatpush1.msra.mxu0 0.0
    %341 = vmatprep.subr.mxu0 0.0
    %342 = vmatpush1.msra.mxu0 0.0
    %343 = vmatprep.subr.mxu0 0.0
    %344 = vmatpush1.msra.mxu0 0.0
    %345 = vmatprep.subr.mxu0 0.0
    %346 = vmatpush1.msra.mxu0 0.0
    %347 = vmatprep.subr.mxu0 0.0
    %348 = vmatpush1.msra.mxu0 0.0
    %349 = vmatprep.subr.mxu0 0.0
    %350 = vmatpush1.msra.mxu0 0.0
    %351 = vmatprep.subr.mxu0 0.0
    %352 = vmatpush1.msra.mxu0 0.0
    %353 = vmatprep.subr.mxu0 0.0
    %354 = vmatpush1.msra.mxu0 0.0
    %355 = vmatprep.subr.mxu0 0.0
    %356 = vmatpush1.msra.mxu0 0.0
    %357 = vmatprep.subr.mxu0 0.0
    %358 = vmatpush1.msra.mxu0 0.0
    %359 = vmatprep.subr.mxu0 0.0
    %360 = vmatpush1.msra.mxu0 0.0
    %361 = vmatprep.subr.mxu0 0.0
    %362 = vmatpush1.msra.mxu0 0.0
    %363 = vmatprep.subr.mxu0 0.0
    %364 = vmatpush1.msra.mxu0 %v333
    %365 = vmatprep.subr.mxu0 0.0
    %366 = vmatpush1.msra.mxu0 %v332
    %367 = vmatprep.subr.mxu0 0.0
    %368 = vmatpush1.msra.mxu0 %v331
    %369 = vmatprep.subr.mxu0 0.0
    %370 = vmatpush1.msra.mxu0 %v330
    %371 = vmatprep.subr.mxu0 0.0
    %372 = vmatpush2.msra.mxu0 0.0
    %373 = vmatprep.subr.mxu0 0.0
    %374 = vmatpush2.msra.mxu0 0.0
    %375 = vmatprep.subr.mxu0 0.0
    %376 = vmatpush2.msra.mxu0 0.0
    %377 = vmatprep.subr.mxu0 0.0
    %378 = vmatpush2.msra.mxu0 0.0
    %379 = vmatprep.subr.mxu0 0.0
    %380 = vmatpush2.msra.mxu0 0.0
    %381 = vmatprep.subr.mxu0 0.0
    %382 = vmatpush2.msra.mxu0 0.0
    %383 = vmatprep.subr.mxu0 0.0
    %384 = vmatpush2.msra.mxu0 0.0
    %385 = vmatprep.subr.mxu0 0.0
    %386 = vmatpush2.msra.mxu0 0.0
    %387 = vmatprep.subr.mxu0 0.0
    %388 = vmatpush2.msra.mxu0 0.0
    %389 = vmatprep.subr.mxu0 0.0
    %390 = vmatpush2.msra.mxu0 0.0
    %391 = vmatprep.subr.mxu0 0.0
    %392 = vmatpush2.msra.mxu0 0.0
    %393 = vmatprep.subr.mxu0 0.0
    %394 = vmatpush2.msra.mxu0 0.0
    %395 = vmatprep.subr.mxu0 0.0
    %396 = vmatpush2.msra.mxu0 0.0
    %397 = vmatprep.subr.mxu0 0.0
    %398 = vmatpush2.msra.mxu0 0.0
    %399 = vmatprep.subr.mxu0 0.0
    %400 = vmatpush2.msra.mxu0 0.0
    %401 = vmatprep.subr.mxu0 0.0
    %402 = vmatpush2.msra.mxu0 0.0
    %403 = vmatprep.mubr.f32.mxu0 0.0
    %404 = vmatmul.mubr.f32.gmra.mxu0 %v166
    %v405 = vpop.f32.mrf.mxu0
    %v406 = vadd.f32 %v338, %v405
    %v407 = vpop.f32.mrf.mxu0
    %408 = vmatprep.mubr.f32.mxu0 0.0
    %409 = vmatmul.mubr.f32.gmra.mxu0 %v169
    %v410 = vpop.f32.mrf.mxu0
    %v411 = vadd.f32 %v338, %v410
    %v412 = vpop.f32.mrf.mxu0
    %413 = vdwg.mxu0
    %414 = vxpose.xlu0.b32.start [1/16] %v322, 128
    %415 = vxpose.xlu0.b32.cont [2/16] %v327, 128
    %416 = vxpose.xlu0.b32.cont [3/16] 0.0, 128
    %417 = vxpose.xlu0.b32.cont [4/16] 0.0, 128
    %418 = vxpose.xlu0.b32.cont [5/16] 0.0, 128
    %419 = vxpose.xlu0.b32.cont [6/16] 0.0, 128
    %420 = vxpose.xlu0.b32.cont [7/16] 0.0, 128
    %421 = vxpose.xlu0.b32.cont [8/16] 0.0, 128
    %422 = vxpose.xlu0.b32.cont [9/16] 0.0, 128
    %423 = vxpose.xlu0.b32.cont [10/16] 0.0, 128
    %424 = vxpose.xlu0.b32.cont [11/16] 0.0, 128
    %425 = vxpose.xlu0.b32.cont [12/16] 0.0, 128
    %426 = vxpose.xlu0.b32.cont [13/16] 0.0, 128
    %427 = vxpose.xlu0.b32.cont [14/16] 0.0, 128
    %428 = vxpose.xlu0.b32.cont [15/16] 0.0, 128
    %429 = vxpose.xlu0.b32.end [16/16] 0.0, 128
    %v430 = vpop.trf.xlu0
    %v431 = vpop.trf.xlu0
    %v432 = vpop.trf.xlu0
    %v433 = vpop.trf.xlu0
    %v434 = vpop.trf.xlu0
    %v435 = vpop.trf.xlu0
    %v436 = vpop.trf.xlu0
    %v437 = vpop.trf.xlu0
    %v438 = vpop.trf.xlu0
    %v439 = vpop.trf.xlu0
    %v440 = vpop.trf.xlu0
    %v441 = vpop.trf.xlu0
    %v442 = vpop.trf.xlu0
    %v443 = vpop.trf.xlu0
    %v444 = vpop.trf.xlu0
    %v445 = vpop.trf.xlu0
    %v447 = vsel %vm49, %v430, 0
    %v450 = vsel %vm49, %v431, 0
    %v453 = vsel %vm49, %v432, 0
    %v456 = vsel %vm49, %v433, 0
    %458 = vmatprep.subr.mxu0 0.0
    %459 = vmatpush1.msra.mxu0 0.0
    %460 = vmatprep.subr.mxu0 0.0
    %461 = vmatpush1.msra.mxu0 0.0
    %462 = vmatprep.subr.mxu0 0.0
    %463 = vmatpush1.msra.mxu0 0.0
    %464 = vmatprep.subr.mxu0 0.0
    %465 = vmatpush1.msra.mxu0 0.0
    %466 = vmatprep.subr.mxu0 0.0
    %467 = vmatpush1.msra.mxu0 0.0
    %468 = vmatprep.subr.mxu0 0.0
    %469 = vmatpush1.msra.mxu0 0.0
    %470 = vmatprep.subr.mxu0 0.0
    %471 = vmatpush1.msra.mxu0 0.0
    %472 = vmatprep.subr.mxu0 0.0
    %473 = vmatpush1.msra.mxu0 0.0
    %474 = vmatprep.subr.mxu0 0.0
    %475 = vmatpush1.msra.mxu0 0.0
    %476 = vmatprep.subr.mxu0 0.0
    %477 = vmatpush1.msra.mxu0 0.0
    %478 = vmatprep.subr.mxu0 0.0
    %479 = vmatpush1.msra.mxu0 0.0
    %480 = vmatprep.subr.mxu0 0.0
    %481 = vmatpush1.msra.mxu0 0.0
    %482 = vmatprep.subr.mxu0 0.0
    %483 = vmatpush1.msra.mxu0 0.0
    %484 = vmatprep.subr.mxu0 0.0
    %485 = vmatpush1.msra.mxu0 0.0
    %486 = vmatprep.subr.mxu0 0.0
    %487 = vmatpush1.msra.mxu0 %v136
    %488 = vmatprep.subr.mxu0 0.0
    %489 = vmatpush1.msra.mxu0 %v135
    %490 = vmatprep.subr.mxu0 0.0
    %491 = vmatpush2.msra.mxu0 0.0
    %492 = vmatprep.subr.mxu0 0.0
    %493 = vmatpush2.msra.mxu0 0.0
    %494 = vmatprep.subr.mxu0 0.0
    %495 = vmatpush2.msra.mxu0 0.0
    %496 = vmatprep.subr.mxu0 0.0
    %497 = vmatpush2.msra.mxu0 0.0
    %498 = vmatprep.subr.mxu0 0.0
    %499 = vmatpush2.msra.mxu0 0.0
    %500 = vmatprep.subr.mxu0 0.0
    %501 = vmatpush2.msra.mxu0 0.0
    %502 = vmatprep.subr.mxu0 0.0
    %503 = vmatpush2.msra.mxu0 0.0
    %504 = vmatprep.subr.mxu0 0.0
    %505 = vmatpush2.msra.mxu0 0.0
    %506 = vmatprep.subr.mxu0 0.0
    %507 = vmatpush2.msra.mxu0 0.0
    %508 = vmatprep.subr.mxu0 0.0
    %509 = vmatpush2.msra.mxu0 0.0
    %510 = vmatprep.subr.mxu0 0.0
    %511 = vmatpush2.msra.mxu0 0.0
    %512 = vmatprep.subr.mxu0 0.0
    %513 = vmatpush2.msra.mxu0 0.0
    %514 = vmatprep.subr.mxu0 0.0
    %515 = vmatpush2.msra.mxu0 0.0
    %516 = vmatprep.subr.mxu0 0.0
    %517 = vmatpush2.msra.mxu0 0.0
    %518 = vmatprep.subr.mxu0 0.0
    %519 = vmatpush2.msra.mxu0 0.0
    %520 = vmatprep.subr.mxu0 0.0
    %521 = vmatpush2.msra.mxu0 0.0
    %522 = vmatprep.mubr.f32.mxu0 0.0
    %523 = vmatmul.mubr.f32.gmra.mxu0 %v447
    %v524 = vpop.f32.mrf.mxu0
    %v525 = vadd.f32 0.0, %v524
    %v526 = vpop.f32.mrf.mxu0
    %527 = vmatprep.mubr.f32.mxu0 0.0
    %528 = vmatmul.mubr.f32.gmra.mxu0 %v450
    %v529 = vpop.f32.mrf.mxu0
    %v530 = vadd.f32 0.0, %v529
    %v531 = vpop.f32.mrf.mxu0
    %532 = vmatprep.mubr.f32.mxu0 0.0
    %533 = vmatmul.mubr.f32.gmra.mxu0 %v453
    %v534 = vpop.f32.mrf.mxu0
    %v535 = vadd.f32 0.0, %v534
    %v536 = vpop.f32.mrf.mxu0
    %537 = vmatprep.mubr.f32.mxu0 0.0
    %538 = vmatmul.mubr.f32.gmra.mxu0 %v456
    %v539 = vpop.f32.mrf.mxu0
    %v540 = vadd.f32 0.0, %v539
    %v541 = vpop.f32.mrf.mxu0
    %542 = vdwg.mxu0
    %v543 = vmul.f32 %v131, %v525
    %v544 = vmul.f32 %v132, %v530
    %v545 = vmul.f32 %v133, %v535
    %v546 = vmul.f32 %v134, %v540
    %v548 = vsel %vm164, %v238, 0
    %v551 = vsel %vm164, %v243, 0
    %553 = vmatprep.subr.mxu0 0.0
    %554 = vmatpush1.msra.mxu0 0.0
    %555 = vmatprep.subr.mxu0 0.0
    %556 = vmatpush1.msra.mxu0 0.0
    %557 = vmatprep.subr.mxu0 0.0
    %558 = vmatpush1.msra.mxu0 0.0
    %559 = vmatprep.subr.mxu0 0.0
    %560 = vmatpush1.msra.mxu0 0.0
    %561 = vmatprep.subr.mxu0 0.0
    %562 = vmatpush1.msra.mxu0 0.0
    %563 = vmatprep.subr.mxu0 0.0
    %564 = vmatpush1.msra.mxu0 0.0
    %565 = vmatprep.subr.mxu0 0.0
    %566 = vmatpush1.msra.mxu0 0.0
    %567 = vmatprep.subr.mxu0 0.0
    %568 = vmatpush1.msra.mxu0 0.0
    %569 = vmatprep.subr.mxu0 0.0
    %570 = vmatpush1.msra.mxu0 0.0
    %571 = vmatprep.subr.mxu0 0.0
    %572 = vmatpush1.msra.mxu0 0.0
    %573 = vmatprep.subr.mxu0 0.0
    %574 = vmatpush1.msra.mxu0 0.0
    %575 = vmatprep.subr.mxu0 0.0
    %576 = vmatpush1.msra.mxu0 0.0
    %577 = vmatprep.subr.mxu0 0.0
    %578 = vmatpush1.msra.mxu0 %v546
    %579 = vmatprep.subr.mxu0 0.0
    %580 = vmatpush1.msra.mxu0 %v545
    %581 = vmatprep.subr.mxu0 0.0
    %582 = vmatpush1.msra.mxu0 %v544
    %583 = vmatprep.subr.mxu0 0.0
    %584 = vmatpush1.msra.mxu0 %v543
    %585 = vmatprep.subr.mxu0 0.0
    %586 = vmatpush2.msra.mxu0 0.0
    %587 = vmatprep.subr.mxu0 0.0
    %588 = vmatpush2.msra.mxu0 0.0
    %589 = vmatprep.subr.mxu0 0.0
    %590 = vmatpush2.msra.mxu0 0.0
    %591 = vmatprep.subr.mxu0 0.0
    %592 = vmatpush2.msra.mxu0 0.0
    %593 = vmatprep.subr.mxu0 0.0
    %594 = vmatpush2.msra.mxu0 0.0
    %595 = vmatprep.subr.mxu0 0.0
    %596 = vmatpush2.msra.mxu0 0.0
    %597 = vmatprep.subr.mxu0 0.0
    %598 = vmatpush2.msra.mxu0 0.0
    %599 = vmatprep.subr.mxu0 0.0
    %600 = vmatpush2.msra.mxu0 0.0
    %601 = vmatprep.subr.mxu0 0.0
    %602 = vmatpush2.msra.mxu0 0.0
    %603 = vmatprep.subr.mxu0 0.0
    %604 = vmatpush2.msra.mxu0 0.0
    %605 = vmatprep.subr.mxu0 0.0
    %606 = vmatpush2.msra.mxu0 0.0
    %607 = vmatprep.subr.mxu0 0.0
    %608 = vmatpush2.msra.mxu0 0.0
    %609 = vmatprep.subr.mxu0 0.0
    %610 = vmatpush2.msra.mxu0 0.0
    %611 = vmatprep.subr.mxu0 0.0
    %612 = vmatpush2.msra.mxu0 0.0
    %613 = vmatprep.subr.mxu0 0.0
    %614 = vmatpush2.msra.mxu0 0.0
    %615 = vmatprep.subr.mxu0 0.0
    %616 = vmatpush2.msra.mxu0 0.0
    %617 = vmatprep.mubr.f32.mxu0 0.0
    %618 = vmatmul.mubr.f32.gmra.mxu0 %v548
    %v619 = vpop.f32.mrf.mxu0
    %v620 = vadd.f32 %v153, %v619
    %v621 = vpop.f32.mrf.mxu0
    %622 = vmatprep.mubr.f32.mxu0 0.0
    %623 = vmatmul.mubr.f32.gmra.mxu0 %v551
    %v624 = vpop.f32.mrf.mxu0
    %v625 = vadd.f32 %v154, %v624
    %v626 = vpop.f32.mrf.mxu0
    %627 = vdwg.mxu0
    %vm628 = vcmask 523264
    %v629 = vsel %vm628, %v620, -inf
    %630 = vmax.xlane.f32.xlu0 %v629
    %v631 = vpop.xlane.xlu0 %630
    %v632 = vsel %vm628, %v625, -inf
    %633 = vmax.xlane.f32.xlu0 %v632
    %v634 = vpop.xlane.xlu0 %633
    %v635 = vsub.f32 %v620, %v631
    %v636 = vsub.f32 %v625, %v634
    %v637 = vmul.f32 %v635, 1.442695
    %v638 = vpow.pop %v637
    %v639 = vmul.f32 %v636, 1.442695
    %v640 = vpow.pop %v639
    %v642 = vsel %vm49, %v145, 0
    %v645 = vsel %vm49, %v146, 0
    %v648 = vsel %vm49, %v147, 0
    %v651 = vsel %vm49, %v148, 0
    %v654 = vsel %vm49, %v149, 0
    %v657 = vsel %vm49, %v150, 0
    %v660 = vsel %vm49, %v151, 0
    %v663 = vsel %vm49, %v152, 0
    %665 = vmatprep.subr.mxu0 0.0
    %666 = vmatpush1.msra.mxu0 0.0
    %667 = vmatprep.subr.mxu0 0.0
    %668 = vmatpush1.msra.mxu0 0.0
    %669 = vmatprep.subr.mxu0 0.0
    %670 = vmatpush1.msra.mxu0 0.0
    %671 = vmatprep.subr.mxu0 0.0
    %672 = vmatpush1.msra.mxu0 0.0
    %673 = vmatprep.subr.mxu0 0.0
    %674 = vmatpush1.msra.mxu0 0.0
    %675 = vmatprep.subr.mxu0 0.0
    %676 = vmatpush1.msra.mxu0 0.0
    %677 = vmatprep.subr.mxu0 0.0
    %678 = vmatpush1.msra.mxu0 0.0
    %679 = vmatprep.subr.mxu0 0.0
    %680 = vmatpush1.msra.mxu0 0.0
    %681 = vmatprep.subr.mxu0 0.0
    %682 = vmatpush1.msra.mxu0 0.0
    %683 = vmatprep.subr.mxu0 0.0
    %684 = vmatpush1.msra.mxu0 0.0
    %685 = vmatprep.subr.mxu0 0.0
    %686 = vmatpush1.msra.mxu0 0.0
    %687 = vmatprep.subr.mxu0 0.0
    %688 = vmatpush1.msra.mxu0 0.0
    %689 = vmatprep.subr.mxu0 0.0
    %690 = vmatpush1.msra.mxu0 0.0
    %691 = vmatprep.subr.mxu0 0.0
    %692 = vmatpush1.msra.mxu0 0.0
    %693 = vmatprep.subr.mxu0 0.0
    %694 = vmatpush1.msra.mxu0 %v411
    %695 = vmatprep.subr.mxu0 0.0
    %696 = vmatpush1.msra.mxu0 %v406
    %697 = vmatprep.subr.mxu0 0.0
    %698 = vmatpush2.msra.mxu0 0.0
    %699 = vmatprep.subr.mxu0 0.0
    %700 = vmatpush2.msra.mxu0 0.0
    %701 = vmatprep.subr.mxu0 0.0
    %702 = vmatpush2.msra.mxu0 0.0
    %703 = vmatprep.subr.mxu0 0.0
    %704 = vmatpush2.msra.mxu0 0.0
    %705 = vmatprep.subr.mxu0 0.0
    %706 = vmatpush2.msra.mxu0 0.0
    %707 = vmatprep.subr.mxu0 0.0
    %708 = vmatpush2.msra.mxu0 0.0
    %709 = vmatprep.subr.mxu0 0.0
    %710 = vmatpush2.msra.mxu0 0.0
    %711 = vmatprep.subr.mxu0 0.0
    %712 = vmatpush2.msra.mxu0 0.0
    %713 = vmatprep.subr.mxu0 0.0
    %714 = vmatpush2.msra.mxu0 0.0
    %715 = vmatprep.subr.mxu0 0.0
    %716 = vmatpush2.msra.mxu0 0.0
    %717 = vmatprep.subr.mxu0 0.0
    %718 = vmatpush2.msra.mxu0 0.0
    %719 = vmatprep.subr.mxu0 0.0
    %720 = vmatpush2.msra.mxu0 0.0
    %721 = vmatprep.subr.mxu0 0.0
    %722 = vmatpush2.msra.mxu0 0.0
    %723 = vmatprep.subr.mxu0 0.0
    %724 = vmatpush2.msra.mxu0 0.0
    %725 = vmatprep.subr.mxu0 0.0
    %726 = vmatpush2.msra.mxu0 0.0
    %727 = vmatprep.subr.mxu0 0.0
    %728 = vmatpush2.msra.mxu0 0.0
    %729 = vmatprep.mubr.f32.mxu0 0.0
    %730 = vmatmul.mubr.f32.gmra.mxu0 %v642
    %v731 = vpop.f32.mrf.mxu0
    %v732 = vadd.f32 0.0, %v731
    %v733 = vpop.f32.mrf.mxu0
    %734 = vmatprep.mubr.f32.mxu0 0.0
    %735 = vmatmul.mubr.f32.gmra.mxu0 %v645
    %v736 = vpop.f32.mrf.mxu0
    %v737 = vadd.f32 0.0, %v736
    %v738 = vpop.f32.mrf.mxu0
    %739 = vmatprep.mubr.f32.mxu0 0.0
    %740 = vmatmul.mubr.f32.gmra.mxu0 %v648
    %v741 = vpop.f32.mrf.mxu0
    %v742 = vadd.f32 0.0, %v741
    %v743 = vpop.f32.mrf.mxu0
    %744 = vmatprep.mubr.f32.mxu0 0.0
    %745 = vmatmul.mubr.f32.gmra.mxu0 %v651
    %v746 = vpop.f32.mrf.mxu0
    %v747 = vadd.f32 0.0, %v746
    %v748 = vpop.f32.mrf.mxu0
    %749 = vmatprep.mubr.f32.mxu0 0.0
    %750 = vmatmul.mubr.f32.gmra.mxu0 %v654
    %v751 = vpop.f32.mrf.mxu0
    %v752 = vadd.f32 0.0, %v751
    %v753 = vpop.f32.mrf.mxu0
    %754 = vmatprep.mubr.f32.mxu0 0.0
    %755 = vmatmul.mubr.f32.gmra.mxu0 %v657
    %v756 = vpop.f32.mrf.mxu0
    %v757 = vadd.f32 0.0, %v756
    %v758 = vpop.f32.mrf.mxu0
    %759 = vmatprep.mubr.f32.mxu0 0.0
    %760 = vmatmul.mubr.f32.gmra.mxu0 %v660
    %v761 = vpop.f32.mrf.mxu0
    %v762 = vadd.f32 0.0, %v761
    %v763 = vpop.f32.mrf.mxu0
    %764 = vmatprep.mubr.f32.mxu0 0.0
    %765 = vmatmul.mubr.f32.gmra.mxu0 %v663
    %v766 = vpop.f32.mrf.mxu0
    %v767 = vadd.f32 0.0, %v766
    %v768 = vpop.f32.mrf.mxu0
    %769 = vdwg.mxu0
    %v770 = vmul.f32 %v137, %v732
    %v771 = vmul.f32 %v138, %v737
    %v772 = vmul.f32 %v139, %v742
    %v773 = vmul.f32 %v140, %v747
    %v774 = vmul.f32 %v141, %v752
    %v775 = vmul.f32 %v142, %v757
    %v776 = vmul.f32 %v143, %v762
    %v777 = vmul.f32 %v144, %v767
    %v779 = vsel %vm628, %v638, 0
    %v782 = vsel %vm628, %v640, 0
    %784 = vmatprep.subr.mxu0 0.0
    %785 = vmatpush1.msra.mxu0 0.0
    %786 = vmatprep.subr.mxu0 0.0
    %787 = vmatpush1.msra.mxu0 0.0
    %788 = vmatprep.subr.mxu0 0.0
    %789 = vmatpush1.msra.mxu0 0.0
    %790 = vmatprep.subr.mxu0 0.0
    %791 = vmatpush1.msra.mxu0 0.0
    %792 = vmatprep.subr.mxu0 0.0
    %793 = vmatpush1.msra.mxu0 0.0
    %794 = vmatprep.subr.mxu0 0.0
    %795 = vmatpush1.msra.mxu0 0.0
    %796 = vmatprep.subr.mxu0 0.0
    %797 = vmatpush1.msra.mxu0 0.0
    %798 = vmatprep.subr.mxu0 0.0
    %799 = vmatpush1.msra.mxu0 0.0
    %800 = vmatprep.subr.mxu0 0.0
    %801 = vmatpush1.msra.mxu0 %v777
    %802 = vmatprep.subr.mxu0 0.0
    %803 = vmatpush1.msra.mxu0 %v776
    %804 = vmatprep.subr.mxu0 0.0
    %805 = vmatpush1.msra.mxu0 %v775
    %806 = vmatprep.subr.mxu0 0.0
    %807 = vmatpush1.msra.mxu0 %v774
    %808 = vmatprep.subr.mxu0 0.0
    %809 = vmatpush1.msra.mxu0 %v773
    %810 = vmatprep.subr.mxu0 0.0
    %811 = vmatpush1.msra.mxu0 %v772
    %812 = vmatprep.subr.mxu0 0.0
    %813 = vmatpush1.msra.mxu0 %v771
    %814 = vmatprep.subr.mxu0 0.0
    %815 = vmatpush1.msra.mxu0 %v770
    %816 = vmatprep.subr.mxu0 0.0
    %817 = vmatpush2.msra.mxu0 0.0
    %818 = vmatprep.subr.mxu0 0.0
    %819 = vmatpush2.msra.mxu0 0.0
    %820 = vmatprep.subr.mxu0 0.0
    %821 = vmatpush2.msra.mxu0 0.0
    %822 = vmatprep.subr.mxu0 0.0
    %823 = vmatpush2.msra.mxu0 0.0
    %824 = vmatprep.subr.mxu0 0.0
    %825 = vmatpush2.msra.mxu0 0.0
    %826 = vmatprep.subr.mxu0 0.0
    %827 = vmatpush2.msra.mxu0 0.0
    %828 = vmatprep.subr.mxu0 0.0
    %829 = vmatpush2.msra.mxu0 0.0
    %830 = vmatprep.subr.mxu0 0.0
    %831 = vmatpush2.msra.mxu0 0.0
    %832 = vmatprep.subr.mxu0 0.0
    %833 = vmatpush2.msra.mxu0 0.0
    %834 = vmatprep.subr.mxu0 0.0
    %835 = vmatpush2.msra.mxu0 0.0
    %836 = vmatprep.subr.mxu0 0.0
    %837 = vmatpush2.msra.mxu0 0.0
    %838 = vmatprep.subr.mxu0 0.0
    %839 = vmatpush2.msra.mxu0 0.0
    %840 = vmatprep.subr.mxu0 0.0
    %841 = vmatpush2.msra.mxu0 0.0
    %842 = vmatprep.subr.mxu0 0.0
    %843 = vmatpush2.msra.mxu0 0.0
    %844 = vmatprep.subr.mxu0 0.0
    %845 = vmatpush2.msra.mxu0 0.0
    %846 = vmatprep.subr.mxu0 0.0
    %847 = vmatpush2.msra.mxu0 0.0
    %848 = vmatprep.mubr.f32.mxu0 0.0
    %849 = vmatmul.mubr.f32.gmra.mxu0 %v779
    %v850 = vpop.f32.mrf.mxu0
    %v851 = vadd.f32 0.0, %v850
    %v852 = vpop.f32.mrf.mxu0
    %853 = vmatprep.mubr.f32.mxu0 0.0
    %854 = vmatmul.mubr.f32.gmra.mxu0 %v782
    %v855 = vpop.f32.mrf.mxu0
    %v856 = vadd.f32 0.0, %v855
    %v857 = vpop.f32.mrf.mxu0
    %858 = vdwg.mxu0
    %859 = vmatprep.subr.mxu0 0.0
    %860 = vmatpush1.msra.mxu0 0.0
    %861 = vmatprep.subr.mxu0 0.0
    %862 = vmatpush1.msra.mxu0 0.0
    %863 = vmatprep.subr.mxu0 0.0
    %864 = vmatpush1.msra.mxu0 0.0
    %865 = vmatprep.subr.mxu0 0.0
    %866 = vmatpush1.msra.mxu0 0.0
    %867 = vmatprep.subr.mxu0 0.0
    %868 = vmatpush1.msra.mxu0 0.0
    %869 = vmatprep.subr.mxu0 0.0
    %870 = vmatpush1.msra.mxu0 0.0
    %871 = vmatprep.subr.mxu0 0.0
    %872 = vmatpush1.msra.mxu0 0.0
    %873 = vmatprep.subr.mxu0 0.0
    %874 = vmatpush1.msra.mxu0 0.0
    %875 = vmatprep.subr.mxu0 0.0
    %876 = vmatpush1.msra.mxu0 %v144
    %877 = vmatprep.subr.mxu0 0.0
    %878 = vmatpush1.msra.mxu0 %v143
    %879 = vmatprep.subr.mxu0 0.0
    %880 = vmatpush1.msra.mxu0 %v142
    %881 = vmatprep.subr.mxu0 0.0
    %882 = vmatpush1.msra.mxu0 %v141
    %883 = vmatprep.subr.mxu0 0.0
    %884 = vmatpush1.msra.mxu0 %v140
    %885 = vmatprep.subr.mxu0 0.0
    %886 = vmatpush1.msra.mxu0 %v139
    %887 = vmatprep.subr.mxu0 0.0
    %888 = vmatpush1.msra.mxu0 %v138
    %889 = vmatprep.subr.mxu0 0.0
    %890 = vmatpush1.msra.mxu0 %v137
    %891 = vmatprep.subr.mxu0 0.0
    %892 = vmatpush2.msra.mxu0 0.0
    %893 = vmatprep.subr.mxu0 0.0
    %894 = vmatpush2.msra.mxu0 0.0
    %895 = vmatprep.subr.mxu0 0.0
    %896 = vmatpush2.msra.mxu0 0.0
    %897 = vmatprep.subr.mxu0 0.0
    %898 = vmatpush2.msra.mxu0 0.0
    %899 = vmatprep.subr.mxu0 0.0
    %900 = vmatpush2.msra.mxu0 0.0
    %901 = vmatprep.subr.mxu0 0.0
    %902 = vmatpush2.msra.mxu0 0.0
    %903 = vmatprep.subr.mxu0 0.0
    %904 = vmatpush2.msra.mxu0 0.0
    %905 = vmatprep.subr.mxu0 0.0
    %906 = vmatpush2.msra.mxu0 0.0
    %907 = vmatprep.subr.mxu0 0.0
    %908 = vmatpush2.msra.mxu0 0.0
    %909 = vmatprep.subr.mxu0 0.0
    %910 = vmatpush2.msra.mxu0 0.0
    %911 = vmatprep.subr.mxu0 0.0
    %912 = vmatpush2.msra.mxu0 0.0
    %913 = vmatprep.subr.mxu0 0.0
    %914 = vmatpush2.msra.mxu0 0.0
    %915 = vmatprep.subr.mxu0 0.0
    %916 = vmatpush2.msra.mxu0 0.0
    %917 = vmatprep.subr.mxu0 0.0
    %918 = vmatpush2.msra.mxu0 0.0
    %919 = vmatprep.subr.mxu0 0.0
    %920 = vmatpush2.msra.mxu0 0.0
    %921 = vmatprep.subr.mxu0 0.0
    %922 = vmatpush2.msra.mxu0 0.0
    %923 = vmatprep.mubr.f32.mxu0 0.0
    %924 = vmatmul.mubr.f32.gmra.mxu0 %v779
    %v925 = vpop.f32.mrf.mxu0
    %v926 = vadd.f32 0.0, %v925
    %v927 = vpop.f32.mrf.mxu0
    %928 = vmatprep.mubr.f32.mxu0 0.0
    %929 = vmatmul.mubr.f32.gmra.mxu0 %v782
    %v930 = vpop.f32.mrf.mxu0
    %v931 = vadd.f32 0.0, %v930
    %v932 = vpop.f32.mrf.mxu0
    %933 = vdwg.mxu0
    %v934 = vmax.f32 %v926, 1e-20
    %v935 = vmax.f32 %v931, 1e-20
    %v936 = vrcp.pop %v934
    %v937 = vrcp.pop %v935
    %v938 = vmul.f32 %v851, %v936
    %v939 = vmul.f32 %v856, %v937
    %v940 = vld [vmem:[#allocation5 + $0x188] sm:$0xff]
    %v941 = vld [vmem:[#allocation5 + $0x190] sm:$0xff]
    %v942 = vld [vmem:[#allocation5 + $0x198] sm:$0xff]
    %v943 = vld [vmem:[#allocation5 + $0x1a0] sm:$0xff]
    %v944 = vld [vmem:[#allocation5 + $0x1a8] sm:$0x1]
    %v945 = vlaneseq
    %v946 = vshrl.u32 %v945, 7
    %v947 = vsub.s32 0, %v946
    %v948 = vrot.slane %v944, %v947
    %v950 = vsel %vm164, %v938, 0
    %v953 = vsel %vm164, %v939, 0
    %955 = vmatprep.subr.mxu0 0.0
    %956 = vmatpush1.msra.mxu0 0.0
    %957 = vmatprep.subr.mxu0 0.0
    %958 = vmatpush1.msra.mxu0 0.0
    %959 = vmatprep.subr.mxu0 0.0
    %960 = vmatpush1.msra.mxu0 0.0
    %961 = vmatprep.subr.mxu0 0.0
    %962 = vmatpush1.msra.mxu0 0.0
    %963 = vmatprep.subr.mxu0 0.0
    %964 = vmatpush1.msra.mxu0 0.0
    %965 = vmatprep.subr.mxu0 0.0
    %966 = vmatpush1.msra.mxu0 0.0
    %967 = vmatprep.subr.mxu0 0.0
    %968 = vmatpush1.msra.mxu0 0.0
    %969 = vmatprep.subr.mxu0 0.0
    %970 = vmatpush1.msra.mxu0 0.0
    %971 = vmatprep.subr.mxu0 0.0
    %972 = vmatpush1.msra.mxu0 0.0
    %973 = vmatprep.subr.mxu0 0.0
    %974 = vmatpush1.msra.mxu0 0.0
    %975 = vmatprep.subr.mxu0 0.0
    %976 = vmatpush1.msra.mxu0 0.0
    %977 = vmatprep.subr.mxu0 0.0
    %978 = vmatpush1.msra.mxu0 0.0
    %979 = vmatprep.subr.mxu0 0.0
    %980 = vmatpush1.msra.mxu0 %v943
    %981 = vmatprep.subr.mxu0 0.0
    %982 = vmatpush1.msra.mxu0 %v942
    %983 = vmatprep.subr.mxu0 0.0
    %984 = vmatpush1.msra.mxu0 %v941
    %985 = vmatprep.subr.mxu0 0.0
    %986 = vmatpush1.msra.mxu0 %v940
    %987 = vmatprep.subr.mxu0 0.0
    %988 = vmatpush2.msra.mxu0 0.0
    %989 = vmatprep.subr.mxu0 0.0
    %990 = vmatpush2.msra.mxu0 0.0
    %991 = vmatprep.subr.mxu0 0.0
    %992 = vmatpush2.msra.mxu0 0.0
    %993 = vmatprep.subr.mxu0 0.0
    %994 = vmatpush2.msra.mxu0 0.0
    %995 = vmatprep.subr.mxu0 0.0
    %996 = vmatpush2.msra.mxu0 0.0
    %997 = vmatprep.subr.mxu0 0.0
    %998 = vmatpush2.msra.mxu0 0.0
    %999 = vmatprep.subr.mxu0 0.0
    %1000 = vmatpush2.msra.mxu0 0.0
    %1001 = vmatprep.subr.mxu0 0.0
    %1002 = vmatpush2.msra.mxu0 0.0
    %1003 = vmatprep.subr.mxu0 0.0
    %1004 = vmatpush2.msra.mxu0 0.0
    %1005 = vmatprep.subr.mxu0 0.0
    %1006 = vmatpush2.msra.mxu0 0.0
    %1007 = vmatprep.subr.mxu0 0.0
    %1008 = vmatpush2.msra.mxu0 0.0
    %1009 = vmatprep.subr.mxu0 0.0
    %1010 = vmatpush2.msra.mxu0 0.0
    %1011 = vmatprep.subr.mxu0 0.0
    %1012 = vmatpush2.msra.mxu0 0.0
    %1013 = vmatprep.subr.mxu0 0.0
    %1014 = vmatpush2.msra.mxu0 0.0
    %1015 = vmatprep.subr.mxu0 0.0
    %1016 = vmatpush2.msra.mxu0 0.0
    %1017 = vmatprep.subr.mxu0 0.0
    %1018 = vmatpush2.msra.mxu0 0.0
    %1019 = vmatprep.mubr.f32.mxu0 0.0
    %1020 = vmatmul.mubr.f32.gmra.mxu0 %v950
    %v1021 = vpop.f32.mrf.mxu0
    %v1022 = vadd.f32 %v948, %v1021
    %v1023 = vpop.f32.mrf.mxu0
    %1024 = vmatprep.mubr.f32.mxu0 0.0
    %1025 = vmatmul.mubr.f32.gmra.mxu0 %v953
    %v1026 = vpop.f32.mrf.mxu0
    %v1027 = vadd.f32 %v948, %v1026
    %v1028 = vpop.f32.mrf.mxu0
    %1029 = vdwg.mxu0
    %v1030 = vadd.f32 %v123, %v1022
    %v1031 = vadd.f32 %v128, %v1027
    %v1032 = vld [vmem:[#allocation5 + $0x1b0] sm:$0x1]
    %v1033 = vld [vmem:[#allocation5 + $0x1b8] sm:$0x1]
    %v1034 = vsel %vm164, %v1030, 0.0
    %1035 = vadd.xlane.f32.xlu0 %v1034
    %v1036 = vpop.xlane.xlu0 %1035
    %v1037 = vsel %vm164, %v1031, 0.0
    %1038 = vadd.xlane.f32.xlu0 %v1037
    %v1039 = vpop.xlane.xlu0 %1038
    %v1040 = vrcp.pop 32.0
    %v1041 = vmul.f32 %v1036, %v1040
    %v1042 = vmul.f32 %v1039, %v1040
    %v1043 = vsub.f32 %v1030, %v1041
    %v1044 = vsub.f32 %v1031, %v1042
    %v1045 = vmul.f32 %v1043, %v1043
    %v1046 = vmul.f32 %v1044, %v1044
    %v1047 = vsel %vm164, %v1045, 0.0
    %1048 = vadd.xlane.f32.xlu0 %v1047
    %v1049 = vpop.xlane.xlu0 %1048
    %v1050 = vsel %vm164, %v1046, 0.0
    %1051 = vadd.xlane.f32.xlu0 %v1050
    %v1052 = vpop.xlane.xlu0 %1051
    %v1053 = vmul.f32 %v1049, %v1040
    %v1054 = vmul.f32 %v1052, %v1040
    %v1055 = vadd.f32 %v1053, 1e-05
    %v1056 = vadd.f32 %v1054, 1e-05
    %v1057 = vrsqrt.pop %v1055
    %v1058 = vrsqrt.pop %v1056
    %v1059 = vmul.f32 %v1043, %v1057
    %v1060 = vmul.f32 %v1044, %v1058
    %v1061 = vlaneseq
    %v1062 = vshrl.u32 %v1061, 7
    %v1063 = vsub.s32 0, %v1062
    %v1064 = vrot.slane %v1032, %v1063
    %v1065 = vmul.f32 %v1059, %v1064
    %v1066 = vmul.f32 %v1060, %v1064
    %v1067 = vlaneseq
    %v1068 = vshrl.u32 %v1067, 7
    %v1069 = vsub.s32 0, %v1068
    %v1070 = vrot.slane %v1033, %v1069
    %v1071 = vadd.f32 %v1065, %v1070
    %v1072 = vadd.f32 %v1066, %v1070
    %v1073 = vld [vmem:[#allocation5 + $0x1c0] sm:$0xff]
    %v1074 = vld [vmem:[#allocation5 + $0x1c8] sm:$0xff]
    %v1075 = vld [vmem:[#allocation5 + $0x1d0] sm:$0xff]
    %v1076 = vld [vmem:[#allocation5 + $0x1d8] sm:$0xff]
    %v1077 = vld [vmem:[#allocation5 + $0x1e0] sm:$0x1]
    %v1078 = vlaneseq
    %v1079 = vshrl.u32 %v1078, 7
    %v1080 = vsub.s32 0, %v1079
    %v1081 = vrot.slane %v1077, %v1080
    %v1083 = vsel %vm164, %v1071, 0
    %v1086 = vsel %vm164, %v1072, 0
    %1088 = vmatprep.subr.mxu0 0.0
    %1089 = vmatpush1.msra.mxu0 0.0
    %1090 = vmatprep.subr.mxu0 0.0
    %1091 = vmatpush1.msra.mxu0 0.0
    %1092 = vmatprep.subr.mxu0 0.0
    %1093 = vmatpush1.msra.mxu0 0.0
    %1094 = vmatprep.subr.mxu0 0.0
    %1095 = vmatpush1.msra.mxu0 0.0
    %1096 = vmatprep.subr.mxu0 0.0
    %1097 = vmatpush1.msra.mxu0 0.0
    %1098 = vmatprep.subr.mxu0 0.0
    %1099 = vmatpush1.msra.mxu0 0.0
    %1100 = vmatprep.subr.mxu0 0.0
    %1101 = vmatpush1.msra.mxu0 0.0
    %1102 = vmatprep.subr.mxu0 0.0
    %1103 = vmatpush1.msra.mxu0 0.0
    %1104 = vmatprep.subr.mxu0 0.0
    %1105 = vmatpush1.msra.mxu0 0.0
    %1106 = vmatprep.subr.mxu0 0.0
    %1107 = vmatpush1.msra.mxu0 0.0
    %1108 = vmatprep.subr.mxu0 0.0
    %1109 = vmatpush1.msra.mxu0 0.0
    %1110 = vmatprep.subr.mxu0 0.0
    %1111 = vmatpush1.msra.mxu0 0.0
    %1112 = vmatprep.subr.mxu0 0.0
    %1113 = vmatpush1.msra.mxu0 %v1076
    %1114 = vmatprep.subr.mxu0 0.0
    %1115 = vmatpush1.msra.mxu0 %v1075
    %1116 = vmatprep.subr.mxu0 0.0
    %1117 = vmatpush1.msra.mxu0 %v1074
    %1118 = vmatprep.subr.mxu0 0.0
    %1119 = vmatpush1.msra.mxu0 %v1073
    %1120 = vmatprep.subr.mxu0 0.0
    %1121 = vmatpush2.msra.mxu0 0.0
    %1122 = vmatprep.subr.mxu0 0.0
    %1123 = vmatpush2.msra.mxu0 0.0
    %1124 = vmatprep.subr.mxu0 0.0
    %1125 = vmatpush2.msra.mxu0 0.0
    %1126 = vmatprep.subr.mxu0 0.0
    %1127 = vmatpush2.msra.mxu0 0.0
    %1128 = vmatprep.subr.mxu0 0.0
    %1129 = vmatpush2.msra.mxu0 0.0
    %1130 = vmatprep.subr.mxu0 0.0
    %1131 = vmatpush2.msra.mxu0 0.0
    %1132 = vmatprep.subr.mxu0 0.0
    %1133 = vmatpush2.msra.mxu0 0.0
    %1134 = vmatprep.subr.mxu0 0.0
    %1135 = vmatpush2.msra.mxu0 0.0
    %1136 = vmatprep.subr.mxu0 0.0
    %1137 = vmatpush2.msra.mxu0 0.0
    %1138 = vmatprep.subr.mxu0 0.0
    %1139 = vmatpush2.msra.mxu0 0.0
    %1140 = vmatprep.subr.mxu0 0.0
    %1141 = vmatpush2.msra.mxu0 0.0
    %1142 = vmatprep.subr.mxu0 0.0
    %1143 = vmatpush2.msra.mxu0 0.0
    %1144 = vmatprep.subr.mxu0 0.0
    %1145 = vmatpush2.msra.mxu0 0.0
    %1146 = vmatprep.subr.mxu0 0.0
    %1147 = vmatpush2.msra.mxu0 0.0
    %1148 = vmatprep.subr.mxu0 0.0
    %1149 = vmatpush2.msra.mxu0 0.0
    %1150 = vmatprep.subr.mxu0 0.0
    %1151 = vmatpush2.msra.mxu0 0.0
    %1152 = vmatprep.mubr.f32.mxu0 0.0
    %1153 = vmatmul.mubr.f32.gmra.mxu0 %v1083
    %v1154 = vpop.f32.mrf.mxu0
    %v1155 = vadd.f32 %v1081, %v1154
    %v1156 = vpop.f32.mrf.mxu0
    %1157 = vmatprep.mubr.f32.mxu0 0.0
    %1158 = vmatmul.mubr.f32.gmra.mxu0 %v1086
    %v1159 = vpop.f32.mrf.mxu0
    %v1160 = vadd.f32 %v1081, %v1159
    %v1161 = vpop.f32.mrf.mxu0
    %1162 = vdwg.mxu0
    %v1163 = vmax.f32 %v1155, 0.0
    %v1164 = vmax.f32 %v1160, 0.0
    %v1165 = vld [vmem:[#allocation5 + $0x1e8] sm:$0xff]
    %v1166 = vld [vmem:[#allocation5 + $0x1f0] sm:$0xff]
    %v1167 = vld [vmem:[#allocation5 + $0x1f8] sm:$0xff]
    %v1168 = vld [vmem:[#allocation5 + $0x200] sm:$0xff]
    %v1169 = vld [vmem:[#allocation5 + $0x208] sm:$0xff]
    %v1170 = vld [vmem:[#allocation5 + $0x210] sm:$0xff]
    %v1171 = vld [vmem:[#allocation5 + $0x218] sm:$0xff]
    %v1172 = vld [vmem:[#allocation5 + $0x220] sm:$0xff]
    %v1173 = vld [vmem:[#allocation5 + $0x228] sm:$0xff]
    %v1174 = vld [vmem:[#allocation5 + $0x230] sm:$0xff]
    %v1175 = vld [vmem:[#allocation5 + $0x238] sm:$0xff]
    %v1176 = vld [vmem:[#allocation5 + $0x240] sm:$0xff]
    %v1177 = vld [vmem:[#allocation5 + $0x248] sm:$0xff]
    %v1178 = vld [vmem:[#allocation5 + $0x250] sm:$0xff]
    %v1179 = vld [vmem:[#allocation5 + $0x258] sm:$0xff]
    %v1180 = vld [vmem:[#allocation5 + $0x260] sm:$0xff]
    %v1181 = vld [vmem:[#allocation5 + $0x268] sm:$0x1]
    %v1182 = vlaneseq
    %v1183 = vshrl.u32 %v1182, 7
    %v1184 = vsub.s32 0, %v1183
    %v1185 = vrot.slane %v1181, %v1184
    %1186 = vmatprep.subr.mxu0 0.0
    %1187 = vmatpush1.msra.mxu0 %v1180
    %1188 = vmatprep.subr.mxu0 0.0
    %1189 = vmatpush1.msra.mxu0 %v1179
    %1190 = vmatprep.subr.mxu0 0.0
    %1191 = vmatpush1.msra.mxu0 %v1178
    %1192 = vmatprep.subr.mxu0 0.0
    %1193 = vmatpush1.msra.mxu0 %v1177
    %1194 = vmatprep.subr.mxu0 0.0
    %1195 = vmatpush1.msra.mxu0 %v1176
    %1196 = vmatprep.subr.mxu0 0.0
    %1197 = vmatpush1.msra.mxu0 %v1175
    %1198 = vmatprep.subr.mxu0 0.0
    %1199 = vmatpush1.msra.mxu0 %v1174
    %1200 = vmatprep.subr.mxu0 0.0
    %1201 = vmatpush1.msra.mxu0 %v1173
    %1202 = vmatprep.subr.mxu0 0.0
    %1203 = vmatpush1.msra.mxu0 %v1172
    %1204 = vmatprep.subr.mxu0 0.0
    %1205 = vmatpush1.msra.mxu0 %v1171
    %1206 = vmatprep.subr.mxu0 0.0
    %1207 = vmatpush1.msra.mxu0 %v1170
    %1208 = vmatprep.subr.mxu0 0.0
    %1209 = vmatpush1.msra.mxu0 %v1169
    %1210 = vmatprep.subr.mxu0 0.0
    %1211 = vmatpush1.msra.mxu0 %v1168
    %1212 = vmatprep.subr.mxu0 0.0
    %1213 = vmatpush1.msra.mxu0 %v1167
    %1214 = vmatprep.subr.mxu0 0.0
    %1215 = vmatpush1.msra.mxu0 %v1166
    %1216 = vmatprep.subr.mxu0 0.0
    %1217 = vmatpush1.msra.mxu0 %v1165
    %1218 = vmatprep.subr.mxu0 0.0
    %1219 = vmatpush2.msra.mxu0 0.0
    %1220 = vmatprep.subr.mxu0 0.0
    %1221 = vmatpush2.msra.mxu0 0.0
    %1222 = vmatprep.subr.mxu0 0.0
    %1223 = vmatpush2.msra.mxu0 0.0
    %1224 = vmatprep.subr.mxu0 0.0
    %1225 = vmatpush2.msra.mxu0 0.0
    %1226 = vmatprep.subr.mxu0 0.0
    %1227 = vmatpush2.msra.mxu0 0.0
    %1228 = vmatprep.subr.mxu0 0.0
    %1229 = vmatpush2.msra.mxu0 0.0
    %1230 = vmatprep.subr.mxu0 0.0
    %1231 = vmatpush2.msra.mxu0 0.0
    %1232 = vmatprep.subr.mxu0 0.0
    %1233 = vmatpush2.msra.mxu0 0.0
    %1234 = vmatprep.subr.mxu0 0.0
    %1235 = vmatpush2.msra.mxu0 0.0
    %1236 = vmatprep.subr.mxu0 0.0
    %1237 = vmatpush2.msra.mxu0 0.0
    %1238 = vmatprep.subr.mxu0 0.0
    %1239 = vmatpush2.msra.mxu0 0.0
    %1240 = vmatprep.subr.mxu0 0.0
    %1241 = vmatpush2.msra.mxu0 0.0
    %1242 = vmatprep.subr.mxu0 0.0
    %1243 = vmatpush2.msra.mxu0 0.0
    %1244 = vmatprep.subr.mxu0 0.0
    %1245 = vmatpush2.msra.mxu0 0.0
    %1246 = vmatprep.subr.mxu0 0.0
    %1247 = vmatpush2.msra.mxu0 0.0
    %1248 = vmatprep.subr.mxu0 0.0
    %1249 = vmatpush2.msra.mxu0 0.0
    %1250 = vmatprep.mubr.f32.mxu0 0.0
    %1251 = vmatmul.mubr.f32.gmra.mxu0 %v1163
    %v1252 = vpop.f32.mrf.mxu0
    %v1253 = vadd.f32 %v1185, %v1252
    %v1254 = vpop.f32.mrf.mxu0
    %1255 = vmatprep.mubr.f32.mxu0 0.0
    %1256 = vmatmul.mubr.f32.gmra.mxu0 %v1164
    %v1257 = vpop.f32.mrf.mxu0
    %v1258 = vadd.f32 %v1185, %v1257
    %v1259 = vpop.f32.mrf.mxu0
    %1260 = vdwg.mxu0
    %v1261 = vadd.f32 %v1071, %v1253
    %v1262 = vadd.f32 %v1072, %v1258
    %v1263 = vld [vmem:[#allocation5 + $0x270] sm:$0x1]
    %v1264 = vld [vmem:[#allocation5 + $0x278] sm:$0x1]
    %v1265 = vsel %vm164, %v1261, 0.0
    %1266 = vadd.xlane.f32.xlu0 %v1265
    %v1267 = vpop.xlane.xlu0 %1266
    %v1268 = vsel %vm164, %v1262, 0.0
    %1269 = vadd.xlane.f32.xlu0 %v1268
    %v1270 = vpop.xlane.xlu0 %1269
    %v1271 = vmul.f32 %v1267, %v1040
    %v1272 = vmul.f32 %v1270, %v1040
    %v1273 = vsub.f32 %v1261, %v1271
    %v1274 = vsub.f32 %v1262, %v1272
    %v1275 = vmul.f32 %v1273, %v1273
    %v1276 = vmul.f32 %v1274, %v1274
    %v1277 = vsel %vm164, %v1275, 0.0
    %1278 = vadd.xlane.f32.xlu0 %v1277
    %v1279 = vpop.xlane.xlu0 %1278
    %v1280 = vsel %vm164, %v1276, 0.0
    %1281 = vadd.xlane.f32.xlu0 %v1280
    %v1282 = vpop.xlane.xlu0 %1281
    %v1283 = vmul.f32 %v1279, %v1040
    %v1284 = vmul.f32 %v1282, %v1040
    %v1285 = vadd.f32 %v1283, 1e-05
    %v1286 = vadd.f32 %v1284, 1e-05
    %v1287 = vrsqrt.pop %v1285
    %v1288 = vrsqrt.pop %v1286
    %v1289 = vmul.f32 %v1273, %v1287
    %v1290 = vmul.f32 %v1274, %v1288
    %v1291 = vlaneseq
    %v1292 = vshrl.u32 %v1291, 7
    %v1293 = vsub.s32 0, %v1292
    %v1294 = vrot.slane %v1263, %v1293
    %v1295 = vmul.f32 %v1289, %v1294
    %v1296 = vmul.f32 %v1290, %v1294
    %v1297 = vlaneseq
    %v1298 = vshrl.u32 %v1297, 7
    %v1299 = vsub.s32 0, %v1298
    %v1300 = vrot.slane %v1264, %v1299
    %v1301 = vadd.f32 %v1295, %v1300
    %v1302 = vadd.f32 %v1296, %v1300
    %v1303 = vld [vmem:[#allocation5 + $0x280] sm:$0xff]
    %v1304 = vld [vmem:[#allocation5 + $0x288] sm:$0xff]
    %v1305 = vld [vmem:[#allocation5 + $0x290] sm:$0xff]
    %v1306 = vld [vmem:[#allocation5 + $0x298] sm:$0xff]
    %v1307 = vld [vmem:[#allocation5 + $0x2a0] sm:$0x1]
    %v1308 = vlaneseq
    %v1309 = vshrl.u32 %v1308, 7
    %v1310 = vsub.s32 0, %v1309
    %v1311 = vrot.slane %v1307, %v1310
    %v1313 = vsel %vm164, %v1301, 0
    %v1316 = vsel %vm164, %v1302, 0
    %1318 = vmatprep.subr.mxu0 0.0
    %1319 = vmatpush1.msra.mxu0 0.0
    %1320 = vmatprep.subr.mxu0 0.0
    %1321 = vmatpush1.msra.mxu0 0.0
    %1322 = vmatprep.subr.mxu0 0.0
    %1323 = vmatpush1.msra.mxu0 0.0
    %1324 = vmatprep.subr.mxu0 0.0
    %1325 = vmatpush1.msra.mxu0 0.0
    %1326 = vmatprep.subr.mxu0 0.0
    %1327 = vmatpush1.msra.mxu0 0.0
    %1328 = vmatprep.subr.mxu0 0.0
    %1329 = vmatpush1.msra.mxu0 0.0
    %1330 = vmatprep.subr.mxu0 0.0
    %1331 = vmatpush1.msra.mxu0 0.0
    %1332 = vmatprep.subr.mxu0 0.0
    %1333 = vmatpush1.msra.mxu0 0.0
    %1334 = vmatprep.subr.mxu0 0.0
    %1335 = vmatpush1.msra.mxu0 0.0
    %1336 = vmatprep.subr.mxu0 0.0
    %1337 = vmatpush1.msra.mxu0 0.0
    %1338 = vmatprep.subr.mxu0 0.0
    %1339 = vmatpush1.msra.mxu0 0.0
    %1340 = vmatprep.subr.mxu0 0.0
    %1341 = vmatpush1.msra.mxu0 0.0
    %1342 = vmatprep.subr.mxu0 0.0
    %1343 = vmatpush1.msra.mxu0 %v1306
    %1344 = vmatprep.subr.mxu0 0.0
    %1345 = vmatpush1.msra.mxu0 %v1305
    %1346 = vmatprep.subr.mxu0 0.0
    %1347 = vmatpush1.msra.mxu0 %v1304
    %1348 = vmatprep.subr.mxu0 0.0
    %1349 = vmatpush1.msra.mxu0 %v1303
    %1350 = vmatprep.subr.mxu0 0.0
    %1351 = vmatpush2.msra.mxu0 0.0
    %1352 = vmatprep.subr.mxu0 0.0
    %1353 = vmatpush2.msra.mxu0 0.0
    %1354 = vmatprep.subr.mxu0 0.0
    %1355 = vmatpush2.msra.mxu0 0.0
    %1356 = vmatprep.subr.mxu0 0.0
    %1357 = vmatpush2.msra.mxu0 0.0
    %1358 = vmatprep.subr.mxu0 0.0
    %1359 = vmatpush2.msra.mxu0 0.0
    %1360 = vmatprep.subr.mxu0 0.0
    %1361 = vmatpush2.msra.mxu0 0.0
    %1362 = vmatprep.subr.mxu0 0.0
    %1363 = vmatpush2.msra.mxu0 0.0
    %1364 = vmatprep.subr.mxu0 0.0
    %1365 = vmatpush2.msra.mxu0 0.0
    %1366 = vmatprep.subr.mxu0 0.0
    %1367 = vmatpush2.msra.mxu0 0.0
    %1368 = vmatprep.subr.mxu0 0.0
    %1369 = vmatpush2.msra.mxu0 0.0
    %1370 = vmatprep.subr.mxu0 0.0
    %1371 = vmatpush2.msra.mxu0 0.0
    %1372 = vmatprep.subr.mxu0 0.0
    %1373 = vmatpush2.msra.mxu0 0.0
    %1374 = vmatprep.subr.mxu0 0.0
    %1375 = vmatpush2.msra.mxu0 0.0
    %1376 = vmatprep.subr.mxu0 0.0
    %1377 = vmatpush2.msra.mxu0 0.0
    %1378 = vmatprep.subr.mxu0 0.0
    %1379 = vmatpush2.msra.mxu0 0.0
    %1380 = vmatprep.subr.mxu0 0.0
    %1381 = vmatpush2.msra.mxu0 0.0
    %1382 = vmatprep.mubr.f32.mxu0 0.0
    %1383 = vmatmul.mubr.f32.gmra.mxu0 %v1313
    %v1384 = vpop.f32.mrf.mxu0
    %v1385 = vadd.f32 %v1311, %v1384
    %v1386 = vpop.f32.mrf.mxu0
    %1387 = vmatprep.mubr.f32.mxu0 0.0
    %1388 = vmatmul.mubr.f32.gmra.mxu0 %v1316
    %v1389 = vpop.f32.mrf.mxu0
    %v1390 = vadd.f32 %v1311, %v1389
    %v1391 = vpop.f32.mrf.mxu0
    %1392 = vdwg.mxu0
    %v1393 = vld [vmem:[#allocation5 + $0x2a8] sm:$0xff]
    %v1394 = vld [vmem:[#allocation5 + $0x2b0] sm:$0xff]
    %v1395 = vld [vmem:[#allocation5 + $0x2b8] sm:$0xff]
    %v1396 = vld [vmem:[#allocation5 + $0x2c0] sm:$0xff]
    %v1397 = vld [vmem:[#allocation5 + $0x2c8] sm:$0x1]
    %v1398 = vlaneseq
    %v1399 = vshrl.u32 %v1398, 7
    %v1400 = vsub.s32 0, %v1399
    %v1401 = vrot.slane %v1397, %v1400
    %1402 = vmatprep.subr.mxu0 0.0
    %1403 = vmatpush1.msra.mxu0 0.0
    %1404 = vmatprep.subr.mxu0 0.0
    %1405 = vmatpush1.msra.mxu0 0.0
    %1406 = vmatprep.subr.mxu0 0.0
    %1407 = vmatpush1.msra.mxu0 0.0
    %1408 = vmatprep.subr.mxu0 0.0
    %1409 = vmatpush1.msra.mxu0 0.0
    %1410 = vmatprep.subr.mxu0 0.0
    %1411 = vmatpush1.msra.mxu0 0.0
    %1412 = vmatprep.subr.mxu0 0.0
    %1413 = vmatpush1.msra.mxu0 0.0
    %1414 = vmatprep.subr.mxu0 0.0
    %1415 = vmatpush1.msra.mxu0 0.0
    %1416 = vmatprep.subr.mxu0 0.0
    %1417 = vmatpush1.msra.mxu0 0.0
    %1418 = vmatprep.subr.mxu0 0.0
    %1419 = vmatpush1.msra.mxu0 0.0
    %1420 = vmatprep.subr.mxu0 0.0
    %1421 = vmatpush1.msra.mxu0 0.0
    %1422 = vmatprep.subr.mxu0 0.0
    %1423 = vmatpush1.msra.mxu0 0.0
    %1424 = vmatprep.subr.mxu0 0.0
    %1425 = vmatpush1.msra.mxu0 0.0
    %1426 = vmatprep.subr.mxu0 0.0
    %1427 = vmatpush1.msra.mxu0 %v1396
    %1428 = vmatprep.subr.mxu0 0.0
    %1429 = vmatpush1.msra.mxu0 %v1395
    %1430 = vmatprep.subr.mxu0 0.0
    %1431 = vmatpush1.msra.mxu0 %v1394
    %1432 = vmatprep.subr.mxu0 0.0
    %1433 = vmatpush1.msra.mxu0 %v1393
    %1434 = vmatprep.subr.mxu0 0.0
    %1435 = vmatpush2.msra.mxu0 0.0
    %1436 = vmatprep.subr.mxu0 0.0
    %1437 = vmatpush2.msra.mxu0 0.0
    %1438 = vmatprep.subr.mxu0 0.0
    %1439 = vmatpush2.msra.mxu0 0.0
    %1440 = vmatprep.subr.mxu0 0.0
    %1441 = vmatpush2.msra.mxu0 0.0
    %1442 = vmatprep.subr.mxu0 0.0
    %1443 = vmatpush2.msra.mxu0 0.0
    %1444 = vmatprep.subr.mxu0 0.0
    %1445 = vmatpush2.msra.mxu0 0.0
    %1446 = vmatprep.subr.mxu0 0.0
    %1447 = vmatpush2.msra.mxu0 0.0
    %1448 = vmatprep.subr.mxu0 0.0
    %1449 = vmatpush2.msra.mxu0 0.0
    %1450 = vmatprep.subr.mxu0 0.0
    %1451 = vmatpush2.msra.mxu0 0.0
    %1452 = vmatprep.subr.mxu0 0.0
    %1453 = vmatpush2.msra.mxu0 0.0
    %1454 = vmatprep.subr.mxu0 0.0
    %1455 = vmatpush2.msra.mxu0 0.0
    %1456 = vmatprep.subr.mxu0 0.0
    %1457 = vmatpush2.msra.mxu0 0.0
    %1458 = vmatprep.subr.mxu0 0.0
    %1459 = vmatpush2.msra.mxu0 0.0
    %1460 = vmatprep.subr.mxu0 0.0
    %1461 = vmatpush2.msra.mxu0 0.0
    %1462 = vmatprep.subr.mxu0 0.0
    %1463 = vmatpush2.msra.mxu0 0.0
    %1464 = vmatprep.subr.mxu0 0.0
    %1465 = vmatpush2.msra.mxu0 0.0
    %1466 = vmatprep.mubr.f32.mxu0 0.0
    %1467 = vmatmul.mubr.f32.gmra.mxu0 %v1313
    %v1468 = vpop.f32.mrf.mxu0
    %v1469 = vadd.f32 %v1401, %v1468
    %v1470 = vpop.f32.mrf.mxu0
    %1471 = vmatprep.mubr.f32.mxu0 0.0
    %1472 = vmatmul.mubr.f32.gmra.mxu0 %v1316
    %v1473 = vpop.f32.mrf.mxu0
    %v1474 = vadd.f32 %v1401, %v1473
    %v1475 = vpop.f32.mrf.mxu0
    %1476 = vdwg.mxu0
    %v1477 = vld [vmem:[#allocation5 + $0x2d0] sm:$0xff]
    %v1478 = vld [vmem:[#allocation5 + $0x2d8] sm:$0xff]
    %v1479 = vld [vmem:[#allocation5 + $0x2e0] sm:$0xff]
    %v1480 = vld [vmem:[#allocation5 + $0x2e8] sm:$0xff]
    %v1481 = vld [vmem:[#allocation5 + $0x2f0] sm:$0x1]
    %v1482 = vlaneseq
    %v1483 = vshrl.u32 %v1482, 7
    %v1484 = vsub.s32 0, %v1483
    %v1485 = vrot.slane %v1481, %v1484
    %1486 = vmatprep.subr.mxu0 0.0
    %1487 = vmatpush1.msra.mxu0 0.0
    %1488 = vmatprep.subr.mxu0 0.0
    %1489 = vmatpush1.msra.mxu0 0.0
    %1490 = vmatprep.subr.mxu0 0.0
    %1491 = vmatpush1.msra.mxu0 0.0
    %1492 = vmatprep.subr.mxu0 0.0
    %1493 = vmatpush1.msra.mxu0 0.0
    %1494 = vmatprep.subr.mxu0 0.0
    %1495 = vmatpush1.msra.mxu0 0.0
    %1496 = vmatprep.subr.mxu0 0.0
    %1497 = vmatpush1.msra.mxu0 0.0
    %1498 = vmatprep.subr.mxu0 0.0
    %1499 = vmatpush1.msra.mxu0 0.0
    %1500 = vmatprep.subr.mxu0 0.0
    %1501 = vmatpush1.msra.mxu0 0.0
    %1502 = vmatprep.subr.mxu0 0.0
    %1503 = vmatpush1.msra.mxu0 0.0
    %1504 = vmatprep.subr.mxu0 0.0
    %1505 = vmatpush1.msra.mxu0 0.0
    %1506 = vmatprep.subr.mxu0 0.0
    %1507 = vmatpush1.msra.mxu0 0.0
    %1508 = vmatprep.subr.mxu0 0.0
    %1509 = vmatpush1.msra.mxu0 0.0
    %1510 = vmatprep.subr.mxu0 0.0
    %1511 = vmatpush1.msra.mxu0 %v1480
    %1512 = vmatprep.subr.mxu0 0.0
    %1513 = vmatpush1.msra.mxu0 %v1479
    %1514 = vmatprep.subr.mxu0 0.0
    %1515 = vmatpush1.msra.mxu0 %v1478
    %1516 = vmatprep.subr.mxu0 0.0
    %1517 = vmatpush1.msra.mxu0 %v1477
    %1518 = vmatprep.subr.mxu0 0.0
    %1519 = vmatpush2.msra.mxu0 0.0
    %1520 = vmatprep.subr.mxu0 0.0
    %1521 = vmatpush2.msra.mxu0 0.0
    %1522 = vmatprep.subr.mxu0 0.0
    %1523 = vmatpush2.msra.mxu0 0.0
    %1524 = vmatprep.subr.mxu0 0.0
    %1525 = vmatpush2.msra.mxu0 0.0
    %1526 = vmatprep.subr.mxu0 0.0
    %1527 = vmatpush2.msra.mxu0 0.0
    %1528 = vmatprep.subr.mxu0 0.0
    %1529 = vmatpush2.msra.mxu0 0.0
    %1530 = vmatprep.subr.mxu0 0.0
    %1531 = vmatpush2.msra.mxu0 0.0
    %1532 = vmatprep.subr.mxu0 0.0
    %1533 = vmatpush2.msra.mxu0 0.0
    %1534 = vmatprep.subr.mxu0 0.0
    %1535 = vmatpush2.msra.mxu0 0.0
    %1536 = vmatprep.subr.mxu0 0.0
    %1537 = vmatpush2.msra.mxu0 0.0
    %1538 = vmatprep.subr.mxu0 0.0
    %1539 = vmatpush2.msra.mxu0 0.0
    %1540 = vmatprep.subr.mxu0 0.0
    %1541 = vmatpush2.msra.mxu0 0.0
    %1542 = vmatprep.subr.mxu0 0.0
    %1543 = vmatpush2.msra.mxu0 0.0
    %1544 = vmatprep.subr.mxu0 0.0
    %1545 = vmatpush2.msra.mxu0 0.0
    %1546 = vmatprep.subr.mxu0 0.0
    %1547 = vmatpush2.msra.mxu0 0.0
    %1548 = vmatprep.subr.mxu0 0.0
    %1549 = vmatpush2.msra.mxu0 0.0
    %1550 = vmatprep.mubr.f32.mxu0 0.0
    %1551 = vmatmul.mubr.f32.gmra.mxu0 %v1313
    %v1552 = vpop.f32.mrf.mxu0
    %v1553 = vadd.f32 %v1485, %v1552
    %v1554 = vpop.f32.mrf.mxu0
    %1555 = vmatprep.mubr.f32.mxu0 0.0
    %1556 = vmatmul.mubr.f32.gmra.mxu0 %v1316
    %v1557 = vpop.f32.mrf.mxu0
    %v1558 = vadd.f32 %v1485, %v1557
    %v1559 = vpop.f32.mrf.mxu0
    %1560 = vdwg.mxu0
    %1561 = vxpose.xlu0.b32.start [1/16] %v1469, 128
    %1562 = vxpose.xlu0.b32.cont [2/16] %v1474, 128
    %1563 = vxpose.xlu0.b32.cont [3/16] 0.0, 128
    %1564 = vxpose.xlu0.b32.cont [4/16] 0.0, 128
    %1565 = vxpose.xlu0.b32.cont [5/16] 0.0, 128
    %1566 = vxpose.xlu0.b32.cont [6/16] 0.0, 128
    %1567 = vxpose.xlu0.b32.cont [7/16] 0.0, 128
    %1568 = vxpose.xlu0.b32.cont [8/16] 0.0, 128
    %1569 = vxpose.xlu0.b32.cont [9/16] 0.0, 128
    %1570 = vxpose.xlu0.b32.cont [10/16] 0.0, 128
    %1571 = vxpose.xlu0.b32.cont [11/16] 0.0, 128
    %1572 = vxpose.xlu0.b32.cont [12/16] 0.0, 128
    %1573 = vxpose.xlu0.b32.cont [13/16] 0.0, 128
    %1574 = vxpose.xlu0.b32.cont [14/16] 0.0, 128
    %1575 = vxpose.xlu0.b32.cont [15/16] 0.0, 128
    %1576 = vxpose.xlu0.b32.end [16/16] 0.0, 128
    %v1577 = vpop.trf.xlu0
    %v1578 = vpop.trf.xlu0
    %v1579 = vpop.trf.xlu0
    %v1580 = vpop.trf.xlu0
    %v1581 = vpop.trf.xlu0
    %v1582 = vpop.trf.xlu0
    %v1583 = vpop.trf.xlu0
    %v1584 = vpop.trf.xlu0
    %v1585 = vpop.trf.xlu0
    %v1586 = vpop.trf.xlu0
    %v1587 = vpop.trf.xlu0
    %v1588 = vpop.trf.xlu0
    %v1589 = vpop.trf.xlu0
    %v1590 = vpop.trf.xlu0
    %v1591 = vpop.trf.xlu0
    %v1592 = vpop.trf.xlu0
    %v1594 = vsel %vm49, %v1577, 0
    %v1597 = vsel %vm49, %v1578, 0
    %v1600 = vsel %vm49, %v1579, 0
    %v1603 = vsel %vm49, %v1580, 0
    %1605 = vmatprep.subr.mxu0 0.0
    %1606 = vmatpush1.msra.mxu0 0.0
    %1607 = vmatprep.subr.mxu0 0.0
    %1608 = vmatpush1.msra.mxu0 0.0
    %1609 = vmatprep.subr.mxu0 0.0
    %1610 = vmatpush1.msra.mxu0 0.0
    %1611 = vmatprep.subr.mxu0 0.0
    %1612 = vmatpush1.msra.mxu0 0.0
    %1613 = vmatprep.subr.mxu0 0.0
    %1614 = vmatpush1.msra.mxu0 0.0
    %1615 = vmatprep.subr.mxu0 0.0
    %1616 = vmatpush1.msra.mxu0 0.0
    %1617 = vmatprep.subr.mxu0 0.0
    %1618 = vmatpush1.msra.mxu0 0.0
    %1619 = vmatprep.subr.mxu0 0.0
    %1620 = vmatpush1.msra.mxu0 0.0
    %1621 = vmatprep.subr.mxu0 0.0
    %1622 = vmatpush1.msra.mxu0 0.0
    %1623 = vmatprep.subr.mxu0 0.0
    %1624 = vmatpush1.msra.mxu0 0.0
    %1625 = vmatprep.subr.mxu0 0.0
    %1626 = vmatpush1.msra.mxu0 0.0
    %1627 = vmatprep.subr.mxu0 0.0
    %1628 = vmatpush1.msra.mxu0 0.0
    %1629 = vmatprep.subr.mxu0 0.0
    %1630 = vmatpush1.msra.mxu0 0.0
    %1631 = vmatprep.subr.mxu0 0.0
    %1632 = vmatpush1.msra.mxu0 0.0
    %1633 = vmatprep.subr.mxu0 0.0
    %1634 = vmatpush1.msra.mxu0 %v136
    %1635 = vmatprep.subr.mxu0 0.0
    %1636 = vmatpush1.msra.mxu0 %v135
    %1637 = vmatprep.subr.mxu0 0.0
    %1638 = vmatpush2.msra.mxu0 0.0
    %1639 = vmatprep.subr.mxu0 0.0
    %1640 = vmatpush2.msra.mxu0 0.0
    %1641 = vmatprep.subr.mxu0 0.0
    %1642 = vmatpush2.msra.mxu0 0.0
    %1643 = vmatprep.subr.mxu0 0.0
    %1644 = vmatpush2.msra.mxu0 0.0
    %1645 = vmatprep.subr.mxu0 0.0
    %1646 = vmatpush2.msra.mxu0 0.0
    %1647 = vmatprep.subr.mxu0 0.0
    %1648 = vmatpush2.msra.mxu0 0.0
    %1649 = vmatprep.subr.mxu0 0.0
    %1650 = vmatpush2.msra.mxu0 0.0
    %1651 = vmatprep.subr.mxu0 0.0
    %1652 = vmatpush2.msra.mxu0 0.0
    %1653 = vmatprep.subr.mxu0 0.0
    %1654 = vmatpush2.msra.mxu0 0.0
    %1655 = vmatprep.subr.mxu0 0.0
    %1656 = vmatpush2.msra.mxu0 0.0
    %1657 = vmatprep.subr.mxu0 0.0
    %1658 = vmatpush2.msra.mxu0 0.0
    %1659 = vmatprep.subr.mxu0 0.0
    %1660 = vmatpush2.msra.mxu0 0.0
    %1661 = vmatprep.subr.mxu0 0.0
    %1662 = vmatpush2.msra.mxu0 0.0
    %1663 = vmatprep.subr.mxu0 0.0
    %1664 = vmatpush2.msra.mxu0 0.0
    %1665 = vmatprep.subr.mxu0 0.0
    %1666 = vmatpush2.msra.mxu0 0.0
    %1667 = vmatprep.subr.mxu0 0.0
    %1668 = vmatpush2.msra.mxu0 0.0
    %1669 = vmatprep.mubr.f32.mxu0 0.0
    %1670 = vmatmul.mubr.f32.gmra.mxu0 %v1594
    %v1671 = vpop.f32.mrf.mxu0
    %v1672 = vadd.f32 0.0, %v1671
    %v1673 = vpop.f32.mrf.mxu0
    %1674 = vmatprep.mubr.f32.mxu0 0.0
    %1675 = vmatmul.mubr.f32.gmra.mxu0 %v1597
    %v1676 = vpop.f32.mrf.mxu0
    %v1677 = vadd.f32 0.0, %v1676
    %v1678 = vpop.f32.mrf.mxu0
    %1679 = vmatprep.mubr.f32.mxu0 0.0
    %1680 = vmatmul.mubr.f32.gmra.mxu0 %v1600
    %v1681 = vpop.f32.mrf.mxu0
    %v1682 = vadd.f32 0.0, %v1681
    %v1683 = vpop.f32.mrf.mxu0
    %1684 = vmatprep.mubr.f32.mxu0 0.0
    %1685 = vmatmul.mubr.f32.gmra.mxu0 %v1603
    %v1686 = vpop.f32.mrf.mxu0
    %v1687 = vadd.f32 0.0, %v1686
    %v1688 = vpop.f32.mrf.mxu0
    %1689 = vdwg.mxu0
    %v1690 = vmul.f32 %v131, %v1672
    %v1691 = vmul.f32 %v132, %v1677
    %v1692 = vmul.f32 %v133, %v1682
    %v1693 = vmul.f32 %v134, %v1687
    %v1695 = vsel %vm164, %v1385, 0
    %v1698 = vsel %vm164, %v1390, 0
    %1700 = vmatprep.subr.mxu0 0.0
    %1701 = vmatpush1.msra.mxu0 0.0
    %1702 = vmatprep.subr.mxu0 0.0
    %1703 = vmatpush1.msra.mxu0 0.0
    %1704 = vmatprep.subr.mxu0 0.0
    %1705 = vmatpush1.msra.mxu0 0.0
    %1706 = vmatprep.subr.mxu0 0.0
    %1707 = vmatpush1.msra.mxu0 0.0
    %1708 = vmatprep.subr.mxu0 0.0
    %1709 = vmatpush1.msra.mxu0 0.0
    %1710 = vmatprep.subr.mxu0 0.0
    %1711 = vmatpush1.msra.mxu0 0.0
    %1712 = vmatprep.subr.mxu0 0.0
    %1713 = vmatpush1.msra.mxu0 0.0
    %1714 = vmatprep.subr.mxu0 0.0
    %1715 = vmatpush1.msra.mxu0 0.0
    %1716 = vmatprep.subr.mxu0 0.0
    %1717 = vmatpush1.msra.mxu0 0.0
    %1718 = vmatprep.subr.mxu0 0.0
    %1719 = vmatpush1.msra.mxu0 0.0
    %1720 = vmatprep.subr.mxu0 0.0
    %1721 = vmatpush1.msra.mxu0 0.0
    %1722 = vmatprep.subr.mxu0 0.0
    %1723 = vmatpush1.msra.mxu0 0.0
    %1724 = vmatprep.subr.mxu0 0.0
    %1725 = vmatpush1.msra.mxu0 %v1693
    %1726 = vmatprep.subr.mxu0 0.0
    %1727 = vmatpush1.msra.mxu0 %v1692
    %1728 = vmatprep.subr.mxu0 0.0
    %1729 = vmatpush1.msra.mxu0 %v1691
    %1730 = vmatprep.subr.mxu0 0.0
    %1731 = vmatpush1.msra.mxu0 %v1690
    %1732 = vmatprep.subr.mxu0 0.0
    %1733 = vmatpush2.msra.mxu0 0.0
    %1734 = vmatprep.subr.mxu0 0.0
    %1735 = vmatpush2.msra.mxu0 0.0
    %1736 = vmatprep.subr.mxu0 0.0
    %1737 = vmatpush2.msra.mxu0 0.0
    %1738 = vmatprep.subr.mxu0 0.0
    %1739 = vmatpush2.msra.mxu0 0.0
    %1740 = vmatprep.subr.mxu0 0.0
    %1741 = vmatpush2.msra.mxu0 0.0
    %1742 = vmatprep.subr.mxu0 0.0
    %1743 = vmatpush2.msra.mxu0 0.0
    %1744 = vmatprep.subr.mxu0 0.0
    %1745 = vmatpush2.msra.mxu0 0.0
    %1746 = vmatprep.subr.mxu0 0.0
    %1747 = vmatpush2.msra.mxu0 0.0
    %1748 = vmatprep.subr.mxu0 0.0
    %1749 = vmatpush2.msra.mxu0 0.0
    %1750 = vmatprep.subr.mxu0 0.0
    %1751 = vmatpush2.msra.mxu0 0.0
    %1752 = vmatprep.subr.mxu0 0.0
    %1753 = vmatpush2.msra.mxu0 0.0
    %1754 = vmatprep.subr.mxu0 0.0
    %1755 = vmatpush2.msra.mxu0 0.0
    %1756 = vmatprep.subr.mxu0 0.0
    %1757 = vmatpush2.msra.mxu0 0.0
    %1758 = vmatprep.subr.mxu0 0.0
    %1759 = vmatpush2.msra.mxu0 0.0
    %1760 = vmatprep.subr.mxu0 0.0
    %1761 = vmatpush2.msra.mxu0 0.0
    %1762 = vmatprep.subr.mxu0 0.0
    %1763 = vmatpush2.msra.mxu0 0.0
    %1764 = vmatprep.mubr.f32.mxu0 0.0
    %1765 = vmatmul.mubr.f32.gmra.mxu0 %v1695
    %v1766 = vpop.f32.mrf.mxu0
    %v1767 = vadd.f32 %v153, %v1766
    %v1768 = vpop.f32.mrf.mxu0
    %1769 = vmatprep.mubr.f32.mxu0 0.0
    %1770 = vmatmul.mubr.f32.gmra.mxu0 %v1698
    %v1771 = vpop.f32.mrf.mxu0
    %v1772 = vadd.f32 %v154, %v1771
    %v1773 = vpop.f32.mrf.mxu0
    %1774 = vdwg.mxu0
    %v1775 = vsel %vm628, %v1767, -inf
    %1776 = vmax.xlane.f32.xlu0 %v1775
    %v1777 = vpop.xlane.xlu0 %1776
    %v1778 = vsel %vm628, %v1772, -inf
    %1779 = vmax.xlane.f32.xlu0 %v1778
    %v1780 = vpop.xlane.xlu0 %1779
    %v1781 = vsub.f32 %v1767, %v1777
    %v1782 = vsub.f32 %v1772, %v1780
    %v1783 = vmul.f32 %v1781, 1.442695
    %v1784 = vpow.pop %v1783
    %v1785 = vmul.f32 %v1782, 1.442695
    %v1786 = vpow.pop %v1785
    %1787 = vmatprep.subr.mxu0 0.0
    %1788 = vmatpush1.msra.mxu0 0.0
    %1789 = vmatprep.subr.mxu0 0.0
    %1790 = vmatpush1.msra.mxu0 0.0
    %1791 = vmatprep.subr.mxu0 0.0
    %1792 = vmatpush1.msra.mxu0 0.0
    %1793 = vmatprep.subr.mxu0 0.0
    %1794 = vmatpush1.msra.mxu0 0.0
    %1795 = vmatprep.subr.mxu0 0.0
    %1796 = vmatpush1.msra.mxu0 0.0
    %1797 = vmatprep.subr.mxu0 0.0
    %1798 = vmatpush1.msra.mxu0 0.0
    %1799 = vmatprep.subr.mxu0 0.0
    %1800 = vmatpush1.msra.mxu0 0.0
    %1801 = vmatprep.subr.mxu0 0.0
    %1802 = vmatpush1.msra.mxu0 0.0
    %1803 = vmatprep.subr.mxu0 0.0
    %1804 = vmatpush1.msra.mxu0 0.0
    %1805 = vmatprep.subr.mxu0 0.0
    %1806 = vmatpush1.msra.mxu0 0.0
    %1807 = vmatprep.subr.mxu0 0.0
    %1808 = vmatpush1.msra.mxu0 0.0
    %1809 = vmatprep.subr.mxu0 0.0
    %1810 = vmatpush1.msra.mxu0 0.0
    %1811 = vmatprep.subr.mxu0 0.0
    %1812 = vmatpush1.msra.mxu0 0.0
    %1813 = vmatprep.subr.mxu0 0.0
    %1814 = vmatpush1.msra.mxu0 0.0
    %1815 = vmatprep.subr.mxu0 0.0
    %1816 = vmatpush1.msra.mxu0 %v1558
    %1817 = vmatprep.subr.mxu0 0.0
    %1818 = vmatpush1.msra.mxu0 %v1553
    %1819 = vmatprep.subr.mxu0 0.0
    %1820 = vmatpush2.msra.mxu0 0.0
    %1821 = vmatprep.subr.mxu0 0.0
    %1822 = vmatpush2.msra.mxu0 0.0
    %1823 = vmatprep.subr.mxu0 0.0
    %1824 = vmatpush2.msra.mxu0 0.0
    %1825 = vmatprep.subr.mxu0 0.0
    %1826 = vmatpush2.msra.mxu0 0.0
    %1827 = vmatprep.subr.mxu0 0.0
    %1828 = vmatpush2.msra.mxu0 0.0
    %1829 = vmatprep.subr.mxu0 0.0
    %1830 = vmatpush2.msra.mxu0 0.0
    %1831 = vmatprep.subr.mxu0 0.0
    %1832 = vmatpush2.msra.mxu0 0.0
    %1833 = vmatprep.subr.mxu0 0.0
    %1834 = vmatpush2.msra.mxu0 0.0
    %1835 = vmatprep.subr.mxu0 0.0
    %1836 = vmatpush2.msra.mxu0 0.0
    %1837 = vmatprep.subr.mxu0 0.0
    %1838 = vmatpush2.msra.mxu0 0.0
    %1839 = vmatprep.subr.mxu0 0.0
    %1840 = vmatpush2.msra.mxu0 0.0
    %1841 = vmatprep.subr.mxu0 0.0
    %1842 = vmatpush2.msra.mxu0 0.0
    %1843 = vmatprep.subr.mxu0 0.0
    %1844 = vmatpush2.msra.mxu0 0.0
    %1845 = vmatprep.subr.mxu0 0.0
    %1846 = vmatpush2.msra.mxu0 0.0
    %1847 = vmatprep.subr.mxu0 0.0
    %1848 = vmatpush2.msra.mxu0 0.0
    %1849 = vmatprep.subr.mxu0 0.0
    %1850 = vmatpush2.msra.mxu0 0.0
    %1851 = vmatprep.mubr.f32.mxu0 0.0
    %1852 = vmatmul.mubr.f32.gmra.mxu0 %v642
    %v1853 = vpop.f32.mrf.mxu0
    %v1854 = vadd.f32 0.0, %v1853
    %v1855 = vpop.f32.mrf.mxu0
    %1856 = vmatprep.mubr.f32.mxu0 0.0
    %1857 = vmatmul.mubr.f32.gmra.mxu0 %v645
    %v1858 = vpop.f32.mrf.mxu0
    %v1859 = vadd.f32 0.0, %v1858
    %v1860 = vpop.f32.mrf.mxu0
    %1861 = vmatprep.mubr.f32.mxu0 0.0
    %1862 = vmatmul.mubr.f32.gmra.mxu0 %v648
    %v1863 = vpop.f32.mrf.mxu0
    %v1864 = vadd.f32 0.0, %v1863
    %v1865 = vpop.f32.mrf.mxu0
    %1866 = vmatprep.mubr.f32.mxu0 0.0
    %1867 = vmatmul.mubr.f32.gmra.mxu0 %v651
    %v1868 = vpop.f32.mrf.mxu0
    %v1869 = vadd.f32 0.0, %v1868
    %v1870 = vpop.f32.mrf.mxu0
    %1871 = vmatprep.mubr.f32.mxu0 0.0
    %1872 = vmatmul.mubr.f32.gmra.mxu0 %v654
    %v1873 = vpop.f32.mrf.mxu0
    %v1874 = vadd.f32 0.0, %v1873
    %v1875 = vpop.f32.mrf.mxu0
    %1876 = vmatprep.mubr.f32.mxu0 0.0
    %1877 = vmatmul.mubr.f32.gmra.mxu0 %v657
    %v1878 = vpop.f32.mrf.mxu0
    %v1879 = vadd.f32 0.0, %v1878
    %v1880 = vpop.f32.mrf.mxu0
    %1881 = vmatprep.mubr.f32.mxu0 0.0
    %1882 = vmatmul.mubr.f32.gmra.mxu0 %v660
    %v1883 = vpop.f32.mrf.mxu0
    %v1884 = vadd.f32 0.0, %v1883
    %v1885 = vpop.f32.mrf.mxu0
    %1886 = vmatprep.mubr.f32.mxu0 0.0
    %1887 = vmatmul.mubr.f32.gmra.mxu0 %v663
    %v1888 = vpop.f32.mrf.mxu0
    %v1889 = vadd.f32 0.0, %v1888
    %v1890 = vpop.f32.mrf.mxu0
    %1891 = vdwg.mxu0
    %v1892 = vmul.f32 %v137, %v1854
    %v1893 = vmul.f32 %v138, %v1859
    %v1894 = vmul.f32 %v139, %v1864
    %v1895 = vmul.f32 %v140, %v1869
    %v1896 = vmul.f32 %v141, %v1874
    %v1897 = vmul.f32 %v142, %v1879
    %v1898 = vmul.f32 %v143, %v1884
    %v1899 = vmul.f32 %v144, %v1889
    %v1901 = vsel %vm628, %v1784, 0
    %v1904 = vsel %vm628, %v1786, 0
    %1906 = vmatprep.subr.mxu0 0.0
    %1907 = vmatpush1.msra.mxu0 0.0
    %1908 = vmatprep.subr.mxu0 0.0
    %1909 = vmatpush1.msra.mxu0 0.0
    %1910 = vmatprep.subr.mxu0 0.0
    %1911 = vmatpush1.msra.mxu0 0.0
    %1912 = vmatprep.subr.mxu0 0.0
    %1913 = vmatpush1.msra.mxu0 0.0
    %1914 = vmatprep.subr.mxu0 0.0
    %1915 = vmatpush1.msra.mxu0 0.0
    %1916 = vmatprep.subr.mxu0 0.0
    %1917 = vmatpush1.msra.mxu0 0.0
    %1918 = vmatprep.subr.mxu0 0.0
    %1919 = vmatpush1.msra.mxu0 0.0
    %1920 = vmatprep.subr.mxu0 0.0
    %1921 = vmatpush1.msra.mxu0 0.0
    %1922 = vmatprep.subr.mxu0 0.0
    %1923 = vmatpush1.msra.mxu0 %v1899
    %1924 = vmatprep.subr.mxu0 0.0
    %1925 = vmatpush1.msra.mxu0 %v1898
    %1926 = vmatprep.subr.mxu0 0.0
    %1927 = vmatpush1.msra.mxu0 %v1897
    %1928 = vmatprep.subr.mxu0 0.0
    %1929 = vmatpush1.msra.mxu0 %v1896
    %1930 = vmatprep.subr.mxu0 0.0
    %1931 = vmatpush1.msra.mxu0 %v1895
    %1932 = vmatprep.subr.mxu0 0.0
    %1933 = vmatpush1.msra.mxu0 %v1894
    %1934 = vmatprep.subr.mxu0 0.0
    %1935 = vmatpush1.msra.mxu0 %v1893
    %1936 = vmatprep.subr.mxu0 0.0
    %1937 = vmatpush1.msra.mxu0 %v1892
    %1938 = vmatprep.subr.mxu0 0.0
    %1939 = vmatpush2.msra.mxu0 0.0
    %1940 = vmatprep.subr.mxu0 0.0
    %1941 = vmatpush2.msra.mxu0 0.0
    %1942 = vmatprep.subr.mxu0 0.0
    %1943 = vmatpush2.msra.mxu0 0.0
    %1944 = vmatprep.subr.mxu0 0.0
    %1945 = vmatpush2.msra.mxu0 0.0
    %1946 = vmatprep.subr.mxu0 0.0
    %1947 = vmatpush2.msra.mxu0 0.0
    %1948 = vmatprep.subr.mxu0 0.0
    %1949 = vmatpush2.msra.mxu0 0.0
    %1950 = vmatprep.subr.mxu0 0.0
    %1951 = vmatpush2.msra.mxu0 0.0
    %1952 = vmatprep.subr.mxu0 0.0
    %1953 = vmatpush2.msra.mxu0 0.0
    %1954 = vmatprep.subr.mxu0 0.0
    %1955 = vmatpush2.msra.mxu0 0.0
    %1956 = vmatprep.subr.mxu0 0.0
    %1957 = vmatpush2.msra.mxu0 0.0
    %1958 = vmatprep.subr.mxu0 0.0
    %1959 = vmatpush2.msra.mxu0 0.0
    %1960 = vmatprep.subr.mxu0 0.0
    %1961 = vmatpush2.msra.mxu0 0.0
    %1962 = vmatprep.subr.mxu0 0.0
    %1963 = vmatpush2.msra.mxu0 0.0
    %1964 = vmatprep.subr.mxu0 0.0
    %1965 = vmatpush2.msra.mxu0 0.0
    %1966 = vmatprep.subr.mxu0 0.0
    %1967 = vmatpush2.msra.mxu0 0.0
    %1968 = vmatprep.subr.mxu0 0.0
    %1969 = vmatpush2.msra.mxu0 0.0
    %1970 = vmatprep.mubr.f32.mxu0 0.0
    %1971 = vmatmul.mubr.f32.gmra.mxu0 %v1901
    %v1972 = vpop.f32.mrf.mxu0
    %v1973 = vadd.f32 0.0, %v1972
    %v1974 = vpop.f32.mrf.mxu0
    %1975 = vmatprep.mubr.f32.mxu0 0.0
    %1976 = vmatmul.mubr.f32.gmra.mxu0 %v1904
    %v1977 = vpop.f32.mrf.mxu0
    %v1978 = vadd.f32 0.0, %v1977
    %v1979 = vpop.f32.mrf.mxu0
    %1980 = vdwg.mxu0
    %1981 = vmatprep.subr.mxu0 0.0
    %1982 = vmatpush1.msra.mxu0 0.0
    %1983 = vmatprep.subr.mxu0 0.0
    %1984 = vmatpush1.msra.mxu0 0.0
    %1985 = vmatprep.subr.mxu0 0.0
    %1986 = vmatpush1.msra.mxu0 0.0
    %1987 = vmatprep.subr.mxu0 0.0
    %1988 = vmatpush1.msra.mxu0 0.0
    %1989 = vmatprep.subr.mxu0 0.0
    %1990 = vmatpush1.msra.mxu0 0.0
    %1991 = vmatprep.subr.mxu0 0.0
    %1992 = vmatpush1.msra.mxu0 0.0
    %1993 = vmatprep.subr.mxu0 0.0
    %1994 = vmatpush1.msra.mxu0 0.0
    %1995 = vmatprep.subr.mxu0 0.0
    %1996 = vmatpush1.msra.mxu0 0.0
    %1997 = vmatprep.subr.mxu0 0.0
    %1998 = vmatpush1.msra.mxu0 %v144
    %1999 = vmatprep.subr.mxu0 0.0
    %2000 = vmatpush1.msra.mxu0 %v143
    %2001 = vmatprep.subr.mxu0 0.0
    %2002 = vmatpush1.msra.mxu0 %v142
    %2003 = vmatprep.subr.mxu0 0.0
    %2004 = vmatpush1.msra.mxu0 %v141
    %2005 = vmatprep.subr.mxu0 0.0
    %2006 = vmatpush1.msra.mxu0 %v140
    %2007 = vmatprep.subr.mxu0 0.0
    %2008 = vmatpush1.msra.mxu0 %v139
    %2009 = vmatprep.subr.mxu0 0.0
    %2010 = vmatpush1.msra.mxu0 %v138
    %2011 = vmatprep.subr.mxu0 0.0
    %2012 = vmatpush1.msra.mxu0 %v137
    %2013 = vmatprep.subr.mxu0 0.0
    %2014 = vmatpush2.msra.mxu0 0.0
    %2015 = vmatprep.subr.mxu0 0.0
    %2016 = vmatpush2.msra.mxu0 0.0
    %2017 = vmatprep.subr.mxu0 0.0
    %2018 = vmatpush2.msra.mxu0 0.0
    %2019 = vmatprep.subr.mxu0 0.0
    %2020 = vmatpush2.msra.mxu0 0.0
    %2021 = vmatprep.subr.mxu0 0.0
    %2022 = vmatpush2.msra.mxu0 0.0
    %2023 = vmatprep.subr.mxu0 0.0
    %2024 = vmatpush2.msra.mxu0 0.0
    %2025 = vmatprep.subr.mxu0 0.0
    %2026 = vmatpush2.msra.mxu0 0.0
    %2027 = vmatprep.subr.mxu0 0.0
    %2028 = vmatpush2.msra.mxu0 0.0
    %2029 = vmatprep.subr.mxu0 0.0
    %2030 = vmatpush2.msra.mxu0 0.0
    %2031 = vmatprep.subr.mxu0 0.0
    %2032 = vmatpush2.msra.mxu0 0.0
    %2033 = vmatprep.subr.mxu0 0.0
    %2034 = vmatpush2.msra.mxu0 0.0
    %2035 = vmatprep.subr.mxu0 0.0
    %2036 = vmatpush2.msra.mxu0 0.0
    %2037 = vmatprep.subr.mxu0 0.0
    %2038 = vmatpush2.msra.mxu0 0.0
    %2039 = vmatprep.subr.mxu0 0.0
    %2040 = vmatpush2.msra.mxu0 0.0
    %2041 = vmatprep.subr.mxu0 0.0
    %2042 = vmatpush2.msra.mxu0 0.0
    %2043 = vmatprep.subr.mxu0 0.0
    %2044 = vmatpush2.msra.mxu0 0.0
    %2045 = vmatprep.mubr.f32.mxu0 0.0
    %2046 = vmatmul.mubr.f32.gmra.mxu0 %v1901
    %v2047 = vpop.f32.mrf.mxu0
    %v2048 = vadd.f32 0.0, %v2047
    %v2049 = vpop.f32.mrf.mxu0
    %2050 = vmatprep.mubr.f32.mxu0 0.0
    %2051 = vmatmul.mubr.f32.gmra.mxu0 %v1904
    %v2052 = vpop.f32.mrf.mxu0
    %v2053 = vadd.f32 0.0, %v2052
    %v2054 = vpop.f32.mrf.mxu0
    %2055 = vdwg.mxu0
    %v2056 = vmax.f32 %v2048, 1e-20
    %v2057 = vmax.f32 %v2053, 1e-20
    %v2058 = vrcp.pop %v2056
    %v2059 = vrcp.pop %v2057
    %v2060 = vmul.f32 %v1973, %v2058
    %v2061 = vmul.f32 %v1978, %v2059
    %v2062 = vld [vmem:[#allocation5 + $0x2f8] sm:$0xff]
    %v2063 = vld [vmem:[#allocation5 + $0x300] sm:$0xff]
    %v2064 = vld [vmem:[#allocation5 + $0x308] sm:$0xff]
    %v2065 = vld [vmem:[#allocation5 + $0x310] sm:$0xff]
    %v2066 = vld [vmem:[#allocation5 + $0x318] sm:$0x1]
    %v2067 = vlaneseq
    %v2068 = vshrl.u32 %v2067, 7
    %v2069 = vsub.s32 0, %v2068
    %v2070 = vrot.slane %v2066, %v2069
    %v2072 = vsel %vm164, %v2060, 0
    %v2075 = vsel %vm164, %v2061, 0
    %2077 = vmatprep.subr.mxu0 0.0
    %2078 = vmatpush1.msra.mxu0 0.0
    %2079 = vmatprep.subr.mxu0 0.0
    %2080 = vmatpush1.msra.mxu0 0.0
    %2081 = vmatprep.subr.mxu0 0.0
    %2082 = vmatpush1.msra.mxu0 0.0
    %2083 = vmatprep.subr.mxu0 0.0
    %2084 = vmatpush1.msra.mxu0 0.0
    %2085 = vmatprep.subr.mxu0 0.0
    %2086 = vmatpush1.msra.mxu0 0.0
    %2087 = vmatprep.subr.mxu0 0.0
    %2088 = vmatpush1.msra.mxu0 0.0
    %2089 = vmatprep.subr.mxu0 0.0
    %2090 = vmatpush1.msra.mxu0 0.0
    %2091 = vmatprep.subr.mxu0 0.0
    %2092 = vmatpush1.msra.mxu0 0.0
    %2093 = vmatprep.subr.mxu0 0.0
    %2094 = vmatpush1.msra.mxu0 0.0
    %2095 = vmatprep.subr.mxu0 0.0
    %2096 = vmatpush1.msra.mxu0 0.0
    %2097 = vmatprep.subr.mxu0 0.0
    %2098 = vmatpush1.msra.mxu0 0.0
    %2099 = vmatprep.subr.mxu0 0.0
    %2100 = vmatpush1.msra.mxu0 0.0
    %2101 = vmatprep.subr.mxu0 0.0
    %2102 = vmatpush1.msra.mxu0 %v2065
    %2103 = vmatprep.subr.mxu0 0.0
    %2104 = vmatpush1.msra.mxu0 %v2064
    %2105 = vmatprep.subr.mxu0 0.0
    %2106 = vmatpush1.msra.mxu0 %v2063
    %2107 = vmatprep.subr.mxu0 0.0
    %2108 = vmatpush1.msra.mxu0 %v2062
    %2109 = vmatprep.subr.mxu0 0.0
    %2110 = vmatpush2.msra.mxu0 0.0
    %2111 = vmatprep.subr.mxu0 0.0
    %2112 = vmatpush2.msra.mxu0 0.0
    %2113 = vmatprep.subr.mxu0 0.0
    %2114 = vmatpush2.msra.mxu0 0.0
    %2115 = vmatprep.subr.mxu0 0.0
    %2116 = vmatpush2.msra.mxu0 0.0
    %2117 = vmatprep.subr.mxu0 0.0
    %2118 = vmatpush2.msra.mxu0 0.0
    %2119 = vmatprep.subr.mxu0 0.0
    %2120 = vmatpush2.msra.mxu0 0.0
    %2121 = vmatprep.subr.mxu0 0.0
    %2122 = vmatpush2.msra.mxu0 0.0
    %2123 = vmatprep.subr.mxu0 0.0
    %2124 = vmatpush2.msra.mxu0 0.0
    %2125 = vmatprep.subr.mxu0 0.0
    %2126 = vmatpush2.msra.mxu0 0.0
    %2127 = vmatprep.subr.mxu0 0.0
    %2128 = vmatpush2.msra.mxu0 0.0
    %2129 = vmatprep.subr.mxu0 0.0
    %2130 = vmatpush2.msra.mxu0 0.0
    %2131 = vmatprep.subr.mxu0 0.0
    %2132 = vmatpush2.msra.mxu0 0.0
    %2133 = vmatprep.subr.mxu0 0.0
    %2134 = vmatpush2.msra.mxu0 0.0
    %2135 = vmatprep.subr.mxu0 0.0
    %2136 = vmatpush2.msra.mxu0 0.0
    %2137 = vmatprep.subr.mxu0 0.0
    %2138 = vmatpush2.msra.mxu0 0.0
    %2139 = vmatprep.subr.mxu0 0.0
    %2140 = vmatpush2.msra.mxu0 0.0
    %2141 = vmatprep.mubr.f32.mxu0 0.0
    %2142 = vmatmul.mubr.f32.gmra.mxu0 %v2072
    %v2143 = vpop.f32.mrf.mxu0
    %v2144 = vadd.f32 %v2070, %v2143
    %v2145 = vpop.f32.mrf.mxu0
    %2146 = vmatprep.mubr.f32.mxu0 0.0
    %2147 = vmatmul.mubr.f32.gmra.mxu0 %v2075
    %v2148 = vpop.f32.mrf.mxu0
    %v2149 = vadd.f32 %v2070, %v2148
    %v2150 = vpop.f32.mrf.mxu0
    %2151 = vdwg.mxu0
    %v2152 = vadd.f32 %v1301, %v2144
    %v2153 = vadd.f32 %v1302, %v2149
    %v2154 = vld [vmem:[#allocation5 + $0x320] sm:$0x1]
    %v2155 = vld [vmem:[#allocation5 + $0x328] sm:$0x1]
    %v2156 = vsel %vm164, %v2152, 0.0
    %2157 = vadd.xlane.f32.xlu0 %v2156
    %v2158 = vpop.xlane.xlu0 %2157
    %v2159 = vsel %vm164, %v2153, 0.0
    %2160 = vadd.xlane.f32.xlu0 %v2159
    %v2161 = vpop.xlane.xlu0 %2160
    %v2162 = vmul.f32 %v2158, %v1040
    %v2163 = vmul.f32 %v2161, %v1040
    %v2164 = vsub.f32 %v2152, %v2162
    %v2165 = vsub.f32 %v2153, %v2163
    %v2166 = vmul.f32 %v2164, %v2164
    %v2167 = vmul.f32 %v2165, %v2165
    %v2168 = vsel %vm164, %v2166, 0.0
    %2169 = vadd.xlane.f32.xlu0 %v2168
    %v2170 = vpop.xlane.xlu0 %2169
    %v2171 = vsel %vm164, %v2167, 0.0
    %2172 = vadd.xlane.f32.xlu0 %v2171
    %v2173 = vpop.xlane.xlu0 %2172
    %v2174 = vmul.f32 %v2170, %v1040
    %v2175 = vmul.f32 %v2173, %v1040
    %v2176 = vadd.f32 %v2174, 1e-05
    %v2177 = vadd.f32 %v2175, 1e-05
    %v2178 = vrsqrt.pop %v2176
    %v2179 = vrsqrt.pop %v2177
    %v2180 = vmul.f32 %v2164, %v2178
    %v2181 = vmul.f32 %v2165, %v2179
    %v2182 = vlaneseq
    %v2183 = vshrl.u32 %v2182, 7
    %v2184 = vsub.s32 0, %v2183
    %v2185 = vrot.slane %v2154, %v2184
    %v2186 = vmul.f32 %v2180, %v2185
    %v2187 = vmul.f32 %v2181, %v2185
    %v2188 = vlaneseq
    %v2189 = vshrl.u32 %v2188, 7
    %v2190 = vsub.s32 0, %v2189
    %v2191 = vrot.slane %v2155, %v2190
    %v2192 = vadd.f32 %v2186, %v2191
    %v2193 = vadd.f32 %v2187, %v2191
    %v2194 = vld [vmem:[#allocation5 + $0x330] sm:$0xff]
    %v2195 = vld [vmem:[#allocation5 + $0x338] sm:$0xff]
    %v2196 = vld [vmem:[#allocation5 + $0x340] sm:$0xff]
    %v2197 = vld [vmem:[#allocation5 + $0x348] sm:$0xff]
    %v2198 = vld [vmem:[#allocation5 + $0x350] sm:$0x1]
    %v2199 = vlaneseq
    %v2200 = vshrl.u32 %v2199, 7
    %v2201 = vsub.s32 0, %v2200
    %v2202 = vrot.slane %v2198, %v2201
    %v2204 = vsel %vm164, %v2192, 0
    %v2207 = vsel %vm164, %v2193, 0
    %2209 = vmatprep.subr.mxu0 0.0
    %2210 = vmatpush1.msra.mxu0 0.0
    %2211 = vmatprep.subr.mxu0 0.0
    %2212 = vmatpush1.msra.mxu0 0.0
    %2213 = vmatprep.subr.mxu0 0.0
    %2214 = vmatpush1.msra.mxu0 0.0
    %2215 = vmatprep.subr.mxu0 0.0
    %2216 = vmatpush1.msra.mxu0 0.0
    %2217 = vmatprep.subr.mxu0 0.0
    %2218 = vmatpush1.msra.mxu0 0.0
    %2219 = vmatprep.subr.mxu0 0.0
    %2220 = vmatpush1.msra.mxu0 0.0
    %2221 = vmatprep.subr.mxu0 0.0
    %2222 = vmatpush1.msra.mxu0 0.0
    %2223 = vmatprep.subr.mxu0 0.0
    %2224 = vmatpush1.msra.mxu0 0.0
    %2225 = vmatprep.subr.mxu0 0.0
    %2226 = vmatpush1.msra.mxu0 0.0
    %2227 = vmatprep.subr.mxu0 0.0
    %2228 = vmatpush1.msra.mxu0 0.0
    %2229 = vmatprep.subr.mxu0 0.0
    %2230 = vmatpush1.msra.mxu0 0.0
    %2231 = vmatprep.subr.mxu0 0.0
    %2232 = vmatpush1.msra.mxu0 0.0
    %2233 = vmatprep.subr.mxu0 0.0
    %2234 = vmatpush1.msra.mxu0 %v2197
    %2235 = vmatprep.subr.mxu0 0.0
    %2236 = vmatpush1.msra.mxu0 %v2196
    %2237 = vmatprep.subr.mxu0 0.0
    %2238 = vmatpush1.msra.mxu0 %v2195
    %2239 = vmatprep.subr.mxu0 0.0
    %2240 = vmatpush1.msra.mxu0 %v2194
    %2241 = vmatprep.subr.mxu0 0.0
    %2242 = vmatpush2.msra.mxu0 0.0
    %2243 = vmatprep.subr.mxu0 0.0
    %2244 = vmatpush2.msra.mxu0 0.0
    %2245 = vmatprep.subr.mxu0 0.0
    %2246 = vmatpush2.msra.mxu0 0.0
    %2247 = vmatprep.subr.mxu0 0.0
    %2248 = vmatpush2.msra.mxu0 0.0
    %2249 = vmatprep.subr.mxu0 0.0
    %2250 = vmatpush2.msra.mxu0 0.0
    %2251 = vmatprep.subr.mxu0 0.0
    %2252 = vmatpush2.msra.mxu0 0.0
    %2253 = vmatprep.subr.mxu0 0.0
    %2254 = vmatpush2.msra.mxu0 0.0
    %2255 = vmatprep.subr.mxu0 0.0
    %2256 = vmatpush2.msra.mxu0 0.0
    %2257 = vmatprep.subr.mxu0 0.0
    %2258 = vmatpush2.msra.mxu0 0.0
    %2259 = vmatprep.subr.mxu0 0.0
    %2260 = vmatpush2.msra.mxu0 0.0
    %2261 = vmatprep.subr.mxu0 0.0
    %2262 = vmatpush2.msra.mxu0 0.0
    %2263 = vmatprep.subr.mxu0 0.0
    %2264 = vmatpush2.msra.mxu0 0.0
    %2265 = vmatprep.subr.mxu0 0.0
    %2266 = vmatpush2.msra.mxu0 0.0
    %2267 = vmatprep.subr.mxu0 0.0
    %2268 = vmatpush2.msra.mxu0 0.0
    %2269 = vmatprep.subr.mxu0 0.0
    %2270 = vmatpush2.msra.mxu0 0.0
    %2271 = vmatprep.subr.mxu0 0.0
    %2272 = vmatpush2.msra.mxu0 0.0
    %2273 = vmatprep.mubr.f32.mxu0 0.0
    %2274 = vmatmul.mubr.f32.gmra.mxu0 %v2204
    %v2275 = vpop.f32.mrf.mxu0
    %v2276 = vadd.f32 %v2202, %v2275
    %v2277 = vpop.f32.mrf.mxu0
    %2278 = vmatprep.mubr.f32.mxu0 0.0
    %2279 = vmatmul.mubr.f32.gmra.mxu0 %v2207
    %v2280 = vpop.f32.mrf.mxu0
    %v2281 = vadd.f32 %v2202, %v2280
    %v2282 = vpop.f32.mrf.mxu0
    %2283 = vdwg.mxu0
    %v2284 = vmax.f32 %v2276, 0.0
    %v2285 = vmax.f32 %v2281, 0.0
    %v2286 = vld [vmem:[#allocation5 + $0x358] sm:$0xff]
    %v2287 = vld [vmem:[#allocation5 + $0x360] sm:$0xff]
    %v2288 = vld [vmem:[#allocation5 + $0x368] sm:$0xff]
    %v2289 = vld [vmem:[#allocation5 + $0x370] sm:$0xff]
    %v2290 = vld [vmem:[#allocation5 + $0x378] sm:$0xff]
    %v2291 = vld [vmem:[#allocation5 + $0x380] sm:$0xff]
    %v2292 = vld [vmem:[#allocation5 + $0x388] sm:$0xff]
    %v2293 = vld [vmem:[#allocation5 + $0x390] sm:$0xff]
    %v2294 = vld [vmem:[#allocation5 + $0x398] sm:$0xff]
    %v2295 = vld [vmem:[#allocation5 + $0x3a0] sm:$0xff]
    %v2296 = vld [vmem:[#allocation5 + $0x3a8] sm:$0xff]
    %v2297 = vld [vmem:[#allocation5 + $0x3b0] sm:$0xff]
    %v2298 = vld [vmem:[#allocation5 + $0x3b8] sm:$0xff]
    %v2299 = vld [vmem:[#allocation5 + $0x3c0] sm:$0xff]
    %v2300 = vld [vmem:[#allocation5 + $0x3c8] sm:$0xff]
    %v2301 = vld [vmem:[#allocation5 + $0x3d0] sm:$0xff]
    %v2302 = vld [vmem:[#allocation5 + $0x3d8] sm:$0x1]
    %v2303 = vlaneseq
    %v2304 = vshrl.u32 %v2303, 7
    %v2305 = vsub.s32 0, %v2304
    %v2306 = vrot.slane %v2302, %v2305
    %2307 = vmatprep.subr.mxu0 0.0
    %2308 = vmatpush1.msra.mxu0 %v2301
    %2309 = vmatprep.subr.mxu0 0.0
    %2310 = vmatpush1.msra.mxu0 %v2300
    %2311 = vmatprep.subr.mxu0 0.0
    %2312 = vmatpush1.msra.mxu0 %v2299
    %2313 = vmatprep.subr.mxu0 0.0
    %2314 = vmatpush1.msra.mxu0 %v2298
    %2315 = vmatprep.subr.mxu0 0.0
    %2316 = vmatpush1.msra.mxu0 %v2297
    %2317 = vmatprep.subr.mxu0 0.0
    %2318 = vmatpush1.msra.mxu0 %v2296
    %2319 = vmatprep.subr.mxu0 0.0
    %2320 = vmatpush1.msra.mxu0 %v2295
    %2321 = vmatprep.subr.mxu0 0.0
    %2322 = vmatpush1.msra.mxu0 %v2294
    %2323 = vmatprep.subr.mxu0 0.0
    %2324 = vmatpush1.msra.mxu0 %v2293
    %2325 = vmatprep.subr.mxu0 0.0
    %2326 = vmatpush1.msra.mxu0 %v2292
    %2327 = vmatprep.subr.mxu0 0.0
    %2328 = vmatpush1.msra.mxu0 %v2291
    %2329 = vmatprep.subr.mxu0 0.0
    %2330 = vmatpush1.msra.mxu0 %v2290
    %2331 = vmatprep.subr.mxu0 0.0
    %2332 = vmatpush1.msra.mxu0 %v2289
    %2333 = vmatprep.subr.mxu0 0.0
    %2334 = vmatpush1.msra.mxu0 %v2288
    %2335 = vmatprep.subr.mxu0 0.0
    %2336 = vmatpush1.msra.mxu0 %v2287
    %2337 = vmatprep.subr.mxu0 0.0
    %2338 = vmatpush1.msra.mxu0 %v2286
    %2339 = vmatprep.subr.mxu0 0.0
    %2340 = vmatpush2.msra.mxu0 0.0
    %2341 = vmatprep.subr.mxu0 0.0
    %2342 = vmatpush2.msra.mxu0 0.0
    %2343 = vmatprep.subr.mxu0 0.0
    %2344 = vmatpush2.msra.mxu0 0.0
    %2345 = vmatprep.subr.mxu0 0.0
    %2346 = vmatpush2.msra.mxu0 0.0
    %2347 = vmatprep.subr.mxu0 0.0
    %2348 = vmatpush2.msra.mxu0 0.0
    %2349 = vmatprep.subr.mxu0 0.0
    %2350 = vmatpush2.msra.mxu0 0.0
    %2351 = vmatprep.subr.mxu0 0.0
    %2352 = vmatpush2.msra.mxu0 0.0
    %2353 = vmatprep.subr.mxu0 0.0
    %2354 = vmatpush2.msra.mxu0 0.0
    %2355 = vmatprep.subr.mxu0 0.0
    %2356 = vmatpush2.msra.mxu0 0.0
    %2357 = vmatprep.subr.mxu0 0.0
    %2358 = vmatpush2.msra.mxu0 0.0
    %2359 = vmatprep.subr.mxu0 0.0
    %2360 = vmatpush2.msra.mxu0 0.0
    %2361 = vmatprep.subr.mxu0 0.0
    %2362 = vmatpush2.msra.mxu0 0.0
    %2363 = vmatprep.subr.mxu0 0.0
    %2364 = vmatpush2.msra.mxu0 0.0
    %2365 = vmatprep.subr.mxu0 0.0
    %2366 = vmatpush2.msra.mxu0 0.0
    %2367 = vmatprep.subr.mxu0 0.0
    %2368 = vmatpush2.msra.mxu0 0.0
    %2369 = vmatprep.subr.mxu0 0.0
    %2370 = vmatpush2.msra.mxu0 0.0
    %2371 = vmatprep.mubr.f32.mxu0 0.0
    %2372 = vmatmul.mubr.f32.gmra.mxu0 %v2284
    %v2373 = vpop.f32.mrf.mxu0
    %v2374 = vadd.f32 %v2306, %v2373
    %v2375 = vpop.f32.mrf.mxu0
    %2376 = vmatprep.mubr.f32.mxu0 0.0
    %2377 = vmatmul.mubr.f32.gmra.mxu0 %v2285
    %v2378 = vpop.f32.mrf.mxu0
    %v2379 = vadd.f32 %v2306, %v2378
    %v2380 = vpop.f32.mrf.mxu0
    %2381 = vdwg.mxu0
    %v2382 = vadd.f32 %v2192, %v2374
    %v2383 = vadd.f32 %v2193, %v2379
    %v2384 = vld [vmem:[#allocation5 + $0x3e0] sm:$0x1]
    %v2385 = vld [vmem:[#allocation5 + $0x3e8] sm:$0x1]
    %v2386 = vsel %vm164, %v2382, 0.0
    %2387 = vadd.xlane.f32.xlu0 %v2386
    %v2388 = vpop.xlane.xlu0 %2387
    %v2389 = vsel %vm164, %v2383, 0.0
    %2390 = vadd.xlane.f32.xlu0 %v2389
    %v2391 = vpop.xlane.xlu0 %2390
    %v2392 = vmul.f32 %v2388, %v1040
    %v2393 = vmul.f32 %v2391, %v1040
    %v2394 = vsub.f32 %v2382, %v2392
    %v2395 = vsub.f32 %v2383, %v2393
    %v2396 = vmul.f32 %v2394, %v2394
    %v2397 = vmul.f32 %v2395, %v2395
    %v2398 = vsel %vm164, %v2396, 0.0
    %2399 = vadd.xlane.f32.xlu0 %v2398
    %v2400 = vpop.xlane.xlu0 %2399
    %v2401 = vsel %vm164, %v2397, 0.0
    %2402 = vadd.xlane.f32.xlu0 %v2401
    %v2403 = vpop.xlane.xlu0 %2402
    %v2404 = vmul.f32 %v2400, %v1040
    %v2405 = vmul.f32 %v2403, %v1040
    %v2406 = vadd.f32 %v2404, 1e-05
    %v2407 = vadd.f32 %v2405, 1e-05
    %v2408 = vrsqrt.pop %v2406
    %v2409 = vrsqrt.pop %v2407
    %v2410 = vmul.f32 %v2394, %v2408
    %v2411 = vmul.f32 %v2395, %v2409
    %v2412 = vlaneseq
    %v2413 = vshrl.u32 %v2412, 7
    %v2414 = vsub.s32 0, %v2413
    %v2415 = vrot.slane %v2384, %v2414
    %v2416 = vmul.f32 %v2410, %v2415
    %v2417 = vmul.f32 %v2411, %v2415
    %v2418 = vlaneseq
    %v2419 = vshrl.u32 %v2418, 7
    %v2420 = vsub.s32 0, %v2419
    %v2421 = vrot.slane %v2385, %v2420
    %v2422 = vadd.f32 %v2416, %v2421
    %v2423 = vadd.f32 %v2417, %v2421
    %v2424 = vld [vmem:[#allocation5 + $0xe0] sm:$0x3]
    %v2426 = vsel %vm49, %v2424, 0
    %2428 = vmatprep.subr.mxu0 0.0
    %2429 = vmatpush1.msra.mxu0 0.0
    %2430 = vmatprep.subr.mxu0 0.0
    %2431 = vmatpush1.msra.mxu0 0.0
    %2432 = vmatprep.subr.mxu0 0.0
    %2433 = vmatpush1.msra.mxu0 0.0
    %2434 = vmatprep.subr.mxu0 0.0
    %2435 = vmatpush1.msra.mxu0 0.0
    %2436 = vmatprep.subr.mxu0 0.0
    %2437 = vmatpush1.msra.mxu0 0.0
    %2438 = vmatprep.subr.mxu0 0.0
    %2439 = vmatpush1.msra.mxu0 0.0
    %2440 = vmatprep.subr.mxu0 0.0
    %2441 = vmatpush1.msra.mxu0 0.0
    %2442 = vmatprep.subr.mxu0 0.0
    %2443 = vmatpush1.msra.mxu0 0.0
    %2444 = vmatprep.subr.mxu0 0.0
    %2445 = vmatpush1.msra.mxu0 0.0
    %2446 = vmatprep.subr.mxu0 0.0
    %2447 = vmatpush1.msra.mxu0 0.0
    %2448 = vmatprep.subr.mxu0 0.0
    %2449 = vmatpush1.msra.mxu0 0.0
    %2450 = vmatprep.subr.mxu0 0.0
    %2451 = vmatpush1.msra.mxu0 0.0
    %2452 = vmatprep.subr.mxu0 0.0
    %2453 = vmatpush1.msra.mxu0 0.0
    %2454 = vmatprep.subr.mxu0 0.0
    %2455 = vmatpush1.msra.mxu0 0.0
    %2456 = vmatprep.subr.mxu0 0.0
    %2457 = vmatpush1.msra.mxu0 %v2423
    %2458 = vmatprep.subr.mxu0 0.0
    %2459 = vmatpush1.msra.mxu0 %v2422
    %2460 = vmatprep.subr.mxu0 0.0
    %2461 = vmatpush2.msra.mxu0 0.0
    %2462 = vmatprep.subr.mxu0 0.0
    %2463 = vmatpush2.msra.mxu0 0.0
    %2464 = vmatprep.subr.mxu0 0.0
    %2465 = vmatpush2.msra.mxu0 0.0
    %2466 = vmatprep.subr.mxu0 0.0
    %2467 = vmatpush2.msra.mxu0 0.0
    %2468 = vmatprep.subr.mxu0 0.0
    %2469 = vmatpush2.msra.mxu0 0.0
    %2470 = vmatprep.subr.mxu0 0.0
    %2471 = vmatpush2.msra.mxu0 0.0
    %2472 = vmatprep.subr.mxu0 0.0
    %2473 = vmatpush2.msra.mxu0 0.0
    %2474 = vmatprep.subr.mxu0 0.0
    %2475 = vmatpush2.msra.mxu0 0.0
    %2476 = vmatprep.subr.mxu0 0.0
    %2477 = vmatpush2.msra.mxu0 0.0
    %2478 = vmatprep.subr.mxu0 0.0
    %2479 = vmatpush2.msra.mxu0 0.0
    %2480 = vmatprep.subr.mxu0 0.0
    %2481 = vmatpush2.msra.mxu0 0.0
    %2482 = vmatprep.subr.mxu0 0.0
    %2483 = vmatpush2.msra.mxu0 0.0
    %2484 = vmatprep.subr.mxu0 0.0
    %2485 = vmatpush2.msra.mxu0 0.0
    %2486 = vmatprep.subr.mxu0 0.0
    %2487 = vmatpush2.msra.mxu0 0.0
    %2488 = vmatprep.subr.mxu0 0.0
    %2489 = vmatpush2.msra.mxu0 0.0
    %2490 = vmatprep.subr.mxu0 0.0
    %2491 = vmatpush2.msra.mxu0 0.0
    %2492 = vmatprep.mubr.f32.mxu0 0.0
    %2493 = vmatmul.mubr.f32.gmra.mxu0 %v2426
    %v2494 = vpop.f32.mrf.mxu0
    %v2495 = vadd.f32 0.0, %v2494
    %v2496 = vpop.f32.mrf.mxu0
    %2497 = vdwg.mxu0
    %v2498 = vld [vmem:[#allocation5 + $0xe8] sm:$0xff]
    %v2499 = vld [vmem:[#allocation5 + $0xf0] sm:$0xff]
    %v2500 = vld [vmem:[#allocation5 + $0xf8] sm:$0xff]
    %v2501 = vld [vmem:[#allocation5 + $0x100] sm:$0xff]
    %v2502 = vld [vmem:[#allocation5 + $0x108] sm:$0x1]
    %v2503 = vlaneseq
    %v2504 = vshrl.u32 %v2503, 7
    %v2505 = vsub.s32 0, %v2504
    %v2506 = vrot.slane %v2502, %v2505
    %v2508 = vsel %vm164, %v2495, 0
    %2510 = vmatprep.subr.mxu0 0.0
    %2511 = vmatpush1.msra.mxu0 0.0
    %2512 = vmatprep.subr.mxu0 0.0
    %2513 = vmatpush1.msra.mxu0 0.0
    %2514 = vmatprep.subr.mxu0 0.0
    %2515 = vmatpush1.msra.mxu0 0.0
    %2516 = vmatprep.subr.mxu0 0.0
    %2517 = vmatpush1.msra.mxu0 0.0
    %2518 = vmatprep.subr.mxu0 0.0
    %2519 = vmatpush1.msra.mxu0 0.0
    %2520 = vmatprep.subr.mxu0 0.0
    %2521 = vmatpush1.msra.mxu0 0.0
    %2522 = vmatprep.subr.mxu0 0.0
    %2523 = vmatpush1.msra.mxu0 0.0
    %2524 = vmatprep.subr.mxu0 0.0
    %2525 = vmatpush1.msra.mxu0 0.0
    %2526 = vmatprep.subr.mxu0 0.0
    %2527 = vmatpush1.msra.mxu0 0.0
    %2528 = vmatprep.subr.mxu0 0.0
    %2529 = vmatpush1.msra.mxu0 0.0
    %2530 = vmatprep.subr.mxu0 0.0
    %2531 = vmatpush1.msra.mxu0 0.0
    %2532 = vmatprep.subr.mxu0 0.0
    %2533 = vmatpush1.msra.mxu0 0.0
    %2534 = vmatprep.subr.mxu0 0.0
    %2535 = vmatpush1.msra.mxu0 %v2501
    %2536 = vmatprep.subr.mxu0 0.0
    %2537 = vmatpush1.msra.mxu0 %v2500
    %2538 = vmatprep.subr.mxu0 0.0
    %2539 = vmatpush1.msra.mxu0 %v2499
    %2540 = vmatprep.subr.mxu0 0.0
    %2541 = vmatpush1.msra.mxu0 %v2498
    %2542 = vmatprep.subr.mxu0 0.0
    %2543 = vmatpush2.msra.mxu0 0.0
    %2544 = vmatprep.subr.mxu0 0.0
    %2545 = vmatpush2.msra.mxu0 0.0
    %2546 = vmatprep.subr.mxu0 0.0
    %2547 = vmatpush2.msra.mxu0 0.0
    %2548 = vmatprep.subr.mxu0 0.0
    %2549 = vmatpush2.msra.mxu0 0.0
    %2550 = vmatprep.subr.mxu0 0.0
    %2551 = vmatpush2.msra.mxu0 0.0
    %2552 = vmatprep.subr.mxu0 0.0
    %2553 = vmatpush2.msra.mxu0 0.0
    %2554 = vmatprep.subr.mxu0 0.0
    %2555 = vmatpush2.msra.mxu0 0.0
    %2556 = vmatprep.subr.mxu0 0.0
    %2557 = vmatpush2.msra.mxu0 0.0
    %2558 = vmatprep.subr.mxu0 0.0
    %2559 = vmatpush2.msra.mxu0 0.0
    %2560 = vmatprep.subr.mxu0 0.0
    %2561 = vmatpush2.msra.mxu0 0.0
    %2562 = vmatprep.subr.mxu0 0.0
    %2563 = vmatpush2.msra.mxu0 0.0
    %2564 = vmatprep.subr.mxu0 0.0
    %2565 = vmatpush2.msra.mxu0 0.0
    %2566 = vmatprep.subr.mxu0 0.0
    %2567 = vmatpush2.msra.mxu0 0.0
    %2568 = vmatprep.subr.mxu0 0.0
    %2569 = vmatpush2.msra.mxu0 0.0
    %2570 = vmatprep.subr.mxu0 0.0
    %2571 = vmatpush2.msra.mxu0 0.0
    %2572 = vmatprep.subr.mxu0 0.0
    %2573 = vmatpush2.msra.mxu0 0.0
    %2574 = vmatprep.mubr.f32.mxu0 0.0
    %2575 = vmatmul.mubr.f32.gmra.mxu0 %v2508
    %v2576 = vpop.f32.mrf.mxu0
    %v2577 = vadd.f32 %v2506, %v2576
    %v2578 = vpop.f32.mrf.mxu0
    %2579 = vdwg.mxu0
    %vm2580 = vcmask 33792
    %2581 = vst.msk [vmem:[#allocation7] sm:$0x3] %vm2580, %v2577
    %2582 = vst.msk [vmem:[#allocation8] sm:$0xff] %vm164, %v2422
    %2583 = vst.msk [vmem:[#allocation8 + $0x8] sm:$0xff] %vm164, %v2423
    // Predicated region
    $region18: #{tpu_custom_call.1} parent=1 // pred_check
      _
    $region19: #{tpu_custom_call.1} parent=1 // pred_check_branch
      %2585 = sbr.rel (0) target = $region21
    $region20: #{tpu_custom_call.1} parent=1 // pred_region
      %s2587 = ssub.s32 32, 32
      %2588 = vsyncadd [#allocation4], %s2587
      %s2590 = sshll.u32 [#allocation7], 4
      %s2591 = int_to_ptr.vmem [resolvable:$true] %s2590
      %2593 = dma.vmem_to_hbm [thread:$0]  %s2591, 32, %s2, [#allocation4]
    $region21: #{tpu_custom_call.1} parent=1 // pred_fallthru
      _
    // Predicated region
    $region22: #{tpu_custom_call.1} parent=1 // pred_check
      _
    $region23: #{tpu_custom_call.1} parent=1 // pred_check_branch
      %2595 = sbr.rel (0) target = $region25
    $region24: #{tpu_custom_call.1} parent=1 // pred_region
      %s2597 = ssub.s32 256, 256
      %2598 = vsyncadd [#allocation9], %s2597
      %s2599 = sshll.u32 [#allocation8], 4
      %s2600 = int_to_ptr.vmem [resolvable:$true] %s2599
      %2605 = dma.vmem_to_hbm [thread:$0]  %s2600, 256, %s3, [#allocation9], 128, 128, 8
    $region25: #{tpu_custom_call.1} parent=1 // pred_fallthru
      _
    // Predicated region
    $region26: #{tpu_custom_call.1} parent=1 // pred_check
      _
    $region27: #{tpu_custom_call.1} parent=1 // pred_check_branch
      %2607 = sbr.rel (0) target = $region29
    $region28: #{tpu_custom_call.1} parent=1 // pred_region
      %2608 = dma.done [#allocation4], 32
    $region29: #{tpu_custom_call.1} parent=1 // pred_fallthru
      _
    // Predicated region
    $region30: #{tpu_custom_call.1} parent=1 // pred_check
      _
    $region31: #{tpu_custom_call.1} parent=1 // pred_check_branch
      %2610 = sbr.rel (0) target = $region33
    $region32: #{tpu_custom_call.1} parent=1 // pred_region
      %2611 = dma.done [#allocation9], 256
    $region33: #{tpu_custom_call.1} parent=1 // pred_fallthru
      _
    %2612 = vsyncpa [#allocation3], 1
    %2613 = vsyncpa [#allocation6], 1
    %2614 = vsyncpa [#allocation4], 1
    %2615 = vsyncpa [#allocation9], 1

</llo_original>
